<compile_context>
chip_gen: v7x
topology: tpu7x:2x2x1
jax: 0.10.0
libtpu: 0.0.40
codegen_flags: <defaults>
</compile_context>

<pallas_src>
import jax
import jax.numpy as jnp
from jax.experimental import pallas as pl
from jax.experimental.pallas import tpu as pltpu

BN_EPS = 1e-5
OUT_FEATURES = 32 * 32 * 3  # 3072, fixed by the final view(-1, 3, 32, 32)


def _make_trunk_kernel(hidden_dims):
    """Layers 1-4: (Linear -> BatchNorm1d(train) -> ReLU) x 4, emits bf16 h."""
    H1, H2, H3, H4 = hidden_dims

    def kernel(x_ref, w1_ref, w2_ref, w3_ref, w4_ref, bn_ref, h_ref):
        # bf16 x bf16 -> f32 accumulate on the MXU.
        def mm(h, w_ref):
            return jnp.dot(h.astype(jnp.bfloat16), w_ref[...],
                           preferred_element_type=jnp.float32)

        # Training-mode BatchNorm1d (batch stats, biased variance) + ReLU.
        # gamma/beta live in rows (2*li, 2*li+1) of the packed (8, H4) array.
        def bn_relu(h, li, width):
            gamma = bn_ref[2 * li:2 * li + 1, 0:width]
            beta = bn_ref[2 * li + 1:2 * li + 2, 0:width]
            mean = jnp.mean(h, axis=0, keepdims=True)
            var = jnp.mean((h - mean) ** 2, axis=0, keepdims=True)
            h_hat = (h - mean) * jax.lax.rsqrt(var + BN_EPS)
            return jnp.maximum(h_hat * gamma + beta, 0.0)

        h = bn_relu(mm(x_ref[...], w1_ref), 0, H1)
        h = bn_relu(mm(h, w2_ref), 1, H2)
        h = bn_relu(mm(h, w3_ref), 2, H3)
        h = bn_relu(mm(h, w4_ref), 3, H4)
        h_ref[...] = h.astype(jnp.bfloat16)

    return kernel


def _head_kernel(h_ref, w5_ref, b5_ref, out_ref):
    """Final Linear tile + Tanh: out = tanh(h @ W5[:, tile] + b5[tile])."""
    acc = jnp.dot(h_ref[...], w5_ref[...], preferred_element_type=jnp.float32)
    out_ref[...] = jnp.tanh(acc + b5_ref[...])


def make_generator(batch, noise_dim, hidden_dim, tile_n=1536):
    """Builds a jitted (B, noise_dim) f32 -> (B, 3, 32, 32) f32 generator."""
    H1, H2, H3, H4 = hidden_dim, hidden_dim * 2, hidden_dim * 4, hidden_dim * 6
    assert OUT_FEATURES % tile_n == 0 and tile_n % 128 == 0
    assert batch % 8 == 0, "BN batch reduction assumes a full f32 sublane tile"
    n_tiles = OUT_FEATURES // tile_n

    # --- Trunk: runs once, everything resident in VMEM (working set < 1 MiB).
    trunk_call = pl.pallas_call(
        _make_trunk_kernel((H1, H2, H3, H4)),
        out_shape=jax.ShapeDtypeStruct((batch, H4), jnp.bfloat16),
    )

    # --- Head: final (H4 x 3072) matmul tiled over output columns.
    resident = lambda j: (0, 0)   # same block every step -> stays in VMEM
    streamed = lambda j: (0, j)   # tiled over output columns

    head_flops = 2 * batch * H4 * OUT_FEATURES
    head_bytes = (batch * H4 * 2                   # h (bf16)
                  + H4 * OUT_FEATURES * 2          # W5 (bf16)
                  + OUT_FEATURES * 4               # b5
                  + batch * OUT_FEATURES * 4)      # output
    cost = pl.CostEstimate(flops=head_flops,
                           transcendentals=batch * OUT_FEATURES,
                           bytes_accessed=head_bytes)

    head_call = pl.pallas_call(
        _head_kernel,
        out_shape=jax.ShapeDtypeStruct((batch, OUT_FEATURES), jnp.float32),
        grid_spec=pltpu.PrefetchScalarGridSpec(
            num_scalar_prefetch=0,
            grid=(n_tiles,),
            in_specs=[
                pl.BlockSpec((batch, H4), resident),      # h  (resident, 6 KiB)
                pl.BlockSpec((H4, tile_n), streamed),     # W5 tile
                pl.BlockSpec((1, tile_n), streamed),      # b5 tile
            ],
            out_specs=pl.BlockSpec((batch, tile_n), streamed),
        ),
        compiler_params=pltpu.CompilerParams(
            dimension_semantics=("parallel",),     # 1 tile per TC on v7x
            vmem_limit_bytes=32 * 1024 * 1024,
        ),
        cost_estimate=cost,
    )

    @jax.jit
    def run(x, w1, w2, w3, w4, w5, bn_pack, b5):
        h = trunk_call(x, w1, w2, w3, w4, bn_pack)
        flat = head_call(h, w5, b5)
        # Matches PyTorch: output.view(-1, 3, 32, 32)  (NCHW)
        return flat.reshape(-1, 3, 32, 32)

    return run


def init_params(key, noise_dim, hidden_dim):
    """Deterministic synthetic parameters (not a checkpoint load).

    Pre-BN linear biases (b1..b4) are omitted: they are exactly cancelled by
    the BatchNorm mean subtraction, so the forward pass is unchanged.
    """
    dims = [noise_dim, hidden_dim, hidden_dim * 2, hidden_dim * 4,
            hidden_dim * 6, OUT_FEATURES]
    keys = jax.random.split(key, len(dims) - 1)
    weights, gammas, betas = [], [], []
    b5 = None
    for li in range(len(dims) - 1):
        fan_in, fan_out = dims[li], dims[li + 1]
        w = jax.random.normal(keys[li], (fan_in, fan_out), jnp.float32) * (
            1.0 / jnp.sqrt(jnp.float32(fan_in)))
        weights.append(w)
        if li < len(dims) - 2:  # BN after every Linear except the last
            gammas.append(jnp.ones((fan_out,), jnp.float32))
            betas.append(jnp.zeros((fan_out,), jnp.float32))
        else:
            b5 = jnp.full((1, fan_out), 0.01, jnp.float32)
    return weights, b5, gammas, betas


def prepare_params(weights, b5, gammas, betas, h4):
    """bf16 weights + one packed (8, H4) f32 BN-param array."""
    w_bf16 = [w.astype(jnp.bfloat16) for w in weights]
    rows = []
    for g, b in zip(gammas, betas):
        rows.append(jnp.pad(g, (0, h4 - g.shape[0])))
        rows.append(jnp.pad(b, (0, h4 - b.shape[0])))
    bn_pack = jnp.stack(rows, axis=0)  # (8, H4) f32
    return (*w_bf16, bn_pack, b5)


if __name__ == "__main__":
    # Small shapes consistent with the module's forward:
    #   noise_dim=64, hidden_dim=64 -> layers 64 -> 64 -> 128 -> 256 -> 384 -> 3072
    # Output features are fixed at 32*32*3 = 3072 by the final view().
    NOISE_DIM = 64
    HIDDEN_DIM = 64
    BATCH = 8

    key = jax.random.PRNGKey(0)
    k_x, k_p = jax.random.split(key)
    x = jax.random.normal(k_x, (BATCH, NOISE_DIM), jnp.float32)

    weights, b5, gammas, betas = init_params(k_p, NOISE_DIM, HIDDEN_DIM)
    w1b, w2b, w3b, w4b, w5b, bn_pack, b5 = prepare_params(
        weights, b5, gammas, betas, HIDDEN_DIM * 6)

    run = make_generator(BATCH, NOISE_DIM, HIDDEN_DIM, tile_n=1536)
    out = run(x, w1b, w2b, w3b, w4b, w5b, bn_pack, b5)
    out = jax.block_until_ready(out)

    assert out.shape == (BATCH, 3, 32, 32), out.shape
    assert out.dtype == jnp.float32
    assert bool(jnp.all(jnp.isfinite(out)))
    assert bool(jnp.all(jnp.abs(out) <= 1.0 + 1e-6))  # tanh range

    print("KERNEL_OK")
</pallas_src>

<mosaic_0001>
module attributes {stable_mosaic.version = 11 : i64} {
  func.func @_head_kernel(%arg0: i32, %arg1: memref<8x384xbf16, #tpu.memory_space<vmem>>, %arg2: memref<384x1536xbf16, #tpu.memory_space<vmem>>, %arg3: memref<1x1536xf32, #tpu.memory_space<vmem>>, %arg4: memref<8x1536xf32, #tpu.memory_space<vmem>>) attributes {dimension_semantics = [#tpu.dimension_semantics<parallel>], iteration_bounds = array<i64: 2>, scalar_prefetch = 0 : i64, scratch_operands = 0 : i64, tpu.core_type = #tpu.core_type<tc>, window_params = [{pipeline_mode = #tpu.pipeline_mode<synchronous>, transform_indices = @transform_0, window_bounds = array<i64: 8, 384>}, {transform_indices = @transform_1, window_bounds = array<i64: 384, 1536>}, {transform_indices = @transform_2, window_bounds = array<i64: 1, 1536>}, {transform_indices = @transform_3, window_bounds = array<i64: 8, 1536>}]} {
    %c0 = arith.constant 0 : index
    %c0_0 = arith.constant 0 : index
    %0 = vector.load %arg1[%c0, %c0_0] : memref<8x384xbf16, #tpu.memory_space<vmem>>, vector<8x384xbf16>
    %c0_1 = arith.constant 0 : index
    %c0_2 = arith.constant 0 : index
    %1 = vector.load %arg2[%c0_1, %c0_2] : memref<384x1536xbf16, #tpu.memory_space<vmem>>, vector<384x1536xbf16>
    %cst = arith.constant dense<0.000000e+00> : vector<8x1536xf32>
    %2 = tpu.matmul %0, %1, %cst {dimension_numbers = #tpu.dot_dimension_numbers<[1], [0], [0], [1], [0, 0, 1, 1], [], []>} : vector<8x384xbf16>, vector<384x1536xbf16>, vector<8x1536xf32> -> vector<8x1536xf32>
    %c0_3 = arith.constant 0 : index
    %c0_4 = arith.constant 0 : index
    %3 = vector.load %arg3[%c0_3, %c0_4] : memref<1x1536xf32, #tpu.memory_space<vmem>>, vector<1x1536xf32>
    %4 = vector.broadcast %3 : vector<1x1536xf32> to vector<8x1536xf32>
    %5 = arith.addf %2, %4 : vector<8x1536xf32>
    %6 = math.tanh %5 : vector<8x1536xf32>
    %c0_5 = arith.constant 0 : index
    %c0_6 = arith.constant 0 : index
    %7 = vector.load %arg4[%c0_5, %c0_6] : memref<8x1536xf32, #tpu.memory_space<vmem>>, vector<8x1536xf32>
    tpu.vector_store %arg4[%c0_5, %c0_6], %6 {strides = array<i32>} : memref<8x1536xf32, #tpu.memory_space<vmem>>, vector<8x1536xf32>,
    return
  }
  func.func @transform_0(%arg0: i32) -> (i32, i32) {
    %c0_i32 = arith.constant 0 : i32
    %c0_i32_0 = arith.constant 0 : i32
    %c0_i32_1 = arith.constant 0 : i32
    return %c0_i32, %c0_i32_0 : i32, i32
  }
  func.func @transform_1(%arg0: i32) -> (i32, i32) {
    %c0_i32 = arith.constant 0 : i32
    %c0_i32_0 = arith.constant 0 : i32
    return %c0_i32, %arg0 : i32, i32
  }
  func.func @transform_2(%arg0: i32) -> (i32, i32) {
    %c0_i32 = arith.constant 0 : i32
    %c0_i32_0 = arith.constant 0 : i32
    return %c0_i32, %arg0 : i32, i32
  }
  func.func @transform_3(%arg0: i32) -> (i32, i32) {
    %c0_i32 = arith.constant 0 : i32
    %c0_i32_0 = arith.constant 0 : i32
    return %c0_i32, %arg0 : i32, i32
  }
}

module attributes {stable_mosaic.version = 11 : i64} {
  func.func @kernel(%arg0: memref<8x64xf32, #tpu.memory_space<vmem>>, %arg1: memref<64x64xbf16, #tpu.memory_space<vmem>>, %arg2: memref<64x128xbf16, #tpu.memory_space<vmem>>, %arg3: memref<128x256xbf16, #tpu.memory_space<vmem>>, %arg4: memref<256x384xbf16, #tpu.memory_space<vmem>>, %arg5: memref<8x384xf32, #tpu.memory_space<vmem>>, %arg6: memref<8x384xbf16, #tpu.memory_space<vmem>>) attributes {dimension_semantics = [], scalar_prefetch = 0 : i64, scratch_operands = 0 : i64, tpu.core_type = #tpu.core_type<tc>} {
    %c0 = arith.constant 0 : index
    %c0_0 = arith.constant 0 : index
    %0 = vector.load %arg0[%c0, %c0_0] : memref<8x64xf32, #tpu.memory_space<vmem>>, vector<8x64xf32>
    %1 = arith.truncf %0 : vector<8x64xf32> to vector<8x64xbf16>
    %c0_1 = arith.constant 0 : index
    %c0_2 = arith.constant 0 : index
    %2 = vector.load %arg1[%c0_1, %c0_2] : memref<64x64xbf16, #tpu.memory_space<vmem>>, vector<64x64xbf16>
    %cst = arith.constant dense<0.000000e+00> : vector<8x64xf32>
    %3 = tpu.matmul %1, %2, %cst {dimension_numbers = #tpu.dot_dimension_numbers<[1], [0], [0], [1], [0, 0, 1, 1], [], []>} : vector<8x64xbf16>, vector<64x64xbf16>, vector<8x64xf32> -> vector<8x64xf32>
    %c0_3 = arith.constant 0 : index
    %c0_4 = arith.constant 0 : index
    %4 = vector.load %arg5[%c0_3, %c0_4] : memref<8x384xf32, #tpu.memory_space<vmem>>, vector<1x64xf32>
    %c1 = arith.constant 1 : index
    %c0_5 = arith.constant 0 : index
    %5 = vector.load %arg5[%c1, %c0_5] : memref<8x384xf32, #tpu.memory_space<vmem>>, vector<1x64xf32>
    %cst_6 = arith.constant dense<0.000000e+00> : vector<64xf32>
    %6 = vector.multi_reduction <add>, %3, %cst_6 [0] : vector<8x64xf32> to vector<64xf32>
    %7 = vector.shape_cast %6 : vector<64xf32> to vector<1x64xf32>
    %cst_7 = arith.constant 8.000000e+00 : f32
    %8 = vector.broadcast %cst_7 : f32 to vector<1x64xf32>
    %9 = arith.divf %7, %8 : vector<1x64xf32>
    %10 = vector.broadcast %9 : vector<1x64xf32> to vector<8x64xf32>
    %11 = arith.subf %3, %10 : vector<8x64xf32>
    %12 = arith.mulf %11, %11 : vector<8x64xf32>
    %cst_8 = arith.constant dense<0.000000e+00> : vector<64xf32>
    %13 = vector.multi_reduction <add>, %12, %cst_8 [0] : vector<8x64xf32> to vector<64xf32>
    %14 = vector.shape_cast %13 : vector<64xf32> to vector<1x64xf32>
    %cst_9 = arith.constant 8.000000e+00 : f32
    %15 = vector.broadcast %cst_9 : f32 to vector<1x64xf32>
    %16 = arith.divf %14, %15 : vector<1x64xf32>
    %17 = vector.broadcast %9 : vector<1x64xf32> to vector<8x64xf32>
    %18 = arith.subf %3, %17 : vector<8x64xf32>
    %cst_10 = arith.constant 9.99999974E-6 : f32
    %19 = vector.broadcast %cst_10 : f32 to vector<1x64xf32>
    %20 = arith.addf %16, %19 : vector<1x64xf32>
    %21 = math.rsqrt %20 : vector<1x64xf32>
    %22 = vector.broadcast %21 : vector<1x64xf32> to vector<8x64xf32>
    %23 = arith.mulf %18, %22 : vector<8x64xf32>
    %24 = vector.broadcast %4 : vector<1x64xf32> to vector<8x64xf32>
    %25 = arith.mulf %23, %24 : vector<8x64xf32>
    %26 = vector.broadcast %5 : vector<1x64xf32> to vector<8x64xf32>
    %27 = arith.addf %25, %26 : vector<8x64xf32>
    %cst_11 = arith.constant 0.000000e+00 : f32
    %28 = vector.broadcast %cst_11 : f32 to vector<8x64xf32>
    %29 = arith.maximumf %27, %28 : vector<8x64xf32>
    %30 = arith.truncf %29 : vector<8x64xf32> to vector<8x64xbf16>
    %c0_12 = arith.constant 0 : index
    %c0_13 = arith.constant 0 : index
    %31 = vector.load %arg2[%c0_12, %c0_13] : memref<64x128xbf16, #tpu.memory_space<vmem>>, vector<64x128xbf16>
    %cst_14 = arith.constant dense<0.000000e+00> : vector<8x128xf32>
    %32 = tpu.matmul %30, %31, %cst_14 {dimension_numbers = #tpu.dot_dimension_numbers<[1], [0], [0], [1], [0, 0, 1, 1], [], []>} : vector<8x64xbf16>, vector<64x128xbf16>, vector<8x128xf32> -> vector<8x128xf32>
    %c2 = arith.constant 2 : index
    %c0_15 = arith.constant 0 : index
    %33 = vector.load %arg5[%c2, %c0_15] : memref<8x384xf32, #tpu.memory_space<vmem>>, vector<1x128xf32>
    %c3 = arith.constant 3 : index
    %c0_16 = arith.constant 0 : index
    %34 = vector.load %arg5[%c3, %c0_16] : memref<8x384xf32, #tpu.memory_space<vmem>>, vector<1x128xf32>
    %cst_17 = arith.constant dense<0.000000e+00> : vector<128xf32>
    %35 = vector.multi_reduction <add>, %32, %cst_17 [0] : vector<8x128xf32> to vector<128xf32>
    %36 = vector.shape_cast %35 : vector<128xf32> to vector<1x128xf32>
    %cst_18 = arith.constant 8.000000e+00 : f32
    %37 = vector.broadcast %cst_18 : f32 to vector<1x128xf32>
    %38 = arith.divf %36, %37 : vector<1x128xf32>
    %39 = vector.broadcast %38 : vector<1x128xf32> to vector<8x128xf32>
    %40 = arith.subf %32, %39 : vector<8x128xf32>
    %41 = arith.mulf %40, %40 : vector<8x128xf32>
    %cst_19 = arith.constant dense<0.000000e+00> : vector<128xf32>
    %42 = vector.multi_reduction <add>, %41, %cst_19 [0] : vector<8x128xf32> to vector<128xf32>
    %43 = vector.shape_cast %42 : vector<128xf32> to vector<1x128xf32>
    %cst_20 = arith.constant 8.000000e+00 : f32
    %44 = vector.broadcast %cst_20 : f32 to vector<1x128xf32>
    %45 = arith.divf %43, %44 : vector<1x128xf32>
    %46 = vector.broadcast %38 : vector<1x128xf32> to vector<8x128xf32>
    %47 = arith.subf %32, %46 : vector<8x128xf32>
    %cst_21 = arith.constant 9.99999974E-6 : f32
    %48 = vector.broadcast %cst_21 : f32 to vector<1x128xf32>
    %49 = arith.addf %45, %48 : vector<1x128xf32>
    %50 = math.rsqrt %49 : vector<1x128xf32>
    %51 = vector.broadcast %50 : vector<1x128xf32> to vector<8x128xf32>
    %52 = arith.mulf %47, %51 : vector<8x128xf32>
    %53 = vector.broadcast %33 : vector<1x128xf32> to vector<8x128xf32>
    %54 = arith.mulf %52, %53 : vector<8x128xf32>
    %55 = vector.broadcast %34 : vector<1x128xf32> to vector<8x128xf32>
    %56 = arith.addf %54, %55 : vector<8x128xf32>
    %cst_22 = arith.constant 0.000000e+00 : f32
    %57 = vector.broadcast %cst_22 : f32 to vector<8x128xf32>
    %58 = arith.maximumf %56, %57 : vector<8x128xf32>
    %59 = arith.truncf %58 : vector<8x128xf32> to vector<8x128xbf16>
    %c0_23 = arith.constant 0 : index
    %c0_24 = arith.constant 0 : index
    %60 = vector.load %arg3[%c0_23, %c0_24] : memref<128x256xbf16, #tpu.memory_space<vmem>>, vector<128x256xbf16>
    %cst_25 = arith.constant dense<0.000000e+00> : vector<8x256xf32>
    %61 = tpu.matmul %59, %60, %cst_25 {dimension_numbers = #tpu.dot_dimension_numbers<[1], [0], [0], [1], [0, 0, 1, 1], [], []>} : vector<8x128xbf16>, vector<128x256xbf16>, vector<8x256xf32> -> vector<8x256xf32>
    %c4 = arith.constant 4 : index
    %c0_26 = arith.constant 0 : index
    %62 = vector.load %arg5[%c4, %c0_26] : memref<8x384xf32, #tpu.memory_space<vmem>>, vector<1x256xf32>
    %c5 = arith.constant 5 : index
    %c0_27 = arith.constant 0 : index
    %63 = vector.load %arg5[%c5, %c0_27] : memref<8x384xf32, #tpu.memory_space<vmem>>, vector<1x256xf32>
    %cst_28 = arith.constant dense<0.000000e+00> : vector<256xf32>
    %64 = vector.multi_reduction <add>, %61, %cst_28 [0] : vector<8x256xf32> to vector<256xf32>
    %65 = vector.shape_cast %64 : vector<256xf32> to vector<1x256xf32>
    %cst_29 = arith.constant 8.000000e+00 : f32
    %66 = vector.broadcast %cst_29 : f32 to vector<1x256xf32>
    %67 = arith.divf %65, %66 : vector<1x256xf32>
    %68 = vector.broadcast %67 : vector<1x256xf32> to vector<8x256xf32>
    %69 = arith.subf %61, %68 : vector<8x256xf32>
    %70 = arith.mulf %69, %69 : vector<8x256xf32>
    %cst_30 = arith.constant dense<0.000000e+00> : vector<256xf32>
    %71 = vector.multi_reduction <add>, %70, %cst_30 [0] : vector<8x256xf32> to vector<256xf32>
    %72 = vector.shape_cast %71 : vector<256xf32> to vector<1x256xf32>
    %cst_31 = arith.constant 8.000000e+00 : f32
    %73 = vector.broadcast %cst_31 : f32 to vector<1x256xf32>
    %74 = arith.divf %72, %73 : vector<1x256xf32>
    %75 = vector.broadcast %67 : vector<1x256xf32> to vector<8x256xf32>
    %76 = arith.subf %61, %75 : vector<8x256xf32>
    %cst_32 = arith.constant 9.99999974E-6 : f32
    %77 = vector.broadcast %cst_32 : f32 to vector<1x256xf32>
    %78 = arith.addf %74, %77 : vector<1x256xf32>
    %79 = math.rsqrt %78 : vector<1x256xf32>
    %80 = vector.broadcast %79 : vector<1x256xf32> to vector<8x256xf32>
    %81 = arith.mulf %76, %80 : vector<8x256xf32>
    %82 = vector.broadcast %62 : vector<1x256xf32> to vector<8x256xf32>
    %83 = arith.mulf %81, %82 : vector<8x256xf32>
    %84 = vector.broadcast %63 : vector<1x256xf32> to vector<8x256xf32>
    %85 = arith.addf %83, %84 : vector<8x256xf32>
    %cst_33 = arith.constant 0.000000e+00 : f32
    %86 = vector.broadcast %cst_33 : f32 to vector<8x256xf32>
    %87 = arith.maximumf %85, %86 : vector<8x256xf32>
    %88 = arith.truncf %87 : vector<8x256xf32> to vector<8x256xbf16>
    %c0_34 = arith.constant 0 : index
    %c0_35 = arith.constant 0 : index
    %89 = vector.load %arg4[%c0_34, %c0_35] : memref<256x384xbf16, #tpu.memory_space<vmem>>, vector<256x384xbf16>
    %cst_36 = arith.constant dense<0.000000e+00> : vector<8x384xf32>
    %90 = tpu.matmul %88, %89, %cst_36 {dimension_numbers = #tpu.dot_dimension_numbers<[1], [0], [0], [1], [0, 0, 1, 1], [], []>} : vector<8x256xbf16>, vector<256x384xbf16>, vector<8x384xf32> -> vector<8x384xf32>
    %c6 = arith.constant 6 : index
    %c0_37 = arith.constant 0 : index
    %91 = vector.load %arg5[%c6, %c0_37] : memref<8x384xf32, #tpu.memory_space<vmem>>, vector<1x384xf32>
    %c7 = arith.constant 7 : index
    %c0_38 = arith.constant 0 : index
    %92 = vector.load %arg5[%c7, %c0_38] : memref<8x384xf32, #tpu.memory_space<vmem>>, vector<1x384xf32>
    %cst_39 = arith.constant dense<0.000000e+00> : vector<384xf32>
    %93 = vector.multi_reduction <add>, %90, %cst_39 [0] : vector<8x384xf32> to vector<384xf32>
    %94 = vector.shape_cast %93 : vector<384xf32> to vector<1x384xf32>
    %cst_40 = arith.constant 8.000000e+00 : f32
    %95 = vector.broadcast %cst_40 : f32 to vector<1x384xf32>
    %96 = arith.divf %94, %95 : vector<1x384xf32>
    %97 = vector.broadcast %96 : vector<1x384xf32> to vector<8x384xf32>
    %98 = arith.subf %90, %97 : vector<8x384xf32>
    %99 = arith.mulf %98, %98 : vector<8x384xf32>
    %cst_41 = arith.constant dense<0.000000e+00> : vector<384xf32>
    %100 = vector.multi_reduction <add>, %99, %cst_41 [0] : vector<8x384xf32> to vector<384xf32>
    %101 = vector.shape_cast %100 : vector<384xf32> to vector<1x384xf32>
    %cst_42 = arith.constant 8.000000e+00 : f32
    %102 = vector.broadcast %cst_42 : f32 to vector<1x384xf32>
    %103 = arith.divf %101, %102 : vector<1x384xf32>
    %104 = vector.broadcast %96 : vector<1x384xf32> to vector<8x384xf32>
    %105 = arith.subf %90, %104 : vector<8x384xf32>
    %cst_43 = arith.constant 9.99999974E-6 : f32
    %106 = vector.broadcast %cst_43 : f32 to vector<1x384xf32>
    %107 = arith.addf %103, %106 : vector<1x384xf32>
    %108 = math.rsqrt %107 : vector<1x384xf32>
    %109 = vector.broadcast %108 : vector<1x384xf32> to vector<8x384xf32>
    %110 = arith.mulf %105, %109 : vector<8x384xf32>
    %111 = vector.broadcast %91 : vector<1x384xf32> to vector<8x384xf32>
    %112 = arith.mulf %110, %111 : vector<8x384xf32>
    %113 = vector.broadcast %92 : vector<1x384xf32> to vector<8x384xf32>
    %114 = arith.addf %112, %113 : vector<8x384xf32>
    %cst_44 = arith.constant 0.000000e+00 : f32
    %115 = vector.broadcast %cst_44 : f32 to vector<8x384xf32>
    %116 = arith.maximumf %114, %115 : vector<8x384xf32>
    %117 = arith.truncf %116 : vector<8x384xf32> to vector<8x384xbf16>
    %c0_45 = arith.constant 0 : index
    %c0_46 = arith.constant 0 : index
    %118 = vector.load %arg6[%c0_45, %c0_46] : memref<8x384xbf16, #tpu.memory_space<vmem>>, vector<8x384xbf16>
    tpu.vector_store %arg6[%c0_45, %c0_46], %117 {strides = array<i32>} : memref<8x384xbf16, #tpu.memory_space<vmem>>, vector<8x384xbf16>,
    return
  }
}

</mosaic_0001>

<llo_original>
// kernel: run.2
$region0: #{run.2}
  #allocation0 [shape = 'u32[]', space=smem, size = 0x4, offset = 0x4, fixed_abs, tag = 'smem constant byte address 0x4 - core index']
  #allocation1 [shape = 'u32[144,128]{1,0:T(1,128)}', space=vmem, size = 0x12000, scoped, tag = 'internal scratch']
  %s0 = inlined_call_operand.hbm [shape: f32[8,64], index: 0, kind: input, shape index: {}]
  %s1 = inlined_call_operand.hbm [shape: bf16[64,64], index: 1, kind: input, shape index: {}]
  %s2 = inlined_call_operand.hbm [shape: bf16[64,128], index: 2, kind: input, shape index: {}]
  %s3 = inlined_call_operand.hbm [shape: bf16[128,256], index: 3, kind: input, shape index: {}]
  %s4 = inlined_call_operand.hbm [shape: bf16[256,384], index: 4, kind: input, shape index: {}]
  %s5 = inlined_call_operand.hbm [shape: f32[8,384], index: 5, kind: input, shape index: {}]
  %s6 = inlined_call_operand.vmem [shape: bf16[8,384], index: 6, kind: output, shape index: {}]
  %s7 = sld [smem:[#allocation0]]
  $region58: #{run.2} parent=0
    _
  %s9 = ssub.s32 1, %s7
  %s10 = scalar_select 0, %s9, %s7
  $region1: #{run.2} parent=0
    #allocation2 [shape = 'u8[4096]{0}', space=vmem, size = 0x1000, scoped, tag = 'input window, operand 0, single buffered']
    #allocation3 [shape = 's32[1]{0}', space=sflag, size = 0x4, scoped, tag = 'scoped memory for run.2']
    #allocation4 [shape = 'u8[16384]{0}', space=vmem, size = 0x4000, scoped, tag = 'input window, operand 1, single buffered']
    #allocation5 [shape = 's32[1]{0}', space=sflag, size = 0x4, scoped, tag = 'scoped memory for run.2']
    #allocation6 [shape = 'u8[16384]{0}', space=vmem, size = 0x4000, scoped, tag = 'input window, operand 2, single buffered']
    #allocation7 [shape = 'u8[65536]{0}', space=vmem, size = 0x10000, scoped, tag = 'input window, operand 3, single buffered']
    #allocation8 [shape = 's32[1]{0}', space=sflag, size = 0x4, scoped, tag = 'scoped memory for run.2']
    #allocation9 [shape = 'u8[196608]{0}', space=vmem, size = 0x30000, scoped, tag = 'input window, operand 4, single buffered']
    #allocation10 [shape = 'u8[12288]{0}', space=vmem, size = 0x3000, scoped, tag = 'input window, operand 5, single buffered']
    #allocation11 [shape = 's32[1]{0}', space=sflag, size = 0x4, scoped, tag = 'scoped memory for run.2']
    %11 = vsyncpa [#allocation3], 0
    %12 = vsyncpa [#allocation5], 0
    %13 = vsyncpa [#allocation8], 0
    %14 = vsyncpa [#allocation11], 0
    // Predicated region
    $region2: #{run.2} parent=1 // pred_check
      _
    $region3: #{run.2} parent=1 // pred_check_branch
      %16 = sbr.rel (0) target = $region5
    $region4: #{run.2} parent=1 // pred_region
      %s18 = ssub.s32 128, 128
      %19 = vsyncadd [#allocation3], %s18
      %s21 = sshll.u32 [#allocation2], 4
      %s22 = int_to_ptr.vmem [resolvable:$true] %s21
      %24 = dma.hbm_to_vmem [thread:$0]  %s0, 128, %s22, [#allocation3]
    $region5: #{run.2} parent=1 // pred_fallthru
      _
    // Predicated region
    $region6: #{run.2} parent=1 // pred_check
      _
    $region7: #{run.2} parent=1 // pred_check_branch
      %26 = sbr.rel (0) target = $region9
    $region8: #{run.2} parent=1 // pred_region
      %s28 = ssub.s32 512, 512
      %29 = vsyncadd [#allocation5], %s28
      %s30 = sshll.u32 [#allocation4], 4
      %s31 = int_to_ptr.vmem [resolvable:$true] %s30
      %36 = dma.hbm_to_vmem [thread:$0]  %s1, 512, %s31, [#allocation5], 64, 64, 4
    $region9: #{run.2} parent=1 // pred_fallthru
      _
    // Predicated region
    $region10: #{run.2} parent=1 // pred_check
      _
    $region11: #{run.2} parent=1 // pred_check_branch
      %38 = sbr.rel (0) target = $region13
    $region12: #{run.2} parent=1 // pred_region
      %s40 = ssub.s32 512, 512
      %41 = vsyncadd [#allocation5], %s40
      %s42 = sshll.u32 [#allocation6], 4
      %s43 = int_to_ptr.vmem [resolvable:$true] %s42
      %48 = dma.hbm_to_vmem [thread:$0]  %s2, 512, %s43, [#allocation5], 64, 64, 4
    $region13: #{run.2} parent=1 // pred_fallthru
      _
    // Predicated region
    $region14: #{run.2} parent=1 // pred_check
      _
    $region15: #{run.2} parent=1 // pred_check_branch
      %50 = sbr.rel (0) target = $region17
    $region16: #{run.2} parent=1 // pred_region
      %s52 = ssub.s32 2048, 2048
      %53 = vsyncadd [#allocation8], %s52
      %s54 = sshll.u32 [#allocation7], 4
      %s55 = int_to_ptr.vmem [resolvable:$true] %s54
      %60 = dma.hbm_to_vmem [thread:$0]  %s3, 2048, %s55, [#allocation8], 128, 128, 8
    $region17: #{run.2} parent=1 // pred_fallthru
      _
    // Predicated region
    $region18: #{run.2} parent=1 // pred_check
      _
    $region19: #{run.2} parent=1 // pred_check_branch
      %62 = sbr.rel (0) target = $region21
    $region20: #{run.2} parent=1 // pred_region
      %s64 = ssub.s32 6144, 6144
      %65 = vsyncadd [#allocation8], %s64
      %s66 = sshll.u32 [#allocation9], 4
      %s67 = int_to_ptr.vmem [resolvable:$true] %s66
      %72 = dma.hbm_to_vmem [thread:$0]  %s4, 6144, %s67, [#allocation8], 192, 192, 12
    $region21: #{run.2} parent=1 // pred_fallthru
      _
    // Predicated region
    $region22: #{run.2} parent=1 // pred_check
      _
    $region23: #{run.2} parent=1 // pred_check_branch
      %74 = sbr.rel (0) target = $region25
    $region24: #{run.2} parent=1 // pred_region
      %s76 = ssub.s32 384, 384
      %77 = vsyncadd [#allocation11], %s76
      %s79 = sshll.u32 [#allocation10], 4
      %s80 = int_to_ptr.vmem [resolvable:$true] %s79
      %82 = dma.hbm_to_vmem [thread:$0]  %s5, 384, %s80, [#allocation11]
    $region25: #{run.2} parent=1 // pred_fallthru
      _
    // Predicated region
    $region26: #{run.2} parent=1 // pred_check
      _
    $region27: #{run.2} parent=1 // pred_check_branch
      %84 = sbr.rel (0) target = $region29
    $region28: #{run.2} parent=1 // pred_region
      %85 = dma.done [#allocation3], 128
    $region29: #{run.2} parent=1 // pred_fallthru
      _
    // Predicated region
    $region30: #{run.2} parent=1 // pred_check
      _
    $region31: #{run.2} parent=1 // pred_check_branch
      %87 = sbr.rel (0) target = $region33
    $region32: #{run.2} parent=1 // pred_region
      %88 = dma.done [#allocation5], 512
    $region33: #{run.2} parent=1 // pred_fallthru
      _
    // Predicated region
    $region34: #{run.2} parent=1 // pred_check
      _
    $region35: #{run.2} parent=1 // pred_check_branch
      %90 = sbr.rel (0) target = $region37
    $region36: #{run.2} parent=1 // pred_region
      %91 = dma.done [#allocation5], 512
    $region37: #{run.2} parent=1 // pred_fallthru
      _
    // Predicated region
    $region38: #{run.2} parent=1 // pred_check
      _
    $region39: #{run.2} parent=1 // pred_check_branch
      %93 = sbr.rel (0) target = $region41
    $region40: #{run.2} parent=1 // pred_region
      %94 = dma.done [#allocation8], 2048
    $region41: #{run.2} parent=1 // pred_fallthru
      _
    // Predicated region
    $region42: #{run.2} parent=1 // pred_check
      _
    $region43: #{run.2} parent=1 // pred_check_branch
      %96 = sbr.rel (0) target = $region45
    $region44: #{run.2} parent=1 // pred_region
      %97 = dma.done [#allocation8], 6144
    $region45: #{run.2} parent=1 // pred_fallthru
      _
    // Predicated region
    $region46: #{run.2} parent=1 // pred_check
      _
    $region47: #{run.2} parent=1 // pred_check_branch
      %99 = sbr.rel (0) target = $region49
    $region48: #{run.2} parent=1 // pred_region
      %100 = dma.done [#allocation11], 384
    $region49: #{run.2} parent=1 // pred_fallthru
      _
    %v102 = vld [vmem:[#allocation2] sm:$0xff]
    %v103 = vpack.c.bf16 %v102, %v102
    %v104 = vld [vmem:[#allocation4] sm:$0xf]
    %v105 = vld [vmem:[#allocation4 + $0x4] sm:$0xf]
    %v106 = vld [vmem:[#allocation4 + $0x8] sm:$0xf]
    %v107 = vld [vmem:[#allocation4 + $0xc] sm:$0xf]
    %v108 = vld [vmem:[#allocation4 + $0x10] sm:$0xf]
    %v109 = vld [vmem:[#allocation4 + $0x14] sm:$0xf]
    %v110 = vld [vmem:[#allocation4 + $0x18] sm:$0xf]
    %v111 = vld [vmem:[#allocation4 + $0x1c] sm:$0xf]
    %v120 = vunpack.c.l.b16 %v104
    %v121 = vunpack.c.l.b16 %v105
    %v122 = vunpack.c.l.b16 %v106
    %v123 = vunpack.c.l.b16 %v107
    %v124 = vunpack.c.l.b16 %v108
    %v125 = vunpack.c.l.b16 %v109
    %v126 = vunpack.c.l.b16 %v110
    %v127 = vunpack.c.l.b16 %v111
    %v128 = vpack.c.b16 %v121, %v120
    %v129 = vpack.c.b16 %v123, %v122
    %v130 = vpack.c.b16 %v125, %v124
    %v131 = vpack.c.b16 %v127, %v126
    %vm136 = vcmask 523264
    %v138 = vsel %vm136, %v103, 0
    %140 = vmatprep.subr.bf16.mxu0 0
    %141 = vmatpush1.bf16.msra.mxu0 %v128
    %142 = vmatprep.subr.bf16.mxu0 0
    %143 = vmatpush1.bf16.msra.mxu0 %v129
    %144 = vmatprep.subr.bf16.mxu0 0
    %145 = vmatpush1.bf16.msra.mxu0 %v130
    %146 = vmatprep.subr.bf16.mxu0 0
    %147 = vmatpush1.bf16.msra.mxu0 %v131
    %148 = vmatprep.subr.bf16.mxu0 0
    %149 = vmatpush1.bf16.msra.mxu0 0
    %150 = vmatprep.subr.bf16.mxu0 0
    %151 = vmatpush1.bf16.msra.mxu0 0
    %152 = vmatprep.subr.bf16.mxu0 0
    %153 = vmatpush1.bf16.msra.mxu0 0
    %154 = vmatprep.subr.bf16.mxu0 0
    %155 = vmatpush1.bf16.msra.mxu0 0
    %156 = vmatprep.subr.bf16.mxu0 0
    %157 = vmatpush1.bf16.msra.mxu0 0
    %158 = vmatprep.subr.bf16.mxu0 0
    %159 = vmatpush1.bf16.msra.mxu0 0
    %160 = vmatprep.subr.bf16.mxu0 0
    %161 = vmatpush1.bf16.msra.mxu0 0
    %162 = vmatprep.subr.bf16.mxu0 0
    %163 = vmatpush1.bf16.msra.mxu0 0
    %164 = vmatprep.subr.bf16.mxu0 0
    %165 = vmatpush1.bf16.msra.mxu0 0
    %166 = vmatprep.subr.bf16.mxu0 0
    %167 = vmatpush1.bf16.msra.mxu0 0
    %168 = vmatprep.subr.bf16.mxu0 0
    %169 = vmatpush1.bf16.msra.mxu0 0
    %170 = vmatprep.subr.bf16.mxu0 0
    %171 = vmatpush1.bf16.msra.mxu0 0
    %172 = vmatprep.mubr.bf16.mxu0 0
    %173 = vmatmul.mubr.bf16.gmra.mrb[0].mxu0 %v138
    %v174 = vpop.f32.mrb[0].mxu0
    %v175 = vadd.f32 0.0, %v174
    %v176 = vpop.f32.mrb[0].mxu0
    %v177 = vpop.f32.mrb[0].mxu0
    %v178 = vpop.f32.mrb[0].mxu0
    %179 = vdwg.mxu0
    %v180 = vld [vmem:[#allocation10] ss:$0 sm:$0xff]
    %v181 = vld [vmem:[#allocation10 + $0x1] ss:$0 sm:$0xff]
    %v182 = vsel %vm136, %v175, 0.0
    %v183 = vrot.slane %v182, 4
    %v184 = vadd.f32 %v182, %v183
    %v185 = vrot.slane %v184, 2
    %v186 = vadd.f32 %v184, %v185
    %v187 = vrot.slane %v186, 1
    %v188 = vadd.f32 %v186, %v187
    %v189 = vrcp.pop 8.0
    %v190 = vmul.f32 %v188, %v189
    %v191 = vsub.f32 %v175, %v190
    %v192 = vmul.f32 %v191, %v191
    %v193 = vsel %vm136, %v192, 0.0
    %v194 = vrot.slane %v193, 4
    %v195 = vadd.f32 %v193, %v194
    %v196 = vrot.slane %v195, 2
    %v197 = vadd.f32 %v195, %v196
    %v198 = vrot.slane %v197, 1
    %v199 = vadd.f32 %v197, %v198
    %v200 = vmul.f32 %v199, %v189
    %v201 = vadd.f32 %v200, 1e-05
    %v202 = vrsqrt.pop %v201
    %v203 = vmul.f32 %v191, %v202
    %v204 = vmul.f32 %v203, %v180
    %v205 = vadd.f32 %v204, %v181
    %v206 = vmax.f32 %v205, 0.0
    %v207 = vpack.c.bf16 %v206, %v206
    %v208 = vld [vmem:[#allocation6] sm:$0xf]
    %v209 = vld [vmem:[#allocation6 + $0x4] sm:$0xf]
    %v210 = vld [vmem:[#allocation6 + $0x8] sm:$0xf]
    %v211 = vld [vmem:[#allocation6 + $0xc] sm:$0xf]
    %v212 = vld [vmem:[#allocation6 + $0x10] sm:$0xf]
    %v213 = vld [vmem:[#allocation6 + $0x14] sm:$0xf]
    %v214 = vld [vmem:[#allocation6 + $0x18] sm:$0xf]
    %v215 = vld [vmem:[#allocation6 + $0x1c] sm:$0xf]
    %v224 = vunpack.c.l.b16 %v208
    %v225 = vunpack.c.l.b16 %v209
    %v226 = vunpack.c.l.b16 %v210
    %v227 = vunpack.c.l.b16 %v211
    %v228 = vunpack.c.l.b16 %v212
    %v229 = vunpack.c.l.b16 %v213
    %v230 = vunpack.c.l.b16 %v214
    %v231 = vunpack.c.l.b16 %v215
    %v232 = vpack.c.b16 %v225, %v224
    %v233 = vpack.c.b16 %v227, %v226
    %v234 = vpack.c.b16 %v229, %v228
    %v235 = vpack.c.b16 %v231, %v230
    %v241 = vsel %vm136, %v207, 0
    %243 = vmatprep.subr.bf16.mxu0 0
    %244 = vmatpush1.bf16.msra.mxu0 %v232
    %245 = vmatprep.subr.bf16.mxu0 0
    %246 = vmatpush1.bf16.msra.mxu0 %v233
    %247 = vmatprep.subr.bf16.mxu0 0
    %248 = vmatpush1.bf16.msra.mxu0 %v234
    %249 = vmatprep.subr.bf16.mxu0 0
    %250 = vmatpush1.bf16.msra.mxu0 %v235
    %251 = vmatprep.subr.bf16.mxu0 0
    %252 = vmatpush1.bf16.msra.mxu0 0
    %253 = vmatprep.subr.bf16.mxu0 0
    %254 = vmatpush1.bf16.msra.mxu0 0
    %255 = vmatprep.subr.bf16.mxu0 0
    %256 = vmatpush1.bf16.msra.mxu0 0
    %257 = vmatprep.subr.bf16.mxu0 0
    %258 = vmatpush1.bf16.msra.mxu0 0
    %259 = vmatprep.subr.bf16.mxu0 0
    %260 = vmatpush1.bf16.msra.mxu0 0
    %261 = vmatprep.subr.bf16.mxu0 0
    %262 = vmatpush1.bf16.msra.mxu0 0
    %263 = vmatprep.subr.bf16.mxu0 0
    %264 = vmatpush1.bf16.msra.mxu0 0
    %265 = vmatprep.subr.bf16.mxu0 0
    %266 = vmatpush1.bf16.msra.mxu0 0
    %267 = vmatprep.subr.bf16.mxu0 0
    %268 = vmatpush1.bf16.msra.mxu0 0
    %269 = vmatprep.subr.bf16.mxu0 0
    %270 = vmatpush1.bf16.msra.mxu0 0
    %271 = vmatprep.subr.bf16.mxu0 0
    %272 = vmatpush1.bf16.msra.mxu0 0
    %273 = vmatprep.subr.bf16.mxu0 0
    %274 = vmatpush1.bf16.msra.mxu0 0
    %275 = vmatprep.mubr.bf16.mxu0 0
    %276 = vmatmul.mubr.bf16.gmra.mrb[0].mxu0 %v241
    %v277 = vpop.f32.mrb[0].mxu0
    %v278 = vadd.f32 0.0, %v277
    %v279 = vpop.f32.mrb[0].mxu0
    %v280 = vpop.f32.mrb[0].mxu0
    %v281 = vpop.f32.mrb[0].mxu0
    %282 = vdwg.mxu0
    %v283 = vld [vmem:[#allocation10 + $0x2] ss:$0 sm:$0xff]
    %v284 = vld [vmem:[#allocation10 + $0x3] ss:$0 sm:$0xff]
    %v285 = vrot.slane %v278, 4
    %v286 = vadd.f32 %v278, %v285
    %v287 = vrot.slane %v286, 2
    %v288 = vadd.f32 %v286, %v287
    %v289 = vrot.slane %v288, 1
    %v290 = vadd.f32 %v288, %v289
    %v291 = vmul.f32 %v290, %v189
    %v292 = vsub.f32 %v278, %v291
    %v293 = vmul.f32 %v292, %v292
    %v294 = vrot.slane %v293, 4
    %v295 = vadd.f32 %v293, %v294
    %v296 = vrot.slane %v295, 2
    %v297 = vadd.f32 %v295, %v296
    %v298 = vrot.slane %v297, 1
    %v299 = vadd.f32 %v297, %v298
    %v300 = vmul.f32 %v299, %v189
    %v301 = vadd.f32 %v300, 1e-05
    %v302 = vrsqrt.pop %v301
    %v303 = vmul.f32 %v292, %v302
    %v304 = vmul.f32 %v303, %v283
    %v305 = vadd.f32 %v304, %v284
    %v306 = vmax.f32 %v305, 0.0
    %v307 = vpack.c.bf16 %v306, %v306
    %v308 = vld [vmem:[#allocation7] sm:$0xff]
    %v309 = vld [vmem:[#allocation7 + $0x8] sm:$0xff]
    %v310 = vld [vmem:[#allocation7 + $0x10] sm:$0xff]
    %v311 = vld [vmem:[#allocation7 + $0x18] sm:$0xff]
    %v312 = vld [vmem:[#allocation7 + $0x20] sm:$0xff]
    %v313 = vld [vmem:[#allocation7 + $0x28] sm:$0xff]
    %v314 = vld [vmem:[#allocation7 + $0x30] sm:$0xff]
    %v315 = vld [vmem:[#allocation7 + $0x38] sm:$0xff]
    %v316 = vld [vmem:[#allocation7 + $0x40] sm:$0xff]
    %v317 = vld [vmem:[#allocation7 + $0x48] sm:$0xff]
    %v318 = vld [vmem:[#allocation7 + $0x50] sm:$0xff]
    %v319 = vld [vmem:[#allocation7 + $0x58] sm:$0xff]
    %v320 = vld [vmem:[#allocation7 + $0x60] sm:$0xff]
    %v321 = vld [vmem:[#allocation7 + $0x68] sm:$0xff]
    %v322 = vld [vmem:[#allocation7 + $0x70] sm:$0xff]
    %v323 = vld [vmem:[#allocation7 + $0x78] sm:$0xff]
    %v340 = vunpack.c.l.b16 %v308
    %v341 = vunpack.c.h.b16 %v308
    %v342 = vunpack.c.l.b16 %v309
    %v343 = vunpack.c.h.b16 %v309
    %v344 = vunpack.c.l.b16 %v310
    %v345 = vunpack.c.h.b16 %v310
    %v346 = vunpack.c.l.b16 %v311
    %v347 = vunpack.c.h.b16 %v311
    %v348 = vunpack.c.l.b16 %v312
    %v349 = vunpack.c.h.b16 %v312
    %v350 = vunpack.c.l.b16 %v313
    %v351 = vunpack.c.h.b16 %v313
    %v352 = vunpack.c.l.b16 %v314
    %v353 = vunpack.c.h.b16 %v314
    %v354 = vunpack.c.l.b16 %v315
    %v355 = vunpack.c.h.b16 %v315
    %v356 = vunpack.c.l.b16 %v316
    %v357 = vunpack.c.h.b16 %v316
    %v358 = vunpack.c.l.b16 %v317
    %v359 = vunpack.c.h.b16 %v317
    %v360 = vunpack.c.l.b16 %v318
    %v361 = vunpack.c.h.b16 %v318
    %v362 = vunpack.c.l.b16 %v319
    %v363 = vunpack.c.h.b16 %v319
    %v364 = vunpack.c.l.b16 %v320
    %v365 = vunpack.c.h.b16 %v320
    %v366 = vunpack.c.l.b16 %v321
    %v367 = vunpack.c.h.b16 %v321
    %v368 = vunpack.c.l.b16 %v322
    %v369 = vunpack.c.h.b16 %v322
    %v370 = vunpack.c.l.b16 %v323
    %v371 = vunpack.c.h.b16 %v323
    %v372 = vpack.c.b16 %v342, %v340
    %v373 = vpack.c.b16 %v343, %v341
    %v374 = vpack.c.b16 %v346, %v344
    %v375 = vpack.c.b16 %v347, %v345
    %v376 = vpack.c.b16 %v350, %v348
    %v377 = vpack.c.b16 %v351, %v349
    %v378 = vpack.c.b16 %v354, %v352
    %v379 = vpack.c.b16 %v355, %v353
    %v380 = vpack.c.b16 %v358, %v356
    %v381 = vpack.c.b16 %v359, %v357
    %v382 = vpack.c.b16 %v362, %v360
    %v383 = vpack.c.b16 %v363, %v361
    %v384 = vpack.c.b16 %v366, %v364
    %v385 = vpack.c.b16 %v367, %v365
    %v386 = vpack.c.b16 %v370, %v368
    %v387 = vpack.c.b16 %v371, %v369
    %404 = vmatprep.subr.bf16.mxu0 %v373
    %405 = vmatpush1.bf16.msra.mxu0 %v372
    %406 = vmatprep.subr.bf16.mxu0 %v375
    %407 = vmatpush1.bf16.msra.mxu0 %v374
    %408 = vmatprep.subr.bf16.mxu0 %v377
    %409 = vmatpush1.bf16.msra.mxu0 %v376
    %410 = vmatprep.subr.bf16.mxu0 %v379
    %411 = vmatpush1.bf16.msra.mxu0 %v378
    %412 = vmatprep.subr.bf16.mxu0 %v381
    %413 = vmatpush1.bf16.msra.mxu0 %v380
    %414 = vmatprep.subr.bf16.mxu0 %v383
    %415 = vmatpush1.bf16.msra.mxu0 %v382
    %416 = vmatprep.subr.bf16.mxu0 %v385
    %417 = vmatpush1.bf16.msra.mxu0 %v384
    %418 = vmatprep.subr.bf16.mxu0 %v387
    %419 = vmatpush1.bf16.msra.mxu0 %v386
    %420 = vmatprep.subr.bf16.mxu0 0
    %421 = vmatpush1.bf16.msra.mxu0 0
    %422 = vmatprep.subr.bf16.mxu0 0
    %423 = vmatpush1.bf16.msra.mxu0 0
    %424 = vmatprep.subr.bf16.mxu0 0
    %425 = vmatpush1.bf16.msra.mxu0 0
    %426 = vmatprep.subr.bf16.mxu0 0
    %427 = vmatpush1.bf16.msra.mxu0 0
    %428 = vmatprep.subr.bf16.mxu0 0
    %429 = vmatpush1.bf16.msra.mxu0 0
    %430 = vmatprep.subr.bf16.mxu0 0
    %431 = vmatpush1.bf16.msra.mxu0 0
    %432 = vmatprep.subr.bf16.mxu0 0
    %433 = vmatpush1.bf16.msra.mxu0 0
    %434 = vmatprep.subr.bf16.mxu0 0
    %435 = vmatpush1.bf16.msra.mxu0 0
    %436 = vmatprep.mubr.bf16.mxu0 0
    %437 = vmatmul.mubr.bf16.gmra.mrb[0].mxu0 %v307
    %v438 = vpop.f32.mrb[0].mxu0
    %v439 = vadd.f32 0.0, %v438
    %v440 = vpop.f32.mrb[0].mxu0
    %v441 = vadd.f32 0.0, %v440
    %v442 = vpop.f32.mrb[0].mxu0
    %v443 = vpop.f32.mrb[0].mxu0
    %444 = vdwg.mxu0
    %s445 = scalar_lea.vmem [#allocation10], 4
    %v446 = vld [vmem:[%s445] ss:$8 sm:$0x3]
    %s447 = scalar_lea.vmem [#allocation10], 5
    %v448 = vld [vmem:[%s447] ss:$8 sm:$0x3]
    %v449 = vrot.slane %v439, 4
    %v450 = vadd.f32 %v439, %v449
    %v451 = vrot.slane %v450, 2
    %v452 = vadd.f32 %v450, %v451
    %v453 = vrot.slane %v452, 1
    %v454 = vadd.f32 %v452, %v453
    %v455 = vrot.slane %v441, 4
    %v456 = vadd.f32 %v441, %v455
    %v457 = vrot.slane %v456, 2
    %v458 = vadd.f32 %v456, %v457
    %v459 = vrot.slane %v458, 1
    %v460 = vadd.f32 %v458, %v459
    %v461 = vmul.f32 %v454, %v189
    %v462 = vmul.f32 %v460, %v189
    %v463 = vsub.f32 %v439, %v461
    %v464 = vsub.f32 %v441, %v462
    %v465 = vmul.f32 %v463, %v463
    %v466 = vmul.f32 %v464, %v464
    %v467 = vrot.slane %v465, 4
    %v468 = vadd.f32 %v465, %v467
    %v469 = vrot.slane %v468, 2
    %v470 = vadd.f32 %v468, %v469
    %v471 = vrot.slane %v470, 1
    %v472 = vadd.f32 %v470, %v471
    %v473 = vrot.slane %v466, 4
    %v474 = vadd.f32 %v466, %v473
    %v475 = vrot.slane %v474, 2
    %v476 = vadd.f32 %v474, %v475
    %v477 = vrot.slane %v476, 1
    %v478 = vadd.f32 %v476, %v477
    %v479 = vmul.f32 %v472, %v189
    %v480 = vmul.f32 %v478, %v189
    %v481 = vadd.f32 %v479, 1e-05
    %v482 = vadd.f32 %v480, 1e-05
    %v483 = vrsqrt.pop %v481
    %v484 = vrsqrt.pop %v482
    %v485 = vmul.f32 %v463, %v483
    %v486 = vmul.f32 %v464, %v484
    %v488 = vlaneseq
    %v489 = vshrl.u32 %v488, 7
    %v490 = vsub.s32 0, %v489
    %v491 = vrot.slane %v446, %v490
    %v492 = vlaneseq
    %v493 = vshrl.u32 %v492, 7
    %v494 = vsub.s32 1, %v493
    %v495 = vrot.slane %v446, %v494
    %v498 = vmul.f32 %v485, %v491
    %v499 = vmul.f32 %v486, %v495
    %v501 = vlaneseq
    %v502 = vshrl.u32 %v501, 7
    %v503 = vsub.s32 0, %v502
    %v504 = vrot.slane %v448, %v503
    %v505 = vlaneseq
    %v506 = vshrl.u32 %v505, 7
    %v507 = vsub.s32 1, %v506
    %v508 = vrot.slane %v448, %v507
    %v511 = vadd.f32 %v498, %v504
    %v512 = vadd.f32 %v499, %v508
    %v513 = vmax.f32 %v511, 0.0
    %v514 = vmax.f32 %v512, 0.0
    %v515 = vpack.c.bf16 %v513, %v513
    %v516 = vpack.c.bf16 %v514, %v514
    %v517 = vld [vmem:[#allocation9] sm:$0xff]
    %v518 = vld [vmem:[#allocation9 + $0x8] sm:$0xf]
    %v519 = vld [vmem:[#allocation9 + $0xc] sm:$0xff]
    %v520 = vld [vmem:[#allocation9 + $0x14] sm:$0xf]
    %v521 = vld [vmem:[#allocation9 + $0x18] sm:$0xff]
    %v522 = vld [vmem:[#allocation9 + $0x20] sm:$0xf]
    %v523 = vld [vmem:[#allocation9 + $0x24] sm:$0xff]
    %v524 = vld [vmem:[#allocation9 + $0x2c] sm:$0xf]
    %v525 = vld [vmem:[#allocation9 + $0x30] sm:$0xff]
    %v526 = vld [vmem:[#allocation9 + $0x38] sm:$0xf]
    %v527 = vld [vmem:[#allocation9 + $0x3c] sm:$0xff]
    %v528 = vld [vmem:[#allocation9 + $0x44] sm:$0xf]
    %v529 = vld [vmem:[#allocation9 + $0x48] sm:$0xff]
    %v530 = vld [vmem:[#allocation9 + $0x50] sm:$0xf]
    %v531 = vld [vmem:[#allocation9 + $0x54] sm:$0xff]
    %v532 = vld [vmem:[#allocation9 + $0x5c] sm:$0xf]
    %v533 = vld [vmem:[#allocation9 + $0x60] sm:$0xff]
    %v534 = vld [vmem:[#allocation9 + $0x68] sm:$0xf]
    %v535 = vld [vmem:[#allocation9 + $0x6c] sm:$0xff]
    %v536 = vld [vmem:[#allocation9 + $0x74] sm:$0xf]
    %v537 = vld [vmem:[#allocation9 + $0x78] sm:$0xff]
    %v538 = vld [vmem:[#allocation9 + $0x80] sm:$0xf]
    %v539 = vld [vmem:[#allocation9 + $0x84] sm:$0xff]
    %v540 = vld [vmem:[#allocation9 + $0x8c] sm:$0xf]
    %v541 = vld [vmem:[#allocation9 + $0x90] sm:$0xff]
    %v542 = vld [vmem:[#allocation9 + $0x98] sm:$0xf]
    %v543 = vld [vmem:[#allocation9 + $0x9c] sm:$0xff]
    %v544 = vld [vmem:[#allocation9 + $0xa4] sm:$0xf]
    %v545 = vld [vmem:[#allocation9 + $0xa8] sm:$0xff]
    %v546 = vld [vmem:[#allocation9 + $0xb0] sm:$0xf]
    %v547 = vld [vmem:[#allocation9 + $0xb4] sm:$0xff]
    %v548 = vld [vmem:[#allocation9 + $0xbc] sm:$0xf]
    %v549 = vld [vmem:[#allocation9 + $0xc0] sm:$0xff]
    %v550 = vld [vmem:[#allocation9 + $0xc8] sm:$0xf]
    %v551 = vld [vmem:[#allocation9 + $0xcc] sm:$0xff]
    %v552 = vld [vmem:[#allocation9 + $0xd4] sm:$0xf]
    %v553 = vld [vmem:[#allocation9 + $0xd8] sm:$0xff]
    %v554 = vld [vmem:[#allocation9 + $0xe0] sm:$0xf]
    %v555 = vld [vmem:[#allocation9 + $0xe4] sm:$0xff]
    %v556 = vld [vmem:[#allocation9 + $0xec] sm:$0xf]
    %v557 = vld [vmem:[#allocation9 + $0xf0] sm:$0xff]
    %v558 = vld [vmem:[#allocation9 + $0xf8] sm:$0xf]
    %v559 = vld [vmem:[#allocation9 + $0xfc] sm:$0xff]
    %v560 = vld [vmem:[#allocation9 + $0x104] sm:$0xf]
    %v561 = vld [vmem:[#allocation9 + $0x108] sm:$0xff]
    %v562 = vld [vmem:[#allocation9 + $0x110] sm:$0xf]
    %v563 = vld [vmem:[#allocation9 + $0x114] sm:$0xff]
    %v564 = vld [vmem:[#allocation9 + $0x11c] sm:$0xf]
    %v565 = vld [vmem:[#allocation9 + $0x120] sm:$0xff]
    %v566 = vld [vmem:[#allocation9 + $0x128] sm:$0xf]
    %v567 = vld [vmem:[#allocation9 + $0x12c] sm:$0xff]
    %v568 = vld [vmem:[#allocation9 + $0x134] sm:$0xf]
    %v569 = vld [vmem:[#allocation9 + $0x138] sm:$0xff]
    %v570 = vld [vmem:[#allocation9 + $0x140] sm:$0xf]
    %v571 = vld [vmem:[#allocation9 + $0x144] sm:$0xff]
    %v572 = vld [vmem:[#allocation9 + $0x14c] sm:$0xf]
    %v573 = vld [vmem:[#allocation9 + $0x150] sm:$0xff]
    %v574 = vld [vmem:[#allocation9 + $0x158] sm:$0xf]
    %v575 = vld [vmem:[#allocation9 + $0x15c] sm:$0xff]
    %v576 = vld [vmem:[#allocation9 + $0x164] sm:$0xf]
    %v577 = vld [vmem:[#allocation9 + $0x168] sm:$0xff]
    %v578 = vld [vmem:[#allocation9 + $0x170] sm:$0xf]
    %v579 = vld [vmem:[#allocation9 + $0x174] sm:$0xff]
    %v580 = vld [vmem:[#allocation9 + $0x17c] sm:$0xf]
    %v645 = vunpack.c.l.b16 %v517
    %v646 = vunpack.c.h.b16 %v517
    %v647 = vunpack.c.l.b16 %v518
    %v648 = vunpack.c.l.b16 %v519
    %v649 = vunpack.c.h.b16 %v519
    %v650 = vunpack.c.l.b16 %v520
    %v651 = vunpack.c.l.b16 %v521
    %v652 = vunpack.c.h.b16 %v521
    %v653 = vunpack.c.l.b16 %v522
    %v654 = vunpack.c.l.b16 %v523
    %v655 = vunpack.c.h.b16 %v523
    %v656 = vunpack.c.l.b16 %v524
    %v657 = vunpack.c.l.b16 %v525
    %v658 = vunpack.c.h.b16 %v525
    %v659 = vunpack.c.l.b16 %v526
    %v660 = vunpack.c.l.b16 %v527
    %v661 = vunpack.c.h.b16 %v527
    %v662 = vunpack.c.l.b16 %v528
    %v663 = vunpack.c.l.b16 %v529
    %v664 = vunpack.c.h.b16 %v529
    %v665 = vunpack.c.l.b16 %v530
    %v666 = vunpack.c.l.b16 %v531
    %v667 = vunpack.c.h.b16 %v531
    %v668 = vunpack.c.l.b16 %v532
    %v669 = vunpack.c.l.b16 %v533
    %v670 = vunpack.c.h.b16 %v533
    %v671 = vunpack.c.l.b16 %v534
    %v672 = vunpack.c.l.b16 %v535
    %v673 = vunpack.c.h.b16 %v535
    %v674 = vunpack.c.l.b16 %v536
    %v675 = vunpack.c.l.b16 %v537
    %v676 = vunpack.c.h.b16 %v537
    %v677 = vunpack.c.l.b16 %v538
    %v678 = vunpack.c.l.b16 %v539
    %v679 = vunpack.c.h.b16 %v539
    %v680 = vunpack.c.l.b16 %v540
    %v681 = vunpack.c.l.b16 %v541
    %v682 = vunpack.c.h.b16 %v541
    %v683 = vunpack.c.l.b16 %v542
    %v684 = vunpack.c.l.b16 %v543
    %v685 = vunpack.c.h.b16 %v543
    %v686 = vunpack.c.l.b16 %v544
    %v687 = vunpack.c.l.b16 %v545
    %v688 = vunpack.c.h.b16 %v545
    %v689 = vunpack.c.l.b16 %v546
    %v690 = vunpack.c.l.b16 %v547
    %v691 = vunpack.c.h.b16 %v547
    %v692 = vunpack.c.l.b16 %v548
    %v693 = vunpack.c.l.b16 %v549
    %v694 = vunpack.c.h.b16 %v549
    %v695 = vunpack.c.l.b16 %v550
    %v696 = vunpack.c.l.b16 %v551
    %v697 = vunpack.c.h.b16 %v551
    %v698 = vunpack.c.l.b16 %v552
    %v699 = vunpack.c.l.b16 %v553
    %v700 = vunpack.c.h.b16 %v553
    %v701 = vunpack.c.l.b16 %v554
    %v702 = vunpack.c.l.b16 %v555
    %v703 = vunpack.c.h.b16 %v555
    %v704 = vunpack.c.l.b16 %v556
    %v705 = vunpack.c.l.b16 %v557
    %v706 = vunpack.c.h.b16 %v557
    %v707 = vunpack.c.l.b16 %v558
    %v708 = vunpack.c.l.b16 %v559
    %v709 = vunpack.c.h.b16 %v559
    %v710 = vunpack.c.l.b16 %v560
    %v711 = vunpack.c.l.b16 %v561
    %v712 = vunpack.c.h.b16 %v561
    %v713 = vunpack.c.l.b16 %v562
    %v714 = vunpack.c.l.b16 %v563
    %v715 = vunpack.c.h.b16 %v563
    %v716 = vunpack.c.l.b16 %v564
    %v717 = vunpack.c.l.b16 %v565
    %v718 = vunpack.c.h.b16 %v565
    %v719 = vunpack.c.l.b16 %v566
    %v720 = vunpack.c.l.b16 %v567
    %v721 = vunpack.c.h.b16 %v567
    %v722 = vunpack.c.l.b16 %v568
    %v723 = vunpack.c.l.b16 %v569
    %v724 = vunpack.c.h.b16 %v569
    %v725 = vunpack.c.l.b16 %v570
    %v726 = vunpack.c.l.b16 %v571
    %v727 = vunpack.c.h.b16 %v571
    %v728 = vunpack.c.l.b16 %v572
    %v729 = vunpack.c.l.b16 %v573
    %v730 = vunpack.c.h.b16 %v573
    %v731 = vunpack.c.l.b16 %v574
    %v732 = vunpack.c.l.b16 %v575
    %v733 = vunpack.c.h.b16 %v575
    %v734 = vunpack.c.l.b16 %v576
    %v735 = vunpack.c.l.b16 %v577
    %v736 = vunpack.c.h.b16 %v577
    %v737 = vunpack.c.l.b16 %v578
    %v738 = vunpack.c.l.b16 %v579
    %v739 = vunpack.c.h.b16 %v579
    %v740 = vunpack.c.l.b16 %v580
    %v741 = vpack.c.b16 %v648, %v645
    %v742 = vpack.c.b16 %v649, %v646
    %v743 = vpack.c.b16 %v650, %v647
    %v744 = vpack.c.b16 %v654, %v651
    %v745 = vpack.c.b16 %v655, %v652
    %v746 = vpack.c.b16 %v656, %v653
    %v747 = vpack.c.b16 %v660, %v657
    %v748 = vpack.c.b16 %v661, %v658
    %v749 = vpack.c.b16 %v662, %v659
    %v750 = vpack.c.b16 %v666, %v663
    %v751 = vpack.c.b16 %v667, %v664
    %v752 = vpack.c.b16 %v668, %v665
    %v753 = vpack.c.b16 %v672, %v669
    %v754 = vpack.c.b16 %v673, %v670
    %v755 = vpack.c.b16 %v674, %v671
    %v756 = vpack.c.b16 %v678, %v675
    %v757 = vpack.c.b16 %v679, %v676
    %v758 = vpack.c.b16 %v680, %v677
    %v759 = vpack.c.b16 %v684, %v681
    %v760 = vpack.c.b16 %v685, %v682
    %v761 = vpack.c.b16 %v686, %v683
    %v762 = vpack.c.b16 %v690, %v687
    %v763 = vpack.c.b16 %v691, %v688
    %v764 = vpack.c.b16 %v692, %v689
    %v765 = vpack.c.b16 %v696, %v693
    %v766 = vpack.c.b16 %v697, %v694
    %v767 = vpack.c.b16 %v698, %v695
    %v768 = vpack.c.b16 %v702, %v699
    %v769 = vpack.c.b16 %v703, %v700
    %v770 = vpack.c.b16 %v704, %v701
    %v771 = vpack.c.b16 %v708, %v705
    %v772 = vpack.c.b16 %v709, %v706
    %v773 = vpack.c.b16 %v710, %v707
    %v774 = vpack.c.b16 %v714, %v711
    %v775 = vpack.c.b16 %v715, %v712
    %v776 = vpack.c.b16 %v716, %v713
    %v777 = vpack.c.b16 %v720, %v717
    %v778 = vpack.c.b16 %v721, %v718
    %v779 = vpack.c.b16 %v722, %v719
    %v780 = vpack.c.b16 %v726, %v723
    %v781 = vpack.c.b16 %v727, %v724
    %v782 = vpack.c.b16 %v728, %v725
    %v783 = vpack.c.b16 %v732, %v729
    %v784 = vpack.c.b16 %v733, %v730
    %v785 = vpack.c.b16 %v734, %v731
    %v786 = vpack.c.b16 %v738, %v735
    %v787 = vpack.c.b16 %v739, %v736
    %v788 = vpack.c.b16 %v740, %v737
    %837 = vmatprep.subr.bf16.mxu0 %v742
    %838 = vmatpush1.bf16.msra.mxu0 %v741
    %839 = vmatprep.subr.bf16.mxu0 %v745
    %840 = vmatpush1.bf16.msra.mxu0 %v744
    %841 = vmatprep.subr.bf16.mxu0 %v748
    %842 = vmatpush1.bf16.msra.mxu0 %v747
    %843 = vmatprep.subr.bf16.mxu0 %v751
    %844 = vmatpush1.bf16.msra.mxu0 %v750
    %845 = vmatprep.subr.bf16.mxu0 %v754
    %846 = vmatpush1.bf16.msra.mxu0 %v753
    %847 = vmatprep.subr.bf16.mxu0 %v757
    %848 = vmatpush1.bf16.msra.mxu0 %v756
    %849 = vmatprep.subr.bf16.mxu0 %v760
    %850 = vmatpush1.bf16.msra.mxu0 %v759
    %851 = vmatprep.subr.bf16.mxu0 %v763
    %852 = vmatpush1.bf16.msra.mxu0 %v762
    %853 = vmatprep.subr.bf16.mxu0 %v766
    %854 = vmatpush1.bf16.msra.mxu0 %v765
    %855 = vmatprep.subr.bf16.mxu0 %v769
    %856 = vmatpush1.bf16.msra.mxu0 %v768
    %857 = vmatprep.subr.bf16.mxu0 %v772
    %858 = vmatpush1.bf16.msra.mxu0 %v771
    %859 = vmatprep.subr.bf16.mxu0 %v775
    %860 = vmatpush1.bf16.msra.mxu0 %v774
    %861 = vmatprep.subr.bf16.mxu0 %v778
    %862 = vmatpush1.bf16.msra.mxu0 %v777
    %863 = vmatprep.subr.bf16.mxu0 %v781
    %864 = vmatpush1.bf16.msra.mxu0 %v780
    %865 = vmatprep.subr.bf16.mxu0 %v784
    %866 = vmatpush1.bf16.msra.mxu0 %v783
    %867 = vmatprep.subr.bf16.mxu0 %v787
    %868 = vmatpush1.bf16.msra.mxu0 %v786
    %869 = vmatprep.mubr.bf16.mxu0 %v516
    %870 = vmatmul.mubr.bf16.gmra.mrb[0].mxu0 %v515
    %v871 = vpop.f32.mrb[0].mxu0
    %v872 = vadd.f32 0.0, %v871
    %v873 = vpop.f32.mrb[0].mxu0
    %v874 = vadd.f32 0.0, %v873
    %v875 = vpop.f32.mrb[0].mxu0
    %v876 = vpop.f32.mrb[0].mxu0
    %877 = vdwg.mxu0
    %878 = vmatprep.subr.bf16.mxu0 0
    %879 = vmatpush1.bf16.msra.mxu0 %v743
    %880 = vmatprep.subr.bf16.mxu0 0
    %881 = vmatpush1.bf16.msra.mxu0 %v746
    %882 = vmatprep.subr.bf16.mxu0 0
    %883 = vmatpush1.bf16.msra.mxu0 %v749
    %884 = vmatprep.subr.bf16.mxu0 0
    %885 = vmatpush1.bf16.msra.mxu0 %v752
    %886 = vmatprep.subr.bf16.mxu0 0
    %887 = vmatpush1.bf16.msra.mxu0 %v755
    %888 = vmatprep.subr.bf16.mxu0 0
    %889 = vmatpush1.bf16.msra.mxu0 %v758
    %890 = vmatprep.subr.bf16.mxu0 0
    %891 = vmatpush1.bf16.msra.mxu0 %v761
    %892 = vmatprep.subr.bf16.mxu0 0
    %893 = vmatpush1.bf16.msra.mxu0 %v764
    %894 = vmatprep.subr.bf16.mxu0 0
    %895 = vmatpush1.bf16.msra.mxu0 %v767
    %896 = vmatprep.subr.bf16.mxu0 0
    %897 = vmatpush1.bf16.msra.mxu0 %v770
    %898 = vmatprep.subr.bf16.mxu0 0
    %899 = vmatpush1.bf16.msra.mxu0 %v773
    %900 = vmatprep.subr.bf16.mxu0 0
    %901 = vmatpush1.bf16.msra.mxu0 %v776
    %902 = vmatprep.subr.bf16.mxu0 0
    %903 = vmatpush1.bf16.msra.mxu0 %v779
    %904 = vmatprep.subr.bf16.mxu0 0
    %905 = vmatpush1.bf16.msra.mxu0 %v782
    %906 = vmatprep.subr.bf16.mxu0 0
    %907 = vmatpush1.bf16.msra.mxu0 %v785
    %908 = vmatprep.subr.bf16.mxu0 0
    %909 = vmatpush1.bf16.msra.mxu0 %v788
    %910 = vmatprep.mubr.bf16.mxu0 %v516
    %911 = vmatmul.mubr.bf16.gmra.mrb[0].mxu0 %v515
    %v912 = vpop.f32.mrb[0].mxu0
    %v913 = vadd.f32 0.0, %v912
    %v914 = vpop.f32.mrb[0].mxu0
    %v915 = vpop.f32.mrb[0].mxu0
    %v916 = vpop.f32.mrb[0].mxu0
    %917 = vdwg.mxu0
    %s918 = scalar_lea.vmem [#allocation10], 6
    %v919 = vld [vmem:[%s918] ss:$8 sm:$0x7]
    %s920 = scalar_lea.vmem [#allocation10], 7
    %v921 = vld [vmem:[%s920] ss:$8 sm:$0x7]
    %v922 = vrot.slane %v872, 4
    %v923 = vadd.f32 %v872, %v922
    %v924 = vrot.slane %v923, 2
    %v925 = vadd.f32 %v923, %v924
    %v926 = vrot.slane %v925, 1
    %v927 = vadd.f32 %v925, %v926
    %v928 = vrot.slane %v874, 4
    %v929 = vadd.f32 %v874, %v928
    %v930 = vrot.slane %v929, 2
    %v931 = vadd.f32 %v929, %v930
    %v932 = vrot.slane %v931, 1
    %v933 = vadd.f32 %v931, %v932
    %v934 = vrot.slane %v913, 4
    %v935 = vadd.f32 %v913, %v934
    %v936 = vrot.slane %v935, 2
    %v937 = vadd.f32 %v935, %v936
    %v938 = vrot.slane %v937, 1
    %v939 = vadd.f32 %v937, %v938
    %v940 = vmul.f32 %v927, %v189
    %v941 = vmul.f32 %v933, %v189
    %v942 = vmul.f32 %v939, %v189
    %v943 = vsub.f32 %v872, %v940
    %v944 = vsub.f32 %v874, %v941
    %v945 = vsub.f32 %v913, %v942
    %v946 = vmul.f32 %v943, %v943
    %v947 = vmul.f32 %v944, %v944
    %v948 = vmul.f32 %v945, %v945
    %v949 = vrot.slane %v946, 4
    %v950 = vadd.f32 %v946, %v949
    %v951 = vrot.slane %v950, 2
    %v952 = vadd.f32 %v950, %v951
    %v953 = vrot.slane %v952, 1
    %v954 = vadd.f32 %v952, %v953
    %v955 = vrot.slane %v947, 4
    %v956 = vadd.f32 %v947, %v955
    %v957 = vrot.slane %v956, 2
    %v958 = vadd.f32 %v956, %v957
    %v959 = vrot.slane %v958, 1
    %v960 = vadd.f32 %v958, %v959
    %v961 = vrot.slane %v948, 4
    %v962 = vadd.f32 %v948, %v961
    %v963 = vrot.slane %v962, 2
    %v964 = vadd.f32 %v962, %v963
    %v965 = vrot.slane %v964, 1
    %v966 = vadd.f32 %v964, %v965
    %v967 = vmul.f32 %v954, %v189
    %v968 = vmul.f32 %v960, %v189
    %v969 = vmul.f32 %v966, %v189
    %v970 = vadd.f32 %v967, 1e-05
    %v971 = vadd.f32 %v968, 1e-05
    %v972 = vadd.f32 %v969, 1e-05
    %v973 = vrsqrt.pop %v970
    %v974 = vrsqrt.pop %v971
    %v975 = vrsqrt.pop %v972
    %v976 = vmul.f32 %v943, %v973
    %v977 = vmul.f32 %v944, %v974
    %v978 = vmul.f32 %v945, %v975
    %v980 = vlaneseq
    %v981 = vshrl.u32 %v980, 7
    %v982 = vsub.s32 0, %v981
    %v983 = vrot.slane %v919, %v982
    %v984 = vlaneseq
    %v985 = vshrl.u32 %v984, 7
    %v986 = vsub.s32 1, %v985
    %v987 = vrot.slane %v919, %v986
    %v988 = vlaneseq
    %v989 = vshrl.u32 %v988, 7
    %v990 = vsub.s32 2, %v989
    %v991 = vrot.slane %v919, %v990
    %v995 = vmul.f32 %v976, %v983
    %v996 = vmul.f32 %v977, %v987
    %v997 = vmul.f32 %v978, %v991
    %v999 = vlaneseq
    %v1000 = vshrl.u32 %v999, 7
    %v1001 = vsub.s32 0, %v1000
    %v1002 = vrot.slane %v921, %v1001
    %v1003 = vlaneseq
    %v1004 = vshrl.u32 %v1003, 7
    %v1005 = vsub.s32 1, %v1004
    %v1006 = vrot.slane %v921, %v1005
    %v1007 = vlaneseq
    %v1008 = vshrl.u32 %v1007, 7
    %v1009 = vsub.s32 2, %v1008
    %v1010 = vrot.slane %v921, %v1009
    %v1014 = vadd.f32 %v995, %v1002
    %v1015 = vadd.f32 %v996, %v1006
    %v1016 = vadd.f32 %v997, %v1010
    %v1017 = vmax.f32 %v1014, 0.0
    %v1018 = vmax.f32 %v1015, 0.0
    %v1019 = vmax.f32 %v1016, 0.0
    %v1020 = vpack.c.bf16 %v1017, %v1017
    %v1021 = vpack.c.bf16 %v1018, %v1018
    %v1022 = vpack.c.bf16 %v1019, %v1019
    %v1026 = vunpack.c.l.b16 %v1020
    %v1027 = vunpack.c.l.b16 %v1021
    %v1028 = vunpack.c.l.b16 %v1022
    %v1029 = vpack.c.b16 %v1027, %v1026
    %v1030 = vpack.c.b16 %v1028, %v1028
    %1033 = vst [vmem:[%s6] sm:$0xff] %v1029
    %1034 = vst [vmem:[%s6 + $0x8] sm:$0xf] %v1030
    // Predicated region
    $region50: #{run.2} parent=1 // pred_check
      _
    $region51: #{run.2} parent=1 // pred_check_branch
      %1036 = sbr.rel (0) target = $region53
    $region52: #{run.2} parent=1 // pred_region
      _
    $region53: #{run.2} parent=1 // pred_fallthru
      _
    // Predicated region
    $region54: #{run.2} parent=1 // pred_check
      _
    $region55: #{run.2} parent=1 // pred_check_branch
      %1038 = sbr.rel (0) target = $region57
    $region56: #{run.2} parent=1 // pred_region
      _
    $region57: #{run.2} parent=1 // pred_fallthru
      _
    %1039 = vsyncpa [#allocation3], 1
    %1040 = vsyncpa [#allocation5], 1
    %1041 = vsyncpa [#allocation8], 1
    %1042 = vsyncpa [#allocation11], 1

// kernel: run.3
$region0: #{run.3}
  #allocation0 [shape = 'u32[]', space=smem, size = 0x4, offset = 0x4, fixed_abs, tag = 'smem constant byte address 0x4 - core index']
  #allocation1 [shape = 'u32[144,128]{1,0:T(1,128)}', space=vmem, size = 0x12000, scoped, tag = 'internal scratch']
  %s0 = inlined_call_operand.vmem [shape: bf16[8,384], index: 0, kind: input, shape index: {}]
  %s1 = inlined_call_operand.hbm [shape: bf16[384,3072], index: 1, kind: input, shape index: {}]
  %s2 = inlined_call_operand.hbm [shape: f32[1,3072], index: 2, kind: input, shape index: {}]
  %s3 = inlined_call_operand.vmem [shape: f32[8,3072], index: 3, kind: output, shape index: {}]
  %s4 = sld [smem:[#allocation0]]
  $region53: #{run.3} parent=0
    _
  %s6 = ssub.s32 1, %s4
  %s7 = scalar_select 0, %s6, %s4
  $region1: #{run.3} parent=0
    #allocation2 [shape = 'u8[2359296]{0}', space=vmem, size = 0x240000, scoped, tag = 'input window, operand 1']
    #allocation3 [shape = 's32[2]{0}', space=sflag, size = 0x8, scoped, tag = 'scoped memory for run.3']
    #allocation4 [shape = 'u8[12288]{0}', space=vmem, size = 0x3000, scoped, tag = 'input window, operand 2']
    #allocation5 [shape = 's32[2]{0}', space=sflag, size = 0x8, scoped, tag = 'scoped memory for run.3']
    %8 = vsyncpa [#allocation3], 0
    %s9 = scalar_lea.sflag [#allocation3], 1
    %10 = vsyncpa %s9, 0
    %11 = vsyncpa [#allocation5], 0
    %s12 = scalar_lea.sflag [#allocation5], 1
    %13 = vsyncpa %s12, 0
    loop: start=0, step=1, limit=4
    $region2: #{run.3} parent=1 // loop_pre_header
      _
    $region3: #{run.3} parent=1 // loop_header
      %s15 = sphi 0, %s19
      %p16 = scmp.ge.s32.totalorder %s15, 4
      %s23 = sphi 0, %s23
      %s25 = sphi 0, %s23
      %s26 = sphi 0, %s25
      %s40 = sphi 0, %s26
      %s46 = sphi 0, %s48
      %s49 = sphi 0, %s46
      %s50 = sphi 0, %s49
      %s66 = sphi 0, %s50
      %s72 = sphi 0, %s74
      %s75 = sphi 0, %s72
      %s76 = sphi 0, %s75
      %s92 = sphi 0, %s76
      %s98 = sphi 0, %s100
      %s101 = sphi 0, %s98
      %s102 = sphi 0, %s101
      %s118 = sphi 0, %s102
    $region4: #{run.3} parent=1 // loop_header_branch
      %18 = sbr.rel (%p16) target = $region8
    $region5: #{run.3} parent=1 // loop_body
      %s20 = ssub.s32 %s15, 1
      %s21 = ssub.s32 %s15, 2
      %s22 = sadd.s32 %s15, 1
      %s24 = sadd.s32 %s23, 1
      %p27 = scmp.eq.s32.totalorder %s15, 1
      %p28 = scmp.ne.s32.totalorder %s23, %s25
      %p29 = scmp.eq.s32.totalorder %s15, 0
      %p30 = por %p28, %p29
      %p31 = scmp.ne.s32.totalorder %s23, %s25
      %p32 = scmp.eq.s32.totalorder %s20, 1
      %p33 = por %p31, %p32
      %p34 = scmp.ne.s32.totalorder %s25, %s26
      %p35 = scmp.eq.s32.totalorder %s20, 0
      %p36 = por %p34, %p35
      %p37 = scmp.ne.s32.totalorder %s25, %s26
      %p38 = scmp.eq.s32.totalorder %s21, 1
      %p39 = por %p37, %p38
      %p41 = scmp.ne.s32.totalorder %s26, %s40
      %p42 = scmp.eq.s32.totalorder %s21, 0
      %p43 = por %p41, %p42
      %s44 = ssub.s32 %s15, %s22
      %p45 = scmp.eq.s32.totalorder %s44, 0
      %s47 = sadd.s32 %s46, 1
      %s48 = scalar_select %p45, %s46, %s47
      %p51 = pneg %p45
      %p52 = scmp.eq.s32.totalorder %s15, 1
      %p53 = por %p51, %p52
      %p54 = scmp.ne.s32.totalorder %s46, %s49
      %p55 = scmp.eq.s32.totalorder %s15, 0
      %p56 = por %p54, %p55
      %p57 = scmp.ne.s32.totalorder %s46, %s49
      %p58 = scmp.eq.s32.totalorder %s20, 1
      %p59 = por %p57, %p58
      %p60 = scmp.ne.s32.totalorder %s49, %s50
      %p61 = scmp.eq.s32.totalorder %s20, 0
      %p62 = por %p60, %p61
      %p63 = scmp.ne.s32.totalorder %s49, %s50
      %p64 = scmp.eq.s32.totalorder %s21, 1
      %p65 = por %p63, %p64
      %p67 = scmp.ne.s32.totalorder %s50, %s66
      %p68 = scmp.eq.s32.totalorder %s21, 0
      %p69 = por %p67, %p68
      %s70 = ssub.s32 %s15, %s22
      %p71 = scmp.eq.s32.totalorder %s70, 0
      %s73 = sadd.s32 %s72, 1
      %s74 = scalar_select %p71, %s72, %s73
      %p77 = pneg %p71
      %p78 = scmp.eq.s32.totalorder %s15, 1
      %p79 = por %p77, %p78
      %p80 = scmp.ne.s32.totalorder %s72, %s75
      %p81 = scmp.eq.s32.totalorder %s15, 0
      %p82 = por %p80, %p81
      %p83 = scmp.ne.s32.totalorder %s72, %s75
      %p84 = scmp.eq.s32.totalorder %s20, 1
      %p85 = por %p83, %p84
      %p86 = scmp.ne.s32.totalorder %s75, %s76
      %p87 = scmp.eq.s32.totalorder %s20, 0
      %p88 = por %p86, %p87
      %p89 = scmp.ne.s32.totalorder %s75, %s76
      %p90 = scmp.eq.s32.totalorder %s21, 1
      %p91 = por %p89, %p90
      %p93 = scmp.ne.s32.totalorder %s76, %s92
      %p94 = scmp.eq.s32.totalorder %s21, 0
      %p95 = por %p93, %p94
      %s96 = ssub.s32 %s15, %s22
      %p97 = scmp.eq.s32.totalorder %s96, 0
      %s99 = sadd.s32 %s98, 1
      %s100 = scalar_select %p97, %s98, %s99
      %p103 = pneg %p97
      %p104 = scmp.eq.s32.totalorder %s15, 1
      %p105 = por %p103, %p104
      %p106 = scmp.ne.s32.totalorder %s98, %s101
      %p107 = scmp.eq.s32.totalorder %s15, 0
      %p108 = por %p106, %p107
      %p109 = scmp.ne.s32.totalorder %s98, %s101
      %p110 = scmp.eq.s32.totalorder %s20, 1
      %p111 = por %p109, %p110
      %p112 = scmp.ne.s32.totalorder %s101, %s102
      %p113 = scmp.eq.s32.totalorder %s20, 0
      %p114 = por %p112, %p113
      %p115 = scmp.ne.s32.totalorder %s101, %s102
      %p116 = scmp.eq.s32.totalorder %s21, 1
      %p117 = por %p115, %p116
      %p119 = scmp.ne.s32.totalorder %s102, %s118
      %p120 = scmp.eq.s32.totalorder %s21, 0
      %p121 = por %p119, %p120
      %p122 = scmp.le.s32.totalorder 1, %s15
      %p123 = scmp.lt.s32.totalorder %s15, 3
      %p124 = pnand %p122, %p123
      %p125 = pneg %p124
      // Predicated region
      $region9: #{run.3} parent=5 // pred_check
        _
      $region10: #{run.3} parent=5 // pred_check_branch
        %127 = sbr.rel (%p124) target = $region12
      $region11: #{run.3} parent=5 // pred_region
        %s128 = ssub.s32 %s15, 1
        // Predicated region
        $region13: #{run.3} parent=11 // pred_check
          %p129 = pneg %p36
        $region14: #{run.3} parent=11 // pred_check_branch
          %131 = sbr.rel (%p129) target = $region16
        $region15: #{run.3} parent=11 // pred_region
          _
        $region16: #{run.3} parent=11 // pred_fallthru
          _
      $region12: #{run.3} parent=5 // pred_fallthru
        _
      %p132 = scmp.lt.s32.totalorder %s15, 2
      // Predicated region
      $region17: #{run.3} parent=5 // pred_check
        %p133 = pneg %p132
      $region18: #{run.3} parent=5 // pred_check_branch
        %135 = sbr.rel (%p133) target = $region20
      $region19: #{run.3} parent=5 // pred_region
        // Predicated region
        $region21: #{run.3} parent=19 // pred_check
          %p136 = pneg %p56
        $region22: #{run.3} parent=19 // pred_check_branch
          %138 = sbr.rel (%p136) target = $region24
        $region23: #{run.3} parent=19 // pred_region
          %s139 = sand.u32 %s46, 1
          %s140 = scalar_lea.sflag [#allocation3], %s139
          %s141 = sand.u32 %s46, 1
          %s142 = smul.addr %s141, 2304
          %s143 = scalar_lea.vmem [#allocation2], %s142
          %s144 = smul.u32 12, %s15
          %s146 = ssub.s32 36864, 36864
          %147 = vsyncadd %s140, %s146
          %s148 = smul.addr %s144, 64
          %s149 = scalar_lea.hbm %s1, %s148
          %s150 = sshll.u32 %s143, 4
          %s151 = int_to_ptr.vmem [resolvable:$true] %s150
          %156 = dma.hbm_to_vmem [thread:$0]  %s149, 36864, %s151, %s140, 1536, 768, 48
        $region24: #{run.3} parent=19 // pred_fallthru
          _
        // Predicated region
        $region25: #{run.3} parent=19 // pred_check
          %p157 = pneg %p82
        $region26: #{run.3} parent=19 // pred_check_branch
          %159 = sbr.rel (%p157) target = $region28
        $region27: #{run.3} parent=19 // pred_region
          %s160 = sand.u32 %s72, 1
          %s161 = scalar_lea.sflag [#allocation5], %s160
          %s162 = sand.u32 %s72, 1
          %s163 = smul.addr %s162, 12
          %s164 = scalar_lea.vmem [#allocation4], %s163
          %s165 = smul.u32 12, %s15
          %s167 = ssub.s32 192, 192
          %168 = vsyncadd %s161, %s167
          %s169 = smul.addr %s165, 16
          %s170 = scalar_lea.hbm %s2, %s169
          %s172 = sshll.u32 %s164, 4
          %s173 = int_to_ptr.vmem [resolvable:$true] %s172
          %175 = dma.hbm_to_vmem [thread:$0]  %s170, 192, %s173, %s161
        $region28: #{run.3} parent=19 // pred_fallthru
          _
      $region20: #{run.3} parent=5 // pred_fallthru
        _
      %p176 = scmp.le.s32.totalorder 1, %s15
      %p177 = scmp.lt.s32.totalorder %s15, 3
      %p178 = pnand %p176, %p177
      %p179 = pneg %p178
      // Predicated region
      $region29: #{run.3} parent=5 // pred_check
        _
      $region30: #{run.3} parent=5 // pred_check_branch
        %181 = sbr.rel (%p178) target = $region32
      $region31: #{run.3} parent=5 // pred_region
        %s182 = ssub.s32 %s15, 1
        %s183 = sand.u32 %s49, 1
        %s184 = scalar_lea.sflag [#allocation3], %s183
        %s185 = sand.u32 %s49, 1
        %s186 = smul.addr %s185, 2304
        %s187 = scalar_lea.vmem [#allocation2], %s186
        // Predicated region
        $region33: #{run.3} parent=31 // pred_check
          %p188 = pneg %p62
        $region34: #{run.3} parent=31 // pred_check_branch
          %190 = sbr.rel (%p188) target = $region36
        $region35: #{run.3} parent=31 // pred_region
          %191 = dma.done %s184, 36864
        $region36: #{run.3} parent=31 // pred_fallthru
          _
        %s192 = sand.u32 %s75, 1
        %s193 = scalar_lea.sflag [#allocation5], %s192
        %s194 = sand.u32 %s75, 1
        %s195 = smul.addr %s194, 12
        %s196 = scalar_lea.vmem [#allocation4], %s195
        // Predicated region
        $region37: #{run.3} parent=31 // pred_check
          %p197 = pneg %p88
        $region38: #{run.3} parent=31 // pred_check_branch
          %199 = sbr.rel (%p197) target = $region40
        $region39: #{run.3} parent=31 // pred_region
          %200 = dma.done %s193, 192
        $region40: #{run.3} parent=31 // pred_fallthru
          _
        %p201 = pneg %p36
        %p202 = pneg %p33
        %s203 = sand.u32 %s49, 1
        %s204 = scalar_lea.sflag [#allocation3], %s203
        %s205 = sand.u32 %s49, 1
        %s206 = smul.addr %s205, 2304
        %s207 = scalar_lea.vmem [#allocation2], %s206
        %p208 = pneg %p62
        %p209 = pneg %p59
        %s210 = sand.u32 %s75, 1
        %s211 = scalar_lea.sflag [#allocation5], %s210
        %s212 = sand.u32 %s75, 1
        %s213 = smul.addr %s212, 12
        %s214 = scalar_lea.vmem [#allocation4], %s213
        %p215 = pneg %p88
        %p216 = pneg %p85
        %p217 = pneg %p114
        %p218 = pneg %p111
        %s219 = smul.u32 12, %s20
        %p220 = scmp.lt.s32.totalorder %s219, 23
        %s221 = scalar_select %p220, %s219, 23
        %s222 = smul.addr %s221, 8
        %s223 = scalar_lea.vmem %s3, %s222
        %s224 = smul.u32 12, %s20
        %s225 = smul.u32 12, %s20
        %s226 = smul.u32 12, %s20
        %p227 = scmp.lt.s32.totalorder %s226, 23
        %s228 = scalar_select %p227, %s226, 23
        %s229 = smul.addr %s228, 8
        %s230 = scalar_lea.vmem %s3, %s229
        %s231 = smul.u32 12, %s20
        %v233 = vld [vmem:[%s0] sm:$0xff]
        %v234 = vld [vmem:[%s0 + $0x8] sm:$0xf]
        %v235 = vld [vmem:[%s187] sm:$0xff]
        %v236 = vld [vmem:[%s187 + $0x8] sm:$0xff]
        %v237 = vld [vmem:[%s187 + $0x10] sm:$0xff]
        %v238 = vld [vmem:[%s187 + $0x18] sm:$0xff]
        %v239 = vld [vmem:[%s187 + $0x20] sm:$0xff]
        %v240 = vld [vmem:[%s187 + $0x28] sm:$0xff]
        %v241 = vld [vmem:[%s187 + $0x30] sm:$0xff]
        %v242 = vld [vmem:[%s187 + $0x38] sm:$0xff]
        %v243 = vld [vmem:[%s187 + $0x40] sm:$0xff]
        %v244 = vld [vmem:[%s187 + $0x48] sm:$0xff]
        %v245 = vld [vmem:[%s187 + $0x50] sm:$0xff]
        %v246 = vld [vmem:[%s187 + $0x58] sm:$0xff]
        %v247 = vld [vmem:[%s187 + $0x60] sm:$0xff]
        %v248 = vld [vmem:[%s187 + $0x68] sm:$0xff]
        %v249 = vld [vmem:[%s187 + $0x70] sm:$0xff]
        %v250 = vld [vmem:[%s187 + $0x78] sm:$0xff]
        %v251 = vld [vmem:[%s187 + $0x80] sm:$0xff]
        %v252 = vld [vmem:[%s187 + $0x88] sm:$0xff]
        %v253 = vld [vmem:[%s187 + $0x90] sm:$0xff]
        %v254 = vld [vmem:[%s187 + $0x98] sm:$0xff]
        %v255 = vld [vmem:[%s187 + $0xa0] sm:$0xff]
        %v256 = vld [vmem:[%s187 + $0xa8] sm:$0xff]
        %v257 = vld [vmem:[%s187 + $0xb0] sm:$0xff]
        %v258 = vld [vmem:[%s187 + $0xb8] sm:$0xff]
        %v259 = vld [vmem:[%s187 + $0xc0] sm:$0xff]
        %v260 = vld [vmem:[%s187 + $0xc8] sm:$0xff]
        %v261 = vld [vmem:[%s187 + $0xd0] sm:$0xff]
        %v262 = vld [vmem:[%s187 + $0xd8] sm:$0xff]
        %v263 = vld [vmem:[%s187 + $0xe0] sm:$0xff]
        %v264 = vld [vmem:[%s187 + $0xe8] sm:$0xff]
        %v265 = vld [vmem:[%s187 + $0xf0] sm:$0xff]
        %v266 = vld [vmem:[%s187 + $0xf8] sm:$0xff]
        %v267 = vld [vmem:[%s187 + $0x100] sm:$0xff]
        %v268 = vld [vmem:[%s187 + $0x108] sm:$0xff]
        %v269 = vld [vmem:[%s187 + $0x110] sm:$0xff]
        %v270 = vld [vmem:[%s187 + $0x118] sm:$0xff]
        %v271 = vld [vmem:[%s187 + $0x120] sm:$0xff]
        %v272 = vld [vmem:[%s187 + $0x128] sm:$0xff]
        %v273 = vld [vmem:[%s187 + $0x130] sm:$0xff]
        %v274 = vld [vmem:[%s187 + $0x138] sm:$0xff]
        %v275 = vld [vmem:[%s187 + $0x140] sm:$0xff]
        %v276 = vld [vmem:[%s187 + $0x148] sm:$0xff]
        %v277 = vld [vmem:[%s187 + $0x150] sm:$0xff]
        %v278 = vld [vmem:[%s187 + $0x158] sm:$0xff]
        %v279 = vld [vmem:[%s187 + $0x160] sm:$0xff]
        %v280 = vld [vmem:[%s187 + $0x168] sm:$0xff]
        %v281 = vld [vmem:[%s187 + $0x170] sm:$0xff]
        %v282 = vld [vmem:[%s187 + $0x178] sm:$0xff]
        %v283 = vld [vmem:[%s187 + $0x180] sm:$0xff]
        %v284 = vld [vmem:[%s187 + $0x188] sm:$0xff]
        %v285 = vld [vmem:[%s187 + $0x190] sm:$0xff]
        %v286 = vld [vmem:[%s187 + $0x198] sm:$0xff]
        %v287 = vld [vmem:[%s187 + $0x1a0] sm:$0xff]
        %v288 = vld [vmem:[%s187 + $0x1a8] sm:$0xff]
        %v289 = vld [vmem:[%s187 + $0x1b0] sm:$0xff]
        %v290 = vld [vmem:[%s187 + $0x1b8] sm:$0xff]
        %v291 = vld [vmem:[%s187 + $0x1c0] sm:$0xff]
        %v292 = vld [vmem:[%s187 + $0x1c8] sm:$0xff]
        %v293 = vld [vmem:[%s187 + $0x1d0] sm:$0xff]
        %v294 = vld [vmem:[%s187 + $0x1d8] sm:$0xff]
        %v295 = vld [vmem:[%s187 + $0x1e0] sm:$0xff]
        %v296 = vld [vmem:[%s187 + $0x1e8] sm:$0xff]
        %v297 = vld [vmem:[%s187 + $0x1f0] sm:$0xff]
        %v298 = vld [vmem:[%s187 + $0x1f8] sm:$0xff]
        %v299 = vld [vmem:[%s187 + $0x200] sm:$0xff]
        %v300 = vld [vmem:[%s187 + $0x208] sm:$0xff]
        %v301 = vld [vmem:[%s187 + $0x210] sm:$0xff]
        %v302 = vld [vmem:[%s187 + $0x218] sm:$0xff]
        %v303 = vld [vmem:[%s187 + $0x220] sm:$0xff]
        %v304 = vld [vmem:[%s187 + $0x228] sm:$0xff]
        %v305 = vld [vmem:[%s187 + $0x230] sm:$0xff]
        %v306 = vld [vmem:[%s187 + $0x238] sm:$0xff]
        %v307 = vld [vmem:[%s187 + $0x240] sm:$0xff]
        %v308 = vld [vmem:[%s187 + $0x248] sm:$0xff]
        %v309 = vld [vmem:[%s187 + $0x250] sm:$0xff]
        %v310 = vld [vmem:[%s187 + $0x258] sm:$0xff]
        %v311 = vld [vmem:[%s187 + $0x260] sm:$0xff]
        %v312 = vld [vmem:[%s187 + $0x268] sm:$0xff]
        %v313 = vld [vmem:[%s187 + $0x270] sm:$0xff]
        %v314 = vld [vmem:[%s187 + $0x278] sm:$0xff]
        %v315 = vld [vmem:[%s187 + $0x280] sm:$0xff]
        %v316 = vld [vmem:[%s187 + $0x288] sm:$0xff]
        %v317 = vld [vmem:[%s187 + $0x290] sm:$0xff]
        %v318 = vld [vmem:[%s187 + $0x298] sm:$0xff]
        %v319 = vld [vmem:[%s187 + $0x2a0] sm:$0xff]
        %v320 = vld [vmem:[%s187 + $0x2a8] sm:$0xff]
        %v321 = vld [vmem:[%s187 + $0x2b0] sm:$0xff]
        %v322 = vld [vmem:[%s187 + $0x2b8] sm:$0xff]
        %v323 = vld [vmem:[%s187 + $0x2c0] sm:$0xff]
        %v324 = vld [vmem:[%s187 + $0x2c8] sm:$0xff]
        %v325 = vld [vmem:[%s187 + $0x2d0] sm:$0xff]
        %v326 = vld [vmem:[%s187 + $0x2d8] sm:$0xff]
        %v327 = vld [vmem:[%s187 + $0x2e0] sm:$0xff]
        %v328 = vld [vmem:[%s187 + $0x2e8] sm:$0xff]
        %v329 = vld [vmem:[%s187 + $0x2f0] sm:$0xff]
        %v330 = vld [vmem:[%s187 + $0x2f8] sm:$0xff]
        %v331 = vld [vmem:[%s187 + $0x300] sm:$0xff]
        %v332 = vld [vmem:[%s187 + $0x308] sm:$0xff]
        %v333 = vld [vmem:[%s187 + $0x310] sm:$0xff]
        %v334 = vld [vmem:[%s187 + $0x318] sm:$0xff]
        %v335 = vld [vmem:[%s187 + $0x320] sm:$0xff]
        %v336 = vld [vmem:[%s187 + $0x328] sm:$0xff]
        %v337 = vld [vmem:[%s187 + $0x330] sm:$0xff]
        %v338 = vld [vmem:[%s187 + $0x338] sm:$0xff]
        %v339 = vld [vmem:[%s187 + $0x340] sm:$0xff]
        %v340 = vld [vmem:[%s187 + $0x348] sm:$0xff]
        %v341 = vld [vmem:[%s187 + $0x350] sm:$0xff]
        %v342 = vld [vmem:[%s187 + $0x358] sm:$0xff]
        %v343 = vld [vmem:[%s187 + $0x360] sm:$0xff]
        %v344 = vld [vmem:[%s187 + $0x368] sm:$0xff]
        %v345 = vld [vmem:[%s187 + $0x370] sm:$0xff]
        %v346 = vld [vmem:[%s187 + $0x378] sm:$0xff]
        %v347 = vld [vmem:[%s187 + $0x380] sm:$0xff]
        %v348 = vld [vmem:[%s187 + $0x388] sm:$0xff]
        %v349 = vld [vmem:[%s187 + $0x390] sm:$0xff]
        %v350 = vld [vmem:[%s187 + $0x398] sm:$0xff]
        %v351 = vld [vmem:[%s187 + $0x3a0] sm:$0xff]
        %v352 = vld [vmem:[%s187 + $0x3a8] sm:$0xff]
        %v353 = vld [vmem:[%s187 + $0x3b0] sm:$0xff]
        %v354 = vld [vmem:[%s187 + $0x3b8] sm:$0xff]
        %v355 = vld [vmem:[%s187 + $0x3c0] sm:$0xff]
        %v356 = vld [vmem:[%s187 + $0x3c8] sm:$0xff]
        %v357 = vld [vmem:[%s187 + $0x3d0] sm:$0xff]
        %v358 = vld [vmem:[%s187 + $0x3d8] sm:$0xff]
        %v359 = vld [vmem:[%s187 + $0x3e0] sm:$0xff]
        %v360 = vld [vmem:[%s187 + $0x3e8] sm:$0xff]
        %v361 = vld [vmem:[%s187 + $0x3f0] sm:$0xff]
        %v362 = vld [vmem:[%s187 + $0x3f8] sm:$0xff]
        %v363 = vld [vmem:[%s187 + $0x400] sm:$0xff]
        %v364 = vld [vmem:[%s187 + $0x408] sm:$0xff]
        %v365 = vld [vmem:[%s187 + $0x410] sm:$0xff]
        %v366 = vld [vmem:[%s187 + $0x418] sm:$0xff]
        %v367 = vld [vmem:[%s187 + $0x420] sm:$0xff]
        %v368 = vld [vmem:[%s187 + $0x428] sm:$0xff]
        %v369 = vld [vmem:[%s187 + $0x430] sm:$0xff]
        %v370 = vld [vmem:[%s187 + $0x438] sm:$0xff]
        %v371 = vld [vmem:[%s187 + $0x440] sm:$0xff]
        %v372 = vld [vmem:[%s187 + $0x448] sm:$0xff]
        %v373 = vld [vmem:[%s187 + $0x450] sm:$0xff]
        %v374 = vld [vmem:[%s187 + $0x458] sm:$0xff]
        %v375 = vld [vmem:[%s187 + $0x460] sm:$0xff]
        %v376 = vld [vmem:[%s187 + $0x468] sm:$0xff]
        %v377 = vld [vmem:[%s187 + $0x470] sm:$0xff]
        %v378 = vld [vmem:[%s187 + $0x478] sm:$0xff]
        %v379 = vld [vmem:[%s187 + $0x480] sm:$0xff]
        %v380 = vld [vmem:[%s187 + $0x488] sm:$0xff]
        %v381 = vld [vmem:[%s187 + $0x490] sm:$0xff]
        %v382 = vld [vmem:[%s187 + $0x498] sm:$0xff]
        %v383 = vld [vmem:[%s187 + $0x4a0] sm:$0xff]
        %v384 = vld [vmem:[%s187 + $0x4a8] sm:$0xff]
        %v385 = vld [vmem:[%s187 + $0x4b0] sm:$0xff]
        %v386 = vld [vmem:[%s187 + $0x4b8] sm:$0xff]
        %v387 = vld [vmem:[%s187 + $0x4c0] sm:$0xff]
        %v388 = vld [vmem:[%s187 + $0x4c8] sm:$0xff]
        %v389 = vld [vmem:[%s187 + $0x4d0] sm:$0xff]
        %v390 = vld [vmem:[%s187 + $0x4d8] sm:$0xff]
        %v391 = vld [vmem:[%s187 + $0x4e0] sm:$0xff]
        %v392 = vld [vmem:[%s187 + $0x4e8] sm:$0xff]
        %v393 = vld [vmem:[%s187 + $0x4f0] sm:$0xff]
        %v394 = vld [vmem:[%s187 + $0x4f8] sm:$0xff]
        %v395 = vld [vmem:[%s187 + $0x500] sm:$0xff]
        %v396 = vld [vmem:[%s187 + $0x508] sm:$0xff]
        %v397 = vld [vmem:[%s187 + $0x510] sm:$0xff]
        %v398 = vld [vmem:[%s187 + $0x518] sm:$0xff]
        %v399 = vld [vmem:[%s187 + $0x520] sm:$0xff]
        %v400 = vld [vmem:[%s187 + $0x528] sm:$0xff]
        %v401 = vld [vmem:[%s187 + $0x530] sm:$0xff]
        %v402 = vld [vmem:[%s187 + $0x538] sm:$0xff]
        %v403 = vld [vmem:[%s187 + $0x540] sm:$0xff]
        %v404 = vld [vmem:[%s187 + $0x548] sm:$0xff]
        %v405 = vld [vmem:[%s187 + $0x550] sm:$0xff]
        %v406 = vld [vmem:[%s187 + $0x558] sm:$0xff]
        %v407 = vld [vmem:[%s187 + $0x560] sm:$0xff]
        %v408 = vld [vmem:[%s187 + $0x568] sm:$0xff]
        %v409 = vld [vmem:[%s187 + $0x570] sm:$0xff]
        %v410 = vld [vmem:[%s187 + $0x578] sm:$0xff]
        %v411 = vld [vmem:[%s187 + $0x580] sm:$0xff]
        %v412 = vld [vmem:[%s187 + $0x588] sm:$0xff]
        %v413 = vld [vmem:[%s187 + $0x590] sm:$0xff]
        %v414 = vld [vmem:[%s187 + $0x598] sm:$0xff]
        %v415 = vld [vmem:[%s187 + $0x5a0] sm:$0xff]
        %v416 = vld [vmem:[%s187 + $0x5a8] sm:$0xff]
        %v417 = vld [vmem:[%s187 + $0x5b0] sm:$0xff]
        %v418 = vld [vmem:[%s187 + $0x5b8] sm:$0xff]
        %v419 = vld [vmem:[%s187 + $0x5c0] sm:$0xff]
        %v420 = vld [vmem:[%s187 + $0x5c8] sm:$0xff]
        %v421 = vld [vmem:[%s187 + $0x5d0] sm:$0xff]
        %v422 = vld [vmem:[%s187 + $0x5d8] sm:$0xff]
        %v423 = vld [vmem:[%s187 + $0x5e0] sm:$0xff]
        %v424 = vld [vmem:[%s187 + $0x5e8] sm:$0xff]
        %v425 = vld [vmem:[%s187 + $0x5f0] sm:$0xff]
        %v426 = vld [vmem:[%s187 + $0x5f8] sm:$0xff]
        %v427 = vld [vmem:[%s187 + $0x600] sm:$0xff]
        %v428 = vld [vmem:[%s187 + $0x608] sm:$0xff]
        %v429 = vld [vmem:[%s187 + $0x610] sm:$0xff]
        %v430 = vld [vmem:[%s187 + $0x618] sm:$0xff]
        %v431 = vld [vmem:[%s187 + $0x620] sm:$0xff]
        %v432 = vld [vmem:[%s187 + $0x628] sm:$0xff]
        %v433 = vld [vmem:[%s187 + $0x630] sm:$0xff]
        %v434 = vld [vmem:[%s187 + $0x638] sm:$0xff]
        %v435 = vld [vmem:[%s187 + $0x640] sm:$0xff]
        %v436 = vld [vmem:[%s187 + $0x648] sm:$0xff]
        %v437 = vld [vmem:[%s187 + $0x650] sm:$0xff]
        %v438 = vld [vmem:[%s187 + $0x658] sm:$0xff]
        %v439 = vld [vmem:[%s187 + $0x660] sm:$0xff]
        %v440 = vld [vmem:[%s187 + $0x668] sm:$0xff]
        %v441 = vld [vmem:[%s187 + $0x670] sm:$0xff]
        %v442 = vld [vmem:[%s187 + $0x678] sm:$0xff]
        %v443 = vld [vmem:[%s187 + $0x680] sm:$0xff]
        %v444 = vld [vmem:[%s187 + $0x688] sm:$0xff]
        %v445 = vld [vmem:[%s187 + $0x690] sm:$0xff]
        %v446 = vld [vmem:[%s187 + $0x698] sm:$0xff]
        %v447 = vld [vmem:[%s187 + $0x6a0] sm:$0xff]
        %v448 = vld [vmem:[%s187 + $0x6a8] sm:$0xff]
        %v449 = vld [vmem:[%s187 + $0x6b0] sm:$0xff]
        %v450 = vld [vmem:[%s187 + $0x6b8] sm:$0xff]
        %v451 = vld [vmem:[%s187 + $0x6c0] sm:$0xff]
        %v452 = vld [vmem:[%s187 + $0x6c8] sm:$0xff]
        %v453 = vld [vmem:[%s187 + $0x6d0] sm:$0xff]
        %v454 = vld [vmem:[%s187 + $0x6d8] sm:$0xff]
        %v455 = vld [vmem:[%s187 + $0x6e0] sm:$0xff]
        %v456 = vld [vmem:[%s187 + $0x6e8] sm:$0xff]
        %v457 = vld [vmem:[%s187 + $0x6f0] sm:$0xff]
        %v458 = vld [vmem:[%s187 + $0x6f8] sm:$0xff]
        %v459 = vld [vmem:[%s187 + $0x700] sm:$0xff]
        %v460 = vld [vmem:[%s187 + $0x708] sm:$0xff]
        %v461 = vld [vmem:[%s187 + $0x710] sm:$0xff]
        %v462 = vld [vmem:[%s187 + $0x718] sm:$0xff]
        %v463 = vld [vmem:[%s187 + $0x720] sm:$0xff]
        %v464 = vld [vmem:[%s187 + $0x728] sm:$0xff]
        %v465 = vld [vmem:[%s187 + $0x730] sm:$0xff]
        %v466 = vld [vmem:[%s187 + $0x738] sm:$0xff]
        %v467 = vld [vmem:[%s187 + $0x740] sm:$0xff]
        %v468 = vld [vmem:[%s187 + $0x748] sm:$0xff]
        %v469 = vld [vmem:[%s187 + $0x750] sm:$0xff]
        %v470 = vld [vmem:[%s187 + $0x758] sm:$0xff]
        %v471 = vld [vmem:[%s187 + $0x760] sm:$0xff]
        %v472 = vld [vmem:[%s187 + $0x768] sm:$0xff]
        %v473 = vld [vmem:[%s187 + $0x770] sm:$0xff]
        %v474 = vld [vmem:[%s187 + $0x778] sm:$0xff]
        %v475 = vld [vmem:[%s187 + $0x780] sm:$0xff]
        %v476 = vld [vmem:[%s187 + $0x788] sm:$0xff]
        %v477 = vld [vmem:[%s187 + $0x790] sm:$0xff]
        %v478 = vld [vmem:[%s187 + $0x798] sm:$0xff]
        %v479 = vld [vmem:[%s187 + $0x7a0] sm:$0xff]
        %v480 = vld [vmem:[%s187 + $0x7a8] sm:$0xff]
        %v481 = vld [vmem:[%s187 + $0x7b0] sm:$0xff]
        %v482 = vld [vmem:[%s187 + $0x7b8] sm:$0xff]
        %v483 = vld [vmem:[%s187 + $0x7c0] sm:$0xff]
        %v484 = vld [vmem:[%s187 + $0x7c8] sm:$0xff]
        %v485 = vld [vmem:[%s187 + $0x7d0] sm:$0xff]
        %v486 = vld [vmem:[%s187 + $0x7d8] sm:$0xff]
        %v487 = vld [vmem:[%s187 + $0x7e0] sm:$0xff]
        %v488 = vld [vmem:[%s187 + $0x7e8] sm:$0xff]
        %v489 = vld [vmem:[%s187 + $0x7f0] sm:$0xff]
        %v490 = vld [vmem:[%s187 + $0x7f8] sm:$0xff]
        %v491 = vld [vmem:[%s187 + $0x800] sm:$0xff]
        %v492 = vld [vmem:[%s187 + $0x808] sm:$0xff]
        %v493 = vld [vmem:[%s187 + $0x810] sm:$0xff]
        %v494 = vld [vmem:[%s187 + $0x818] sm:$0xff]
        %v495 = vld [vmem:[%s187 + $0x820] sm:$0xff]
        %v496 = vld [vmem:[%s187 + $0x828] sm:$0xff]
        %v497 = vld [vmem:[%s187 + $0x830] sm:$0xff]
        %v498 = vld [vmem:[%s187 + $0x838] sm:$0xff]
        %v499 = vld [vmem:[%s187 + $0x840] sm:$0xff]
        %v500 = vld [vmem:[%s187 + $0x848] sm:$0xff]
        %v501 = vld [vmem:[%s187 + $0x850] sm:$0xff]
        %v502 = vld [vmem:[%s187 + $0x858] sm:$0xff]
        %v503 = vld [vmem:[%s187 + $0x860] sm:$0xff]
        %v504 = vld [vmem:[%s187 + $0x868] sm:$0xff]
        %v505 = vld [vmem:[%s187 + $0x870] sm:$0xff]
        %v506 = vld [vmem:[%s187 + $0x878] sm:$0xff]
        %v507 = vld [vmem:[%s187 + $0x880] sm:$0xff]
        %v508 = vld [vmem:[%s187 + $0x888] sm:$0xff]
        %v509 = vld [vmem:[%s187 + $0x890] sm:$0xff]
        %v510 = vld [vmem:[%s187 + $0x898] sm:$0xff]
        %v511 = vld [vmem:[%s187 + $0x8a0] sm:$0xff]
        %v512 = vld [vmem:[%s187 + $0x8a8] sm:$0xff]
        %v513 = vld [vmem:[%s187 + $0x8b0] sm:$0xff]
        %v514 = vld [vmem:[%s187 + $0x8b8] sm:$0xff]
        %v515 = vld [vmem:[%s187 + $0x8c0] sm:$0xff]
        %v516 = vld [vmem:[%s187 + $0x8c8] sm:$0xff]
        %v517 = vld [vmem:[%s187 + $0x8d0] sm:$0xff]
        %v518 = vld [vmem:[%s187 + $0x8d8] sm:$0xff]
        %v519 = vld [vmem:[%s187 + $0x8e0] sm:$0xff]
        %v520 = vld [vmem:[%s187 + $0x8e8] sm:$0xff]
        %v521 = vld [vmem:[%s187 + $0x8f0] sm:$0xff]
        %v522 = vld [vmem:[%s187 + $0x8f8] sm:$0xff]
        %v523 = vld [vmem:[%s196] sm:$0xff]
        %v524 = vld [vmem:[%s196 + $0x8] sm:$0xf]
        %v527 = vlaneseq
        %v528 = vshrl.u32 %v527, 7
        %v529 = vsub.s32 0, %v528
        %v530 = vrot.slane %v523, %v529
        %v531 = vlaneseq
        %v532 = vshrl.u32 %v531, 7
        %v533 = vsub.s32 1, %v532
        %v534 = vrot.slane %v523, %v533
        %v535 = vlaneseq
        %v536 = vshrl.u32 %v535, 7
        %v537 = vsub.s32 2, %v536
        %v538 = vrot.slane %v523, %v537
        %v539 = vlaneseq
        %v540 = vshrl.u32 %v539, 7
        %v541 = vsub.s32 3, %v540
        %v542 = vrot.slane %v523, %v541
        %v543 = vlaneseq
        %v544 = vshrl.u32 %v543, 7
        %v545 = vsub.s32 4, %v544
        %v546 = vrot.slane %v523, %v545
        %v547 = vlaneseq
        %v548 = vshrl.u32 %v547, 7
        %v549 = vsub.s32 5, %v548
        %v550 = vrot.slane %v523, %v549
        %v551 = vlaneseq
        %v552 = vshrl.u32 %v551, 7
        %v553 = vsub.s32 6, %v552
        %v554 = vrot.slane %v523, %v553
        %v555 = vlaneseq
        %v556 = vshrl.u32 %v555, 7
        %v557 = vsub.s32 7, %v556
        %v558 = vrot.slane %v523, %v557
        %v559 = vlaneseq
        %v560 = vshrl.u32 %v559, 7
        %v561 = vsub.s32 0, %v560
        %v562 = vrot.slane %v524, %v561
        %v563 = vlaneseq
        %v564 = vshrl.u32 %v563, 7
        %v565 = vsub.s32 1, %v564
        %v566 = vrot.slane %v524, %v565
        %v567 = vlaneseq
        %v568 = vshrl.u32 %v567, 7
        %v569 = vsub.s32 2, %v568
        %v570 = vrot.slane %v524, %v569
        %v571 = vlaneseq
        %v572 = vshrl.u32 %v571, 7
        %v573 = vsub.s32 3, %v572
        %v574 = vrot.slane %v524, %v573
        %v589 = vunpack.c.l.b16 %v233
        %v590 = vunpack.c.h.b16 %v233
        %v591 = vunpack.c.l.b16 %v234
        %v592 = vpack.c.b16 %v589, %v589
        %v593 = vpack.c.b16 %v590, %v590
        %v594 = vpack.c.b16 %v591, %v591
        %v886 = vunpack.c.l.b16 %v235
        %v887 = vunpack.c.h.b16 %v235
        %v888 = vunpack.c.l.b16 %v236
        %v889 = vunpack.c.h.b16 %v236
        %v890 = vunpack.c.l.b16 %v237
        %v891 = vunpack.c.h.b16 %v237
        %v892 = vunpack.c.l.b16 %v238
        %v893 = vunpack.c.h.b16 %v238
        %v894 = vunpack.c.l.b16 %v239
        %v895 = vunpack.c.h.b16 %v239
        %v896 = vunpack.c.l.b16 %v240
        %v897 = vunpack.c.h.b16 %v240
        %v898 = vunpack.c.l.b16 %v241
        %v899 = vunpack.c.h.b16 %v241
        %v900 = vunpack.c.l.b16 %v242
        %v901 = vunpack.c.h.b16 %v242
        %v902 = vunpack.c.l.b16 %v243
        %v903 = vunpack.c.h.b16 %v243
        %v904 = vunpack.c.l.b16 %v244
        %v905 = vunpack.c.h.b16 %v244
        %v906 = vunpack.c.l.b16 %v245
        %v907 = vunpack.c.h.b16 %v245
        %v908 = vunpack.c.l.b16 %v246
        %v909 = vunpack.c.h.b16 %v246
        %v910 = vunpack.c.l.b16 %v247
        %v911 = vunpack.c.h.b16 %v247
        %v912 = vunpack.c.l.b16 %v248
        %v913 = vunpack.c.h.b16 %v248
        %v914 = vunpack.c.l.b16 %v249
        %v915 = vunpack.c.h.b16 %v249
        %v916 = vunpack.c.l.b16 %v250
        %v917 = vunpack.c.h.b16 %v250
        %v918 = vunpack.c.l.b16 %v251
        %v919 = vunpack.c.h.b16 %v251
        %v920 = vunpack.c.l.b16 %v252
        %v921 = vunpack.c.h.b16 %v252
        %v922 = vunpack.c.l.b16 %v253
        %v923 = vunpack.c.h.b16 %v253
        %v924 = vunpack.c.l.b16 %v254
        %v925 = vunpack.c.h.b16 %v254
        %v926 = vunpack.c.l.b16 %v255
        %v927 = vunpack.c.h.b16 %v255
        %v928 = vunpack.c.l.b16 %v256
        %v929 = vunpack.c.h.b16 %v256
        %v930 = vunpack.c.l.b16 %v257
        %v931 = vunpack.c.h.b16 %v257
        %v932 = vunpack.c.l.b16 %v258
        %v933 = vunpack.c.h.b16 %v258
        %v934 = vunpack.c.l.b16 %v259
        %v935 = vunpack.c.h.b16 %v259
        %v936 = vunpack.c.l.b16 %v260
        %v937 = vunpack.c.h.b16 %v260
        %v938 = vunpack.c.l.b16 %v261
        %v939 = vunpack.c.h.b16 %v261
        %v940 = vunpack.c.l.b16 %v262
        %v941 = vunpack.c.h.b16 %v262
        %v942 = vunpack.c.l.b16 %v263
        %v943 = vunpack.c.h.b16 %v263
        %v944 = vunpack.c.l.b16 %v264
        %v945 = vunpack.c.h.b16 %v264
        %v946 = vunpack.c.l.b16 %v265
        %v947 = vunpack.c.h.b16 %v265
        %v948 = vunpack.c.l.b16 %v266
        %v949 = vunpack.c.h.b16 %v266
        %v950 = vunpack.c.l.b16 %v267
        %v951 = vunpack.c.h.b16 %v267
        %v952 = vunpack.c.l.b16 %v268
        %v953 = vunpack.c.h.b16 %v268
        %v954 = vunpack.c.l.b16 %v269
        %v955 = vunpack.c.h.b16 %v269
        %v956 = vunpack.c.l.b16 %v270
        %v957 = vunpack.c.h.b16 %v270
        %v958 = vunpack.c.l.b16 %v271
        %v959 = vunpack.c.h.b16 %v271
        %v960 = vunpack.c.l.b16 %v272
        %v961 = vunpack.c.h.b16 %v272
        %v962 = vunpack.c.l.b16 %v273
        %v963 = vunpack.c.h.b16 %v273
        %v964 = vunpack.c.l.b16 %v274
        %v965 = vunpack.c.h.b16 %v274
        %v966 = vunpack.c.l.b16 %v275
        %v967 = vunpack.c.h.b16 %v275
        %v968 = vunpack.c.l.b16 %v276
        %v969 = vunpack.c.h.b16 %v276
        %v970 = vunpack.c.l.b16 %v277
        %v971 = vunpack.c.h.b16 %v277
        %v972 = vunpack.c.l.b16 %v278
        %v973 = vunpack.c.h.b16 %v278
        %v974 = vunpack.c.l.b16 %v279
        %v975 = vunpack.c.h.b16 %v279
        %v976 = vunpack.c.l.b16 %v280
        %v977 = vunpack.c.h.b16 %v280
        %v978 = vunpack.c.l.b16 %v281
        %v979 = vunpack.c.h.b16 %v281
        %v980 = vunpack.c.l.b16 %v282
        %v981 = vunpack.c.h.b16 %v282
        %v982 = vunpack.c.l.b16 %v283
        %v983 = vunpack.c.h.b16 %v283
        %v984 = vunpack.c.l.b16 %v284
        %v985 = vunpack.c.h.b16 %v284
        %v986 = vunpack.c.l.b16 %v285
        %v987 = vunpack.c.h.b16 %v285
        %v988 = vunpack.c.l.b16 %v286
        %v989 = vunpack.c.h.b16 %v286
        %v990 = vunpack.c.l.b16 %v287
        %v991 = vunpack.c.h.b16 %v287
        %v992 = vunpack.c.l.b16 %v288
        %v993 = vunpack.c.h.b16 %v288
        %v994 = vunpack.c.l.b16 %v289
        %v995 = vunpack.c.h.b16 %v289
        %v996 = vunpack.c.l.b16 %v290
        %v997 = vunpack.c.h.b16 %v290
        %v998 = vunpack.c.l.b16 %v291
        %v999 = vunpack.c.h.b16 %v291
        %v1000 = vunpack.c.l.b16 %v292
        %v1001 = vunpack.c.h.b16 %v292
        %v1002 = vunpack.c.l.b16 %v293
        %v1003 = vunpack.c.h.b16 %v293
        %v1004 = vunpack.c.l.b16 %v294
        %v1005 = vunpack.c.h.b16 %v294
        %v1006 = vunpack.c.l.b16 %v295
        %v1007 = vunpack.c.h.b16 %v295
        %v1008 = vunpack.c.l.b16 %v296
        %v1009 = vunpack.c.h.b16 %v296
        %v1010 = vunpack.c.l.b16 %v297
        %v1011 = vunpack.c.h.b16 %v297
        %v1012 = vunpack.c.l.b16 %v298
        %v1013 = vunpack.c.h.b16 %v298
        %v1014 = vunpack.c.l.b16 %v299
        %v1015 = vunpack.c.h.b16 %v299
        %v1016 = vunpack.c.l.b16 %v300
        %v1017 = vunpack.c.h.b16 %v300
        %v1018 = vunpack.c.l.b16 %v301
        %v1019 = vunpack.c.h.b16 %v301
        %v1020 = vunpack.c.l.b16 %v302
        %v1021 = vunpack.c.h.b16 %v302
        %v1022 = vunpack.c.l.b16 %v303
        %v1023 = vunpack.c.h.b16 %v303
        %v1024 = vunpack.c.l.b16 %v304
        %v1025 = vunpack.c.h.b16 %v304
        %v1026 = vunpack.c.l.b16 %v305
        %v1027 = vunpack.c.h.b16 %v305
        %v1028 = vunpack.c.l.b16 %v306
        %v1029 = vunpack.c.h.b16 %v306
        %v1030 = vunpack.c.l.b16 %v307
        %v1031 = vunpack.c.h.b16 %v307
        %v1032 = vunpack.c.l.b16 %v308
        %v1033 = vunpack.c.h.b16 %v308
        %v1034 = vunpack.c.l.b16 %v309
        %v1035 = vunpack.c.h.b16 %v309
        %v1036 = vunpack.c.l.b16 %v310
        %v1037 = vunpack.c.h.b16 %v310
        %v1038 = vunpack.c.l.b16 %v311
        %v1039 = vunpack.c.h.b16 %v311
        %v1040 = vunpack.c.l.b16 %v312
        %v1041 = vunpack.c.h.b16 %v312
        %v1042 = vunpack.c.l.b16 %v313
        %v1043 = vunpack.c.h.b16 %v313
        %v1044 = vunpack.c.l.b16 %v314
        %v1045 = vunpack.c.h.b16 %v314
        %v1046 = vunpack.c.l.b16 %v315
        %v1047 = vunpack.c.h.b16 %v315
        %v1048 = vunpack.c.l.b16 %v316
        %v1049 = vunpack.c.h.b16 %v316
        %v1050 = vunpack.c.l.b16 %v317
        %v1051 = vunpack.c.h.b16 %v317
        %v1052 = vunpack.c.l.b16 %v318
        %v1053 = vunpack.c.h.b16 %v318
        %v1054 = vunpack.c.l.b16 %v319
        %v1055 = vunpack.c.h.b16 %v319
        %v1056 = vunpack.c.l.b16 %v320
        %v1057 = vunpack.c.h.b16 %v320
        %v1058 = vunpack.c.l.b16 %v321
        %v1059 = vunpack.c.h.b16 %v321
        %v1060 = vunpack.c.l.b16 %v322
        %v1061 = vunpack.c.h.b16 %v322
        %v1062 = vunpack.c.l.b16 %v323
        %v1063 = vunpack.c.h.b16 %v323
        %v1064 = vunpack.c.l.b16 %v324
        %v1065 = vunpack.c.h.b16 %v324
        %v1066 = vunpack.c.l.b16 %v325
        %v1067 = vunpack.c.h.b16 %v325
        %v1068 = vunpack.c.l.b16 %v326
        %v1069 = vunpack.c.h.b16 %v326
        %v1070 = vunpack.c.l.b16 %v327
        %v1071 = vunpack.c.h.b16 %v327
        %v1072 = vunpack.c.l.b16 %v328
        %v1073 = vunpack.c.h.b16 %v328
        %v1074 = vunpack.c.l.b16 %v329
        %v1075 = vunpack.c.h.b16 %v329
        %v1076 = vunpack.c.l.b16 %v330
        %v1077 = vunpack.c.h.b16 %v330
        %v1078 = vunpack.c.l.b16 %v331
        %v1079 = vunpack.c.h.b16 %v331
        %v1080 = vunpack.c.l.b16 %v332
        %v1081 = vunpack.c.h.b16 %v332
        %v1082 = vunpack.c.l.b16 %v333
        %v1083 = vunpack.c.h.b16 %v333
        %v1084 = vunpack.c.l.b16 %v334
        %v1085 = vunpack.c.h.b16 %v334
        %v1086 = vunpack.c.l.b16 %v335
        %v1087 = vunpack.c.h.b16 %v335
        %v1088 = vunpack.c.l.b16 %v336
        %v1089 = vunpack.c.h.b16 %v336
        %v1090 = vunpack.c.l.b16 %v337
        %v1091 = vunpack.c.h.b16 %v337
        %v1092 = vunpack.c.l.b16 %v338
        %v1093 = vunpack.c.h.b16 %v338
        %v1094 = vunpack.c.l.b16 %v339
        %v1095 = vunpack.c.h.b16 %v339
        %v1096 = vunpack.c.l.b16 %v340
        %v1097 = vunpack.c.h.b16 %v340
        %v1098 = vunpack.c.l.b16 %v341
        %v1099 = vunpack.c.h.b16 %v341
        %v1100 = vunpack.c.l.b16 %v342
        %v1101 = vunpack.c.h.b16 %v342
        %v1102 = vunpack.c.l.b16 %v343
        %v1103 = vunpack.c.h.b16 %v343
        %v1104 = vunpack.c.l.b16 %v344
        %v1105 = vunpack.c.h.b16 %v344
        %v1106 = vunpack.c.l.b16 %v345
        %v1107 = vunpack.c.h.b16 %v345
        %v1108 = vunpack.c.l.b16 %v346
        %v1109 = vunpack.c.h.b16 %v346
        %v1110 = vunpack.c.l.b16 %v347
        %v1111 = vunpack.c.h.b16 %v347
        %v1112 = vunpack.c.l.b16 %v348
        %v1113 = vunpack.c.h.b16 %v348
        %v1114 = vunpack.c.l.b16 %v349
        %v1115 = vunpack.c.h.b16 %v349
        %v1116 = vunpack.c.l.b16 %v350
        %v1117 = vunpack.c.h.b16 %v350
        %v1118 = vunpack.c.l.b16 %v351
        %v1119 = vunpack.c.h.b16 %v351
        %v1120 = vunpack.c.l.b16 %v352
        %v1121 = vunpack.c.h.b16 %v352
        %v1122 = vunpack.c.l.b16 %v353
        %v1123 = vunpack.c.h.b16 %v353
        %v1124 = vunpack.c.l.b16 %v354
        %v1125 = vunpack.c.h.b16 %v354
        %v1126 = vunpack.c.l.b16 %v355
        %v1127 = vunpack.c.h.b16 %v355
        %v1128 = vunpack.c.l.b16 %v356
        %v1129 = vunpack.c.h.b16 %v356
        %v1130 = vunpack.c.l.b16 %v357
        %v1131 = vunpack.c.h.b16 %v357
        %v1132 = vunpack.c.l.b16 %v358
        %v1133 = vunpack.c.h.b16 %v358
        %v1134 = vunpack.c.l.b16 %v359
        %v1135 = vunpack.c.h.b16 %v359
        %v1136 = vunpack.c.l.b16 %v360
        %v1137 = vunpack.c.h.b16 %v360
        %v1138 = vunpack.c.l.b16 %v361
        %v1139 = vunpack.c.h.b16 %v361
        %v1140 = vunpack.c.l.b16 %v362
        %v1141 = vunpack.c.h.b16 %v362
        %v1142 = vunpack.c.l.b16 %v363
        %v1143 = vunpack.c.h.b16 %v363
        %v1144 = vunpack.c.l.b16 %v364
        %v1145 = vunpack.c.h.b16 %v364
        %v1146 = vunpack.c.l.b16 %v365
        %v1147 = vunpack.c.h.b16 %v365
        %v1148 = vunpack.c.l.b16 %v366
        %v1149 = vunpack.c.h.b16 %v366
        %v1150 = vunpack.c.l.b16 %v367
        %v1151 = vunpack.c.h.b16 %v367
        %v1152 = vunpack.c.l.b16 %v368
        %v1153 = vunpack.c.h.b16 %v368
        %v1154 = vunpack.c.l.b16 %v369
        %v1155 = vunpack.c.h.b16 %v369
        %v1156 = vunpack.c.l.b16 %v370
        %v1157 = vunpack.c.h.b16 %v370
        %v1158 = vunpack.c.l.b16 %v371
        %v1159 = vunpack.c.h.b16 %v371
        %v1160 = vunpack.c.l.b16 %v372
        %v1161 = vunpack.c.h.b16 %v372
        %v1162 = vunpack.c.l.b16 %v373
        %v1163 = vunpack.c.h.b16 %v373
        %v1164 = vunpack.c.l.b16 %v374
        %v1165 = vunpack.c.h.b16 %v374
        %v1166 = vunpack.c.l.b16 %v375
        %v1167 = vunpack.c.h.b16 %v375
        %v1168 = vunpack.c.l.b16 %v376
        %v1169 = vunpack.c.h.b16 %v376
        %v1170 = vunpack.c.l.b16 %v377
        %v1171 = vunpack.c.h.b16 %v377
        %v1172 = vunpack.c.l.b16 %v378
        %v1173 = vunpack.c.h.b16 %v378
        %v1174 = vunpack.c.l.b16 %v379
        %v1175 = vunpack.c.h.b16 %v379
        %v1176 = vunpack.c.l.b16 %v380
        %v1177 = vunpack.c.h.b16 %v380
        %v1178 = vunpack.c.l.b16 %v381
        %v1179 = vunpack.c.h.b16 %v381
        %v1180 = vunpack.c.l.b16 %v382
        %v1181 = vunpack.c.h.b16 %v382
        %v1182 = vunpack.c.l.b16 %v383
        %v1183 = vunpack.c.h.b16 %v383
        %v1184 = vunpack.c.l.b16 %v384
        %v1185 = vunpack.c.h.b16 %v384
        %v1186 = vunpack.c.l.b16 %v385
        %v1187 = vunpack.c.h.b16 %v385
        %v1188 = vunpack.c.l.b16 %v386
        %v1189 = vunpack.c.h.b16 %v386
        %v1190 = vunpack.c.l.b16 %v387
        %v1191 = vunpack.c.h.b16 %v387
        %v1192 = vunpack.c.l.b16 %v388
        %v1193 = vunpack.c.h.b16 %v388
        %v1194 = vunpack.c.l.b16 %v389
        %v1195 = vunpack.c.h.b16 %v389
        %v1196 = vunpack.c.l.b16 %v390
        %v1197 = vunpack.c.h.b16 %v390
        %v1198 = vunpack.c.l.b16 %v391
        %v1199 = vunpack.c.h.b16 %v391
        %v1200 = vunpack.c.l.b16 %v392
        %v1201 = vunpack.c.h.b16 %v392
        %v1202 = vunpack.c.l.b16 %v393
        %v1203 = vunpack.c.h.b16 %v393
        %v1204 = vunpack.c.l.b16 %v394
        %v1205 = vunpack.c.h.b16 %v394
        %v1206 = vunpack.c.l.b16 %v395
        %v1207 = vunpack.c.h.b16 %v395
        %v1208 = vunpack.c.l.b16 %v396
        %v1209 = vunpack.c.h.b16 %v396
        %v1210 = vunpack.c.l.b16 %v397
        %v1211 = vunpack.c.h.b16 %v397
        %v1212 = vunpack.c.l.b16 %v398
        %v1213 = vunpack.c.h.b16 %v398
        %v1214 = vunpack.c.l.b16 %v399
        %v1215 = vunpack.c.h.b16 %v399
        %v1216 = vunpack.c.l.b16 %v400
        %v1217 = vunpack.c.h.b16 %v400
        %v1218 = vunpack.c.l.b16 %v401
        %v1219 = vunpack.c.h.b16 %v401
        %v1220 = vunpack.c.l.b16 %v402
        %v1221 = vunpack.c.h.b16 %v402
        %v1222 = vunpack.c.l.b16 %v403
        %v1223 = vunpack.c.h.b16 %v403
        %v1224 = vunpack.c.l.b16 %v404
        %v1225 = vunpack.c.h.b16 %v404
        %v1226 = vunpack.c.l.b16 %v405
        %v1227 = vunpack.c.h.b16 %v405
        %v1228 = vunpack.c.l.b16 %v406
        %v1229 = vunpack.c.h.b16 %v406
        %v1230 = vunpack.c.l.b16 %v407
        %v1231 = vunpack.c.h.b16 %v407
        %v1232 = vunpack.c.l.b16 %v408
        %v1233 = vunpack.c.h.b16 %v408
        %v1234 = vunpack.c.l.b16 %v409
        %v1235 = vunpack.c.h.b16 %v409
        %v1236 = vunpack.c.l.b16 %v410
        %v1237 = vunpack.c.h.b16 %v410
        %v1238 = vunpack.c.l.b16 %v411
        %v1239 = vunpack.c.h.b16 %v411
        %v1240 = vunpack.c.l.b16 %v412
        %v1241 = vunpack.c.h.b16 %v412
        %v1242 = vunpack.c.l.b16 %v413
        %v1243 = vunpack.c.h.b16 %v413
        %v1244 = vunpack.c.l.b16 %v414
        %v1245 = vunpack.c.h.b16 %v414
        %v1246 = vunpack.c.l.b16 %v415
        %v1247 = vunpack.c.h.b16 %v415
        %v1248 = vunpack.c.l.b16 %v416
        %v1249 = vunpack.c.h.b16 %v416
        %v1250 = vunpack.c.l.b16 %v417
        %v1251 = vunpack.c.h.b16 %v417
        %v1252 = vunpack.c.l.b16 %v418
        %v1253 = vunpack.c.h.b16 %v418
        %v1254 = vunpack.c.l.b16 %v419
        %v1255 = vunpack.c.h.b16 %v419
        %v1256 = vunpack.c.l.b16 %v420
        %v1257 = vunpack.c.h.b16 %v420
        %v1258 = vunpack.c.l.b16 %v421
        %v1259 = vunpack.c.h.b16 %v421
        %v1260 = vunpack.c.l.b16 %v422
        %v1261 = vunpack.c.h.b16 %v422
        %v1262 = vunpack.c.l.b16 %v423
        %v1263 = vunpack.c.h.b16 %v423
        %v1264 = vunpack.c.l.b16 %v424
        %v1265 = vunpack.c.h.b16 %v424
        %v1266 = vunpack.c.l.b16 %v425
        %v1267 = vunpack.c.h.b16 %v425
        %v1268 = vunpack.c.l.b16 %v426
        %v1269 = vunpack.c.h.b16 %v426
        %v1270 = vunpack.c.l.b16 %v427
        %v1271 = vunpack.c.h.b16 %v427
        %v1272 = vunpack.c.l.b16 %v428
        %v1273 = vunpack.c.h.b16 %v428
        %v1274 = vunpack.c.l.b16 %v429
        %v1275 = vunpack.c.h.b16 %v429
        %v1276 = vunpack.c.l.b16 %v430
        %v1277 = vunpack.c.h.b16 %v430
        %v1278 = vunpack.c.l.b16 %v431
        %v1279 = vunpack.c.h.b16 %v431
        %v1280 = vunpack.c.l.b16 %v432
        %v1281 = vunpack.c.h.b16 %v432
        %v1282 = vunpack.c.l.b16 %v433
        %v1283 = vunpack.c.h.b16 %v433
        %v1284 = vunpack.c.l.b16 %v434
        %v1285 = vunpack.c.h.b16 %v434
        %v1286 = vunpack.c.l.b16 %v435
        %v1287 = vunpack.c.h.b16 %v435
        %v1288 = vunpack.c.l.b16 %v436
        %v1289 = vunpack.c.h.b16 %v436
        %v1290 = vunpack.c.l.b16 %v437
        %v1291 = vunpack.c.h.b16 %v437
        %v1292 = vunpack.c.l.b16 %v438
        %v1293 = vunpack.c.h.b16 %v438
        %v1294 = vunpack.c.l.b16 %v439
        %v1295 = vunpack.c.h.b16 %v439
        %v1296 = vunpack.c.l.b16 %v440
        %v1297 = vunpack.c.h.b16 %v440
        %v1298 = vunpack.c.l.b16 %v441
        %v1299 = vunpack.c.h.b16 %v441
        %v1300 = vunpack.c.l.b16 %v442
        %v1301 = vunpack.c.h.b16 %v442
        %v1302 = vunpack.c.l.b16 %v443
        %v1303 = vunpack.c.h.b16 %v443
        %v1304 = vunpack.c.l.b16 %v444
        %v1305 = vunpack.c.h.b16 %v444
        %v1306 = vunpack.c.l.b16 %v445
        %v1307 = vunpack.c.h.b16 %v445
        %v1308 = vunpack.c.l.b16 %v446
        %v1309 = vunpack.c.h.b16 %v446
        %v1310 = vunpack.c.l.b16 %v447
        %v1311 = vunpack.c.h.b16 %v447
        %v1312 = vunpack.c.l.b16 %v448
        %v1313 = vunpack.c.h.b16 %v448
        %v1314 = vunpack.c.l.b16 %v449
        %v1315 = vunpack.c.h.b16 %v449
        %v1316 = vunpack.c.l.b16 %v450
        %v1317 = vunpack.c.h.b16 %v450
        %v1318 = vunpack.c.l.b16 %v451
        %v1319 = vunpack.c.h.b16 %v451
        %v1320 = vunpack.c.l.b16 %v452
        %v1321 = vunpack.c.h.b16 %v452
        %v1322 = vunpack.c.l.b16 %v453
        %v1323 = vunpack.c.h.b16 %v453
        %v1324 = vunpack.c.l.b16 %v454
        %v1325 = vunpack.c.h.b16 %v454
        %v1326 = vunpack.c.l.b16 %v455
        %v1327 = vunpack.c.h.b16 %v455
        %v1328 = vunpack.c.l.b16 %v456
        %v1329 = vunpack.c.h.b16 %v456
        %v1330 = vunpack.c.l.b16 %v457
        %v1331 = vunpack.c.h.b16 %v457
        %v1332 = vunpack.c.l.b16 %v458
        %v1333 = vunpack.c.h.b16 %v458
        %v1334 = vunpack.c.l.b16 %v459
        %v1335 = vunpack.c.h.b16 %v459
        %v1336 = vunpack.c.l.b16 %v460
        %v1337 = vunpack.c.h.b16 %v460
        %v1338 = vunpack.c.l.b16 %v461
        %v1339 = vunpack.c.h.b16 %v461
        %v1340 = vunpack.c.l.b16 %v462
        %v1341 = vunpack.c.h.b16 %v462
        %v1342 = vunpack.c.l.b16 %v463
        %v1343 = vunpack.c.h.b16 %v463
        %v1344 = vunpack.c.l.b16 %v464
        %v1345 = vunpack.c.h.b16 %v464
        %v1346 = vunpack.c.l.b16 %v465
        %v1347 = vunpack.c.h.b16 %v465
        %v1348 = vunpack.c.l.b16 %v466
        %v1349 = vunpack.c.h.b16 %v466
        %v1350 = vunpack.c.l.b16 %v467
        %v1351 = vunpack.c.h.b16 %v467
        %v1352 = vunpack.c.l.b16 %v468
        %v1353 = vunpack.c.h.b16 %v468
        %v1354 = vunpack.c.l.b16 %v469
        %v1355 = vunpack.c.h.b16 %v469
        %v1356 = vunpack.c.l.b16 %v470
        %v1357 = vunpack.c.h.b16 %v470
        %v1358 = vunpack.c.l.b16 %v471
        %v1359 = vunpack.c.h.b16 %v471
        %v1360 = vunpack.c.l.b16 %v472
        %v1361 = vunpack.c.h.b16 %v472
        %v1362 = vunpack.c.l.b16 %v473
        %v1363 = vunpack.c.h.b16 %v473
        %v1364 = vunpack.c.l.b16 %v474
        %v1365 = vunpack.c.h.b16 %v474
        %v1366 = vunpack.c.l.b16 %v475
        %v1367 = vunpack.c.h.b16 %v475
        %v1368 = vunpack.c.l.b16 %v476
        %v1369 = vunpack.c.h.b16 %v476
        %v1370 = vunpack.c.l.b16 %v477
        %v1371 = vunpack.c.h.b16 %v477
        %v1372 = vunpack.c.l.b16 %v478
        %v1373 = vunpack.c.h.b16 %v478
        %v1374 = vunpack.c.l.b16 %v479
        %v1375 = vunpack.c.h.b16 %v479
        %v1376 = vunpack.c.l.b16 %v480
        %v1377 = vunpack.c.h.b16 %v480
        %v1378 = vunpack.c.l.b16 %v481
        %v1379 = vunpack.c.h.b16 %v481
        %v1380 = vunpack.c.l.b16 %v482
        %v1381 = vunpack.c.h.b16 %v482
        %v1382 = vunpack.c.l.b16 %v483
        %v1383 = vunpack.c.h.b16 %v483
        %v1384 = vunpack.c.l.b16 %v484
        %v1385 = vunpack.c.h.b16 %v484
        %v1386 = vunpack.c.l.b16 %v485
        %v1387 = vunpack.c.h.b16 %v485
        %v1388 = vunpack.c.l.b16 %v486
        %v1389 = vunpack.c.h.b16 %v486
        %v1390 = vunpack.c.l.b16 %v487
        %v1391 = vunpack.c.h.b16 %v487
        %v1392 = vunpack.c.l.b16 %v488
        %v1393 = vunpack.c.h.b16 %v488
        %v1394 = vunpack.c.l.b16 %v489
        %v1395 = vunpack.c.h.b16 %v489
        %v1396 = vunpack.c.l.b16 %v490
        %v1397 = vunpack.c.h.b16 %v490
        %v1398 = vunpack.c.l.b16 %v491
        %v1399 = vunpack.c.h.b16 %v491
        %v1400 = vunpack.c.l.b16 %v492
        %v1401 = vunpack.c.h.b16 %v492
        %v1402 = vunpack.c.l.b16 %v493
        %v1403 = vunpack.c.h.b16 %v493
        %v1404 = vunpack.c.l.b16 %v494
        %v1405 = vunpack.c.h.b16 %v494
        %v1406 = vunpack.c.l.b16 %v495
        %v1407 = vunpack.c.h.b16 %v495
        %v1408 = vunpack.c.l.b16 %v496
        %v1409 = vunpack.c.h.b16 %v496
        %v1410 = vunpack.c.l.b16 %v497
        %v1411 = vunpack.c.h.b16 %v497
        %v1412 = vunpack.c.l.b16 %v498
        %v1413 = vunpack.c.h.b16 %v498
        %v1414 = vunpack.c.l.b16 %v499
        %v1415 = vunpack.c.h.b16 %v499
        %v1416 = vunpack.c.l.b16 %v500
        %v1417 = vunpack.c.h.b16 %v500
        %v1418 = vunpack.c.l.b16 %v501
        %v1419 = vunpack.c.h.b16 %v501
        %v1420 = vunpack.c.l.b16 %v502
        %v1421 = vunpack.c.h.b16 %v502
        %v1422 = vunpack.c.l.b16 %v503
        %v1423 = vunpack.c.h.b16 %v503
        %v1424 = vunpack.c.l.b16 %v504
        %v1425 = vunpack.c.h.b16 %v504
        %v1426 = vunpack.c.l.b16 %v505
        %v1427 = vunpack.c.h.b16 %v505
        %v1428 = vunpack.c.l.b16 %v506
        %v1429 = vunpack.c.h.b16 %v506
        %v1430 = vunpack.c.l.b16 %v507
        %v1431 = vunpack.c.h.b16 %v507
        %v1432 = vunpack.c.l.b16 %v508
        %v1433 = vunpack.c.h.b16 %v508
        %v1434 = vunpack.c.l.b16 %v509
        %v1435 = vunpack.c.h.b16 %v509
        %v1436 = vunpack.c.l.b16 %v510
        %v1437 = vunpack.c.h.b16 %v510
        %v1438 = vunpack.c.l.b16 %v511
        %v1439 = vunpack.c.h.b16 %v511
        %v1440 = vunpack.c.l.b16 %v512
        %v1441 = vunpack.c.h.b16 %v512
        %v1442 = vunpack.c.l.b16 %v513
        %v1443 = vunpack.c.h.b16 %v513
        %v1444 = vunpack.c.l.b16 %v514
        %v1445 = vunpack.c.h.b16 %v514
        %v1446 = vunpack.c.l.b16 %v515
        %v1447 = vunpack.c.h.b16 %v515
        %v1448 = vunpack.c.l.b16 %v516
        %v1449 = vunpack.c.h.b16 %v516
        %v1450 = vunpack.c.l.b16 %v517
        %v1451 = vunpack.c.h.b16 %v517
        %v1452 = vunpack.c.l.b16 %v518
        %v1453 = vunpack.c.h.b16 %v518
        %v1454 = vunpack.c.l.b16 %v519
        %v1455 = vunpack.c.h.b16 %v519
        %v1456 = vunpack.c.l.b16 %v520
        %v1457 = vunpack.c.h.b16 %v520
        %v1458 = vunpack.c.l.b16 %v521
        %v1459 = vunpack.c.h.b16 %v521
        %v1460 = vunpack.c.l.b16 %v522
        %v1461 = vunpack.c.h.b16 %v522
        %v1462 = vpack.c.b16 %v898, %v886
        %v1463 = vpack.c.b16 %v899, %v887
        %v1464 = vpack.c.b16 %v900, %v888
        %v1465 = vpack.c.b16 %v901, %v889
        %v1466 = vpack.c.b16 %v902, %v890
        %v1467 = vpack.c.b16 %v903, %v891
        %v1468 = vpack.c.b16 %v904, %v892
        %v1469 = vpack.c.b16 %v905, %v893
        %v1470 = vpack.c.b16 %v906, %v894
        %v1471 = vpack.c.b16 %v907, %v895
        %v1472 = vpack.c.b16 %v908, %v896
        %v1473 = vpack.c.b16 %v909, %v897
        %v1474 = vpack.c.b16 %v922, %v910
        %v1475 = vpack.c.b16 %v923, %v911
        %v1476 = vpack.c.b16 %v924, %v912
        %v1477 = vpack.c.b16 %v925, %v913
        %v1478 = vpack.c.b16 %v926, %v914
        %v1479 = vpack.c.b16 %v927, %v915
        %v1480 = vpack.c.b16 %v928, %v916
        %v1481 = vpack.c.b16 %v929, %v917
        %v1482 = vpack.c.b16 %v930, %v918
        %v1483 = vpack.c.b16 %v931, %v919
        %v1484 = vpack.c.b16 %v932, %v920
        %v1485 = vpack.c.b16 %v933, %v921
        %v1486 = vpack.c.b16 %v946, %v934
        %v1487 = vpack.c.b16 %v947, %v935
        %v1488 = vpack.c.b16 %v948, %v936
        %v1489 = vpack.c.b16 %v949, %v937
        %v1490 = vpack.c.b16 %v950, %v938
        %v1491 = vpack.c.b16 %v951, %v939
        %v1492 = vpack.c.b16 %v952, %v940
        %v1493 = vpack.c.b16 %v953, %v941
        %v1494 = vpack.c.b16 %v954, %v942
        %v1495 = vpack.c.b16 %v955, %v943
        %v1496 = vpack.c.b16 %v956, %v944
        %v1497 = vpack.c.b16 %v957, %v945
        %v1498 = vpack.c.b16 %v970, %v958
        %v1499 = vpack.c.b16 %v971, %v959
        %v1500 = vpack.c.b16 %v972, %v960
        %v1501 = vpack.c.b16 %v973, %v961
        %v1502 = vpack.c.b16 %v974, %v962
        %v1503 = vpack.c.b16 %v975, %v963
        %v1504 = vpack.c.b16 %v976, %v964
        %v1505 = vpack.c.b16 %v977, %v965
        %v1506 = vpack.c.b16 %v978, %v966
        %v1507 = vpack.c.b16 %v979, %v967
        %v1508 = vpack.c.b16 %v980, %v968
        %v1509 = vpack.c.b16 %v981, %v969
        %v1510 = vpack.c.b16 %v994, %v982
        %v1511 = vpack.c.b16 %v995, %v983
        %v1512 = vpack.c.b16 %v996, %v984
        %v1513 = vpack.c.b16 %v997, %v985
        %v1514 = vpack.c.b16 %v998, %v986
        %v1515 = vpack.c.b16 %v999, %v987
        %v1516 = vpack.c.b16 %v1000, %v988
        %v1517 = vpack.c.b16 %v1001, %v989
        %v1518 = vpack.c.b16 %v1002, %v990
        %v1519 = vpack.c.b16 %v1003, %v991
        %v1520 = vpack.c.b16 %v1004, %v992
        %v1521 = vpack.c.b16 %v1005, %v993
        %v1522 = vpack.c.b16 %v1018, %v1006
        %v1523 = vpack.c.b16 %v1019, %v1007
        %v1524 = vpack.c.b16 %v1020, %v1008
        %v1525 = vpack.c.b16 %v1021, %v1009
        %v1526 = vpack.c.b16 %v1022, %v1010
        %v1527 = vpack.c.b16 %v1023, %v1011
        %v1528 = vpack.c.b16 %v1024, %v1012
        %v1529 = vpack.c.b16 %v1025, %v1013
        %v1530 = vpack.c.b16 %v1026, %v1014
        %v1531 = vpack.c.b16 %v1027, %v1015
        %v1532 = vpack.c.b16 %v1028, %v1016
        %v1533 = vpack.c.b16 %v1029, %v1017
        %v1534 = vpack.c.b16 %v1042, %v1030
        %v1535 = vpack.c.b16 %v1043, %v1031
        %v1536 = vpack.c.b16 %v1044, %v1032
        %v1537 = vpack.c.b16 %v1045, %v1033
        %v1538 = vpack.c.b16 %v1046, %v1034
        %v1539 = vpack.c.b16 %v1047, %v1035
        %v1540 = vpack.c.b16 %v1048, %v1036
        %v1541 = vpack.c.b16 %v1049, %v1037
        %v1542 = vpack.c.b16 %v1050, %v1038
        %v1543 = vpack.c.b16 %v1051, %v1039
        %v1544 = vpack.c.b16 %v1052, %v1040
        %v1545 = vpack.c.b16 %v1053, %v1041
        %v1546 = vpack.c.b16 %v1066, %v1054
        %v1547 = vpack.c.b16 %v1067, %v1055
        %v1548 = vpack.c.b16 %v1068, %v1056
        %v1549 = vpack.c.b16 %v1069, %v1057
        %v1550 = vpack.c.b16 %v1070, %v1058
        %v1551 = vpack.c.b16 %v1071, %v1059
        %v1552 = vpack.c.b16 %v1072, %v1060
        %v1553 = vpack.c.b16 %v1073, %v1061
        %v1554 = vpack.c.b16 %v1074, %v1062
        %v1555 = vpack.c.b16 %v1075, %v1063
        %v1556 = vpack.c.b16 %v1076, %v1064
        %v1557 = vpack.c.b16 %v1077, %v1065
        %v1558 = vpack.c.b16 %v1090, %v1078
        %v1559 = vpack.c.b16 %v1091, %v1079
        %v1560 = vpack.c.b16 %v1092, %v1080
        %v1561 = vpack.c.b16 %v1093, %v1081
        %v1562 = vpack.c.b16 %v1094, %v1082
        %v1563 = vpack.c.b16 %v1095, %v1083
        %v1564 = vpack.c.b16 %v1096, %v1084
        %v1565 = vpack.c.b16 %v1097, %v1085
        %v1566 = vpack.c.b16 %v1098, %v1086
        %v1567 = vpack.c.b16 %v1099, %v1087
        %v1568 = vpack.c.b16 %v1100, %v1088
        %v1569 = vpack.c.b16 %v1101, %v1089
        %v1570 = vpack.c.b16 %v1114, %v1102
        %v1571 = vpack.c.b16 %v1115, %v1103
        %v1572 = vpack.c.b16 %v1116, %v1104
        %v1573 = vpack.c.b16 %v1117, %v1105
        %v1574 = vpack.c.b16 %v1118, %v1106
        %v1575 = vpack.c.b16 %v1119, %v1107
        %v1576 = vpack.c.b16 %v1120, %v1108
        %v1577 = vpack.c.b16 %v1121, %v1109
        %v1578 = vpack.c.b16 %v1122, %v1110
        %v1579 = vpack.c.b16 %v1123, %v1111
        %v1580 = vpack.c.b16 %v1124, %v1112
        %v1581 = vpack.c.b16 %v1125, %v1113
        %v1582 = vpack.c.b16 %v1138, %v1126
        %v1583 = vpack.c.b16 %v1139, %v1127
        %v1584 = vpack.c.b16 %v1140, %v1128
        %v1585 = vpack.c.b16 %v1141, %v1129
        %v1586 = vpack.c.b16 %v1142, %v1130
        %v1587 = vpack.c.b16 %v1143, %v1131
        %v1588 = vpack.c.b16 %v1144, %v1132
        %v1589 = vpack.c.b16 %v1145, %v1133
        %v1590 = vpack.c.b16 %v1146, %v1134
        %v1591 = vpack.c.b16 %v1147, %v1135
        %v1592 = vpack.c.b16 %v1148, %v1136
        %v1593 = vpack.c.b16 %v1149, %v1137
        %v1594 = vpack.c.b16 %v1162, %v1150
        %v1595 = vpack.c.b16 %v1163, %v1151
        %v1596 = vpack.c.b16 %v1164, %v1152
        %v1597 = vpack.c.b16 %v1165, %v1153
        %v1598 = vpack.c.b16 %v1166, %v1154
        %v1599 = vpack.c.b16 %v1167, %v1155
        %v1600 = vpack.c.b16 %v1168, %v1156
        %v1601 = vpack.c.b16 %v1169, %v1157
        %v1602 = vpack.c.b16 %v1170, %v1158
        %v1603 = vpack.c.b16 %v1171, %v1159
        %v1604 = vpack.c.b16 %v1172, %v1160
        %v1605 = vpack.c.b16 %v1173, %v1161
        %v1606 = vpack.c.b16 %v1186, %v1174
        %v1607 = vpack.c.b16 %v1187, %v1175
        %v1608 = vpack.c.b16 %v1188, %v1176
        %v1609 = vpack.c.b16 %v1189, %v1177
        %v1610 = vpack.c.b16 %v1190, %v1178
        %v1611 = vpack.c.b16 %v1191, %v1179
        %v1612 = vpack.c.b16 %v1192, %v1180
        %v1613 = vpack.c.b16 %v1193, %v1181
        %v1614 = vpack.c.b16 %v1194, %v1182
        %v1615 = vpack.c.b16 %v1195, %v1183
        %v1616 = vpack.c.b16 %v1196, %v1184
        %v1617 = vpack.c.b16 %v1197, %v1185
        %v1618 = vpack.c.b16 %v1210, %v1198
        %v1619 = vpack.c.b16 %v1211, %v1199
        %v1620 = vpack.c.b16 %v1212, %v1200
        %v1621 = vpack.c.b16 %v1213, %v1201
        %v1622 = vpack.c.b16 %v1214, %v1202
        %v1623 = vpack.c.b16 %v1215, %v1203
        %v1624 = vpack.c.b16 %v1216, %v1204
        %v1625 = vpack.c.b16 %v1217, %v1205
        %v1626 = vpack.c.b16 %v1218, %v1206
        %v1627 = vpack.c.b16 %v1219, %v1207
        %v1628 = vpack.c.b16 %v1220, %v1208
        %v1629 = vpack.c.b16 %v1221, %v1209
        %v1630 = vpack.c.b16 %v1234, %v1222
        %v1631 = vpack.c.b16 %v1235, %v1223
        %v1632 = vpack.c.b16 %v1236, %v1224
        %v1633 = vpack.c.b16 %v1237, %v1225
        %v1634 = vpack.c.b16 %v1238, %v1226
        %v1635 = vpack.c.b16 %v1239, %v1227
        %v1636 = vpack.c.b16 %v1240, %v1228
        %v1637 = vpack.c.b16 %v1241, %v1229
        %v1638 = vpack.c.b16 %v1242, %v1230
        %v1639 = vpack.c.b16 %v1243, %v1231
        %v1640 = vpack.c.b16 %v1244, %v1232
        %v1641 = vpack.c.b16 %v1245, %v1233
        %v1642 = vpack.c.b16 %v1258, %v1246
        %v1643 = vpack.c.b16 %v1259, %v1247
        %v1644 = vpack.c.b16 %v1260, %v1248
        %v1645 = vpack.c.b16 %v1261, %v1249
        %v1646 = vpack.c.b16 %v1262, %v1250
        %v1647 = vpack.c.b16 %v1263, %v1251
        %v1648 = vpack.c.b16 %v1264, %v1252
        %v1649 = vpack.c.b16 %v1265, %v1253
        %v1650 = vpack.c.b16 %v1266, %v1254
        %v1651 = vpack.c.b16 %v1267, %v1255
        %v1652 = vpack.c.b16 %v1268, %v1256
        %v1653 = vpack.c.b16 %v1269, %v1257
        %v1654 = vpack.c.b16 %v1282, %v1270
        %v1655 = vpack.c.b16 %v1283, %v1271
        %v1656 = vpack.c.b16 %v1284, %v1272
        %v1657 = vpack.c.b16 %v1285, %v1273
        %v1658 = vpack.c.b16 %v1286, %v1274
        %v1659 = vpack.c.b16 %v1287, %v1275
        %v1660 = vpack.c.b16 %v1288, %v1276
        %v1661 = vpack.c.b16 %v1289, %v1277
        %v1662 = vpack.c.b16 %v1290, %v1278
        %v1663 = vpack.c.b16 %v1291, %v1279
        %v1664 = vpack.c.b16 %v1292, %v1280
        %v1665 = vpack.c.b16 %v1293, %v1281
        %v1666 = vpack.c.b16 %v1306, %v1294
        %v1667 = vpack.c.b16 %v1307, %v1295
        %v1668 = vpack.c.b16 %v1308, %v1296
        %v1669 = vpack.c.b16 %v1309, %v1297
        %v1670 = vpack.c.b16 %v1310, %v1298
        %v1671 = vpack.c.b16 %v1311, %v1299
        %v1672 = vpack.c.b16 %v1312, %v1300
        %v1673 = vpack.c.b16 %v1313, %v1301
        %v1674 = vpack.c.b16 %v1314, %v1302
        %v1675 = vpack.c.b16 %v1315, %v1303
        %v1676 = vpack.c.b16 %v1316, %v1304
        %v1677 = vpack.c.b16 %v1317, %v1305
        %v1678 = vpack.c.b16 %v1330, %v1318
        %v1679 = vpack.c.b16 %v1331, %v1319
        %v1680 = vpack.c.b16 %v1332, %v1320
        %v1681 = vpack.c.b16 %v1333, %v1321
        %v1682 = vpack.c.b16 %v1334, %v1322
        %v1683 = vpack.c.b16 %v1335, %v1323
        %v1684 = vpack.c.b16 %v1336, %v1324
        %v1685 = vpack.c.b16 %v1337, %v1325
        %v1686 = vpack.c.b16 %v1338, %v1326
        %v1687 = vpack.c.b16 %v1339, %v1327
        %v1688 = vpack.c.b16 %v1340, %v1328
        %v1689 = vpack.c.b16 %v1341, %v1329
        %v1690 = vpack.c.b16 %v1354, %v1342
        %v1691 = vpack.c.b16 %v1355, %v1343
        %v1692 = vpack.c.b16 %v1356, %v1344
        %v1693 = vpack.c.b16 %v1357, %v1345
        %v1694 = vpack.c.b16 %v1358, %v1346
        %v1695 = vpack.c.b16 %v1359, %v1347
        %v1696 = vpack.c.b16 %v1360, %v1348
        %v1697 = vpack.c.b16 %v1361, %v1349
        %v1698 = vpack.c.b16 %v1362, %v1350
        %v1699 = vpack.c.b16 %v1363, %v1351
        %v1700 = vpack.c.b16 %v1364, %v1352
        %v1701 = vpack.c.b16 %v1365, %v1353
        %v1702 = vpack.c.b16 %v1378, %v1366
        %v1703 = vpack.c.b16 %v1379, %v1367
        %v1704 = vpack.c.b16 %v1380, %v1368
        %v1705 = vpack.c.b16 %v1381, %v1369
        %v1706 = vpack.c.b16 %v1382, %v1370
        %v1707 = vpack.c.b16 %v1383, %v1371
        %v1708 = vpack.c.b16 %v1384, %v1372
        %v1709 = vpack.c.b16 %v1385, %v1373
        %v1710 = vpack.c.b16 %v1386, %v1374
        %v1711 = vpack.c.b16 %v1387, %v1375
        %v1712 = vpack.c.b16 %v1388, %v1376
        %v1713 = vpack.c.b16 %v1389, %v1377
        %v1714 = vpack.c.b16 %v1402, %v1390
        %v1715 = vpack.c.b16 %v1403, %v1391
        %v1716 = vpack.c.b16 %v1404, %v1392
        %v1717 = vpack.c.b16 %v1405, %v1393
        %v1718 = vpack.c.b16 %v1406, %v1394
        %v1719 = vpack.c.b16 %v1407, %v1395
        %v1720 = vpack.c.b16 %v1408, %v1396
        %v1721 = vpack.c.b16 %v1409, %v1397
        %v1722 = vpack.c.b16 %v1410, %v1398
        %v1723 = vpack.c.b16 %v1411, %v1399
        %v1724 = vpack.c.b16 %v1412, %v1400
        %v1725 = vpack.c.b16 %v1413, %v1401
        %v1726 = vpack.c.b16 %v1426, %v1414
        %v1727 = vpack.c.b16 %v1427, %v1415
        %v1728 = vpack.c.b16 %v1428, %v1416
        %v1729 = vpack.c.b16 %v1429, %v1417
        %v1730 = vpack.c.b16 %v1430, %v1418
        %v1731 = vpack.c.b16 %v1431, %v1419
        %v1732 = vpack.c.b16 %v1432, %v1420
        %v1733 = vpack.c.b16 %v1433, %v1421
        %v1734 = vpack.c.b16 %v1434, %v1422
        %v1735 = vpack.c.b16 %v1435, %v1423
        %v1736 = vpack.c.b16 %v1436, %v1424
        %v1737 = vpack.c.b16 %v1437, %v1425
        %v1738 = vpack.c.b16 %v1450, %v1438
        %v1739 = vpack.c.b16 %v1451, %v1439
        %v1740 = vpack.c.b16 %v1452, %v1440
        %v1741 = vpack.c.b16 %v1453, %v1441
        %v1742 = vpack.c.b16 %v1454, %v1442
        %v1743 = vpack.c.b16 %v1455, %v1443
        %v1744 = vpack.c.b16 %v1456, %v1444
        %v1745 = vpack.c.b16 %v1457, %v1445
        %v1746 = vpack.c.b16 %v1458, %v1446
        %v1747 = vpack.c.b16 %v1459, %v1447
        %v1748 = vpack.c.b16 %v1460, %v1448
        %v1749 = vpack.c.b16 %v1461, %v1449
        %2038 = vmatprep.subr.bf16.mxu0 %v1463
        %2039 = vmatpush1.bf16.msra.mxu0 %v1462
        %2040 = vmatprep.subr.bf16.mxu0 %v1475
        %2041 = vmatpush1.bf16.msra.mxu0 %v1474
        %2042 = vmatprep.subr.bf16.mxu0 %v1487
        %2043 = vmatpush1.bf16.msra.mxu0 %v1486
        %2044 = vmatprep.subr.bf16.mxu0 %v1499
        %2045 = vmatpush1.bf16.msra.mxu0 %v1498
        %2046 = vmatprep.subr.bf16.mxu0 %v1511
        %2047 = vmatpush1.bf16.msra.mxu0 %v1510
        %2048 = vmatprep.subr.bf16.mxu0 %v1523
        %2049 = vmatpush1.bf16.msra.mxu0 %v1522
        %2050 = vmatprep.subr.bf16.mxu0 %v1535
        %2051 = vmatpush1.bf16.msra.mxu0 %v1534
        %2052 = vmatprep.subr.bf16.mxu0 %v1547
        %2053 = vmatpush1.bf16.msra.mxu0 %v1546
        %2054 = vmatprep.subr.bf16.mxu0 %v1559
        %2055 = vmatpush1.bf16.msra.mxu0 %v1558
        %2056 = vmatprep.subr.bf16.mxu0 %v1571
        %2057 = vmatpush1.bf16.msra.mxu0 %v1570
        %2058 = vmatprep.subr.bf16.mxu0 %v1583
        %2059 = vmatpush1.bf16.msra.mxu0 %v1582
        %2060 = vmatprep.subr.bf16.mxu0 %v1595
        %2061 = vmatpush1.bf16.msra.mxu0 %v1594
        %2062 = vmatprep.subr.bf16.mxu0 %v1607
        %2063 = vmatpush1.bf16.msra.mxu0 %v1606
        %2064 = vmatprep.subr.bf16.mxu0 %v1619
        %2065 = vmatpush1.bf16.msra.mxu0 %v1618
        %2066 = vmatprep.subr.bf16.mxu0 %v1631
        %2067 = vmatpush1.bf16.msra.mxu0 %v1630
        %2068 = vmatprep.subr.bf16.mxu0 %v1643
        %2069 = vmatpush1.bf16.msra.mxu0 %v1642
        %2070 = vmatprep.mubr.bf16.mxu0 %v593
        %2071 = vmatmul.mubr.bf16.gmra.mrb[0].mxu0 %v592
        %v2072 = vpop.f32.mrb[0].mxu0
        %v2073 = vadd.f32 %v530, %v2072
        %v2074 = vpop.f32.mrb[0].mxu0
        %v2075 = vadd.f32 %v534, %v2074
        %v2076 = vpop.f32.mrb[0].mxu0
        %v2077 = vpop.f32.mrb[0].mxu0
        %2078 = vdwg.mxu0
        %2079 = vmatprep.subr.bf16.mxu0 %v1655
        %2080 = vmatpush1.bf16.msra.mxu0 %v1654
        %2081 = vmatprep.subr.bf16.mxu0 %v1667
        %2082 = vmatpush1.bf16.msra.mxu0 %v1666
        %2083 = vmatprep.subr.bf16.mxu0 %v1679
        %2084 = vmatpush1.bf16.msra.mxu0 %v1678
        %2085 = vmatprep.subr.bf16.mxu0 %v1691
        %2086 = vmatpush1.bf16.msra.mxu0 %v1690
        %2087 = vmatprep.subr.bf16.mxu0 %v1703
        %2088 = vmatpush1.bf16.msra.mxu0 %v1702
        %2089 = vmatprep.subr.bf16.mxu0 %v1715
        %2090 = vmatpush1.bf16.msra.mxu0 %v1714
        %2091 = vmatprep.subr.bf16.mxu0 %v1727
        %2092 = vmatpush1.bf16.msra.mxu0 %v1726
        %2093 = vmatprep.subr.bf16.mxu0 %v1739
        %2094 = vmatpush1.bf16.msra.mxu0 %v1738
        %2095 = vmatprep.subr.bf16.mxu0 0
        %2096 = vmatpush1.bf16.msra.mxu0 0
        %2097 = vmatprep.subr.bf16.mxu0 0
        %2098 = vmatpush1.bf16.msra.mxu0 0
        %2099 = vmatprep.subr.bf16.mxu0 0
        %2100 = vmatpush1.bf16.msra.mxu0 0
        %2101 = vmatprep.subr.bf16.mxu0 0
        %2102 = vmatpush1.bf16.msra.mxu0 0
        %2103 = vmatprep.subr.bf16.mxu0 0
        %2104 = vmatpush1.bf16.msra.mxu0 0
        %2105 = vmatprep.subr.bf16.mxu0 0
        %2106 = vmatpush1.bf16.msra.mxu0 0
        %2107 = vmatprep.subr.bf16.mxu0 0
        %2108 = vmatpush1.bf16.msra.mxu0 0
        %2109 = vmatprep.subr.bf16.mxu0 0
        %2110 = vmatpush1.bf16.msra.mxu0 0
        %2111 = vmatprep.mubr.bf16.mxu0 0
        %2112 = vmatmul.mubr.bf16.gmra.mrb[0].mxu0 %v594
        %v2113 = vpop.f32.mrb[0].mxu0
        %v2114 = vadd.f32 %v2073, %v2113
        %v2115 = vpop.f32.mrb[0].mxu0
        %v2116 = vadd.f32 %v2075, %v2115
        %v2117 = vpop.f32.mrb[0].mxu0
        %v2118 = vpop.f32.mrb[0].mxu0
        %2119 = vdwg.mxu0
        %2120 = vmatprep.subr.bf16.mxu0 %v1465
        %2121 = vmatpush1.bf16.msra.mxu0 %v1464
        %2122 = vmatprep.subr.bf16.mxu0 %v1477
        %2123 = vmatpush1.bf16.msra.mxu0 %v1476
        %2124 = vmatprep.subr.bf16.mxu0 %v1489
        %2125 = vmatpush1.bf16.msra.mxu0 %v1488
        %2126 = vmatprep.subr.bf16.mxu0 %v1501
        %2127 = vmatpush1.bf16.msra.mxu0 %v1500
        %2128 = vmatprep.subr.bf16.mxu0 %v1513
        %2129 = vmatpush1.bf16.msra.mxu0 %v1512
        %2130 = vmatprep.subr.bf16.mxu0 %v1525
        %2131 = vmatpush1.bf16.msra.mxu0 %v1524
        %2132 = vmatprep.subr.bf16.mxu0 %v1537
        %2133 = vmatpush1.bf16.msra.mxu0 %v1536
        %2134 = vmatprep.subr.bf16.mxu0 %v1549
        %2135 = vmatpush1.bf16.msra.mxu0 %v1548
        %2136 = vmatprep.subr.bf16.mxu0 %v1561
        %2137 = vmatpush1.bf16.msra.mxu0 %v1560
        %2138 = vmatprep.subr.bf16.mxu0 %v1573
        %2139 = vmatpush1.bf16.msra.mxu0 %v1572
        %2140 = vmatprep.subr.bf16.mxu0 %v1585
        %2141 = vmatpush1.bf16.msra.mxu0 %v1584
        %2142 = vmatprep.subr.bf16.mxu0 %v1597
        %2143 = vmatpush1.bf16.msra.mxu0 %v1596
        %2144 = vmatprep.subr.bf16.mxu0 %v1609
        %2145 = vmatpush1.bf16.msra.mxu0 %v1608
        %2146 = vmatprep.subr.bf16.mxu0 %v1621
        %2147 = vmatpush1.bf16.msra.mxu0 %v1620
        %2148 = vmatprep.subr.bf16.mxu0 %v1633
        %2149 = vmatpush1.bf16.msra.mxu0 %v1632
        %2150 = vmatprep.subr.bf16.mxu0 %v1645
        %2151 = vmatpush1.bf16.msra.mxu0 %v1644
        %2152 = vmatprep.mubr.bf16.mxu0 %v593
        %2153 = vmatmul.mubr.bf16.gmra.mrb[0].mxu0 %v592
        %v2154 = vpop.f32.mrb[0].mxu0
        %v2155 = vadd.f32 %v538, %v2154
        %v2156 = vpop.f32.mrb[0].mxu0
        %v2157 = vadd.f32 %v542, %v2156
        %v2158 = vpop.f32.mrb[0].mxu0
        %v2159 = vpop.f32.mrb[0].mxu0
        %2160 = vdwg.mxu0
        %2161 = vmatprep.subr.bf16.mxu0 %v1657
        %2162 = vmatpush1.bf16.msra.mxu0 %v1656
        %2163 = vmatprep.subr.bf16.mxu0 %v1669
        %2164 = vmatpush1.bf16.msra.mxu0 %v1668
        %2165 = vmatprep.subr.bf16.mxu0 %v1681
        %2166 = vmatpush1.bf16.msra.mxu0 %v1680
        %2167 = vmatprep.subr.bf16.mxu0 %v1693
        %2168 = vmatpush1.bf16.msra.mxu0 %v1692
        %2169 = vmatprep.subr.bf16.mxu0 %v1705
        %2170 = vmatpush1.bf16.msra.mxu0 %v1704
        %2171 = vmatprep.subr.bf16.mxu0 %v1717
        %2172 = vmatpush1.bf16.msra.mxu0 %v1716
        %2173 = vmatprep.subr.bf16.mxu0 %v1729
        %2174 = vmatpush1.bf16.msra.mxu0 %v1728
        %2175 = vmatprep.subr.bf16.mxu0 %v1741
        %2176 = vmatpush1.bf16.msra.mxu0 %v1740
        %2177 = vmatprep.subr.bf16.mxu0 0
        %2178 = vmatpush1.bf16.msra.mxu0 0
        %2179 = vmatprep.subr.bf16.mxu0 0
        %2180 = vmatpush1.bf16.msra.mxu0 0
        %2181 = vmatprep.subr.bf16.mxu0 0
        %2182 = vmatpush1.bf16.msra.mxu0 0
        %2183 = vmatprep.subr.bf16.mxu0 0
        %2184 = vmatpush1.bf16.msra.mxu0 0
        %2185 = vmatprep.subr.bf16.mxu0 0
        %2186 = vmatpush1.bf16.msra.mxu0 0
        %2187 = vmatprep.subr.bf16.mxu0 0
        %2188 = vmatpush1.bf16.msra.mxu0 0
        %2189 = vmatprep.subr.bf16.mxu0 0
        %2190 = vmatpush1.bf16.msra.mxu0 0
        %2191 = vmatprep.subr.bf16.mxu0 0
        %2192 = vmatpush1.bf16.msra.mxu0 0
        %2193 = vmatprep.mubr.bf16.mxu0 0
        %2194 = vmatmul.mubr.bf16.gmra.mrb[0].mxu0 %v594
        %v2195 = vpop.f32.mrb[0].mxu0
        %v2196 = vadd.f32 %v2155, %v2195
        %v2197 = vpop.f32.mrb[0].mxu0
        %v2198 = vadd.f32 %v2157, %v2197
        %v2199 = vpop.f32.mrb[0].mxu0
        %v2200 = vpop.f32.mrb[0].mxu0
        %2201 = vdwg.mxu0
        %2202 = vmatprep.subr.bf16.mxu0 %v1467
        %2203 = vmatpush1.bf16.msra.mxu0 %v1466
        %2204 = vmatprep.subr.bf16.mxu0 %v1479
        %2205 = vmatpush1.bf16.msra.mxu0 %v1478
        %2206 = vmatprep.subr.bf16.mxu0 %v1491
        %2207 = vmatpush1.bf16.msra.mxu0 %v1490
        %2208 = vmatprep.subr.bf16.mxu0 %v1503
        %2209 = vmatpush1.bf16.msra.mxu0 %v1502
        %2210 = vmatprep.subr.bf16.mxu0 %v1515
        %2211 = vmatpush1.bf16.msra.mxu0 %v1514
        %2212 = vmatprep.subr.bf16.mxu0 %v1527
        %2213 = vmatpush1.bf16.msra.mxu0 %v1526
        %2214 = vmatprep.subr.bf16.mxu0 %v1539
        %2215 = vmatpush1.bf16.msra.mxu0 %v1538
        %2216 = vmatprep.subr.bf16.mxu0 %v1551
        %2217 = vmatpush1.bf16.msra.mxu0 %v1550
        %2218 = vmatprep.subr.bf16.mxu0 %v1563
        %2219 = vmatpush1.bf16.msra.mxu0 %v1562
        %2220 = vmatprep.subr.bf16.mxu0 %v1575
        %2221 = vmatpush1.bf16.msra.mxu0 %v1574
        %2222 = vmatprep.subr.bf16.mxu0 %v1587
        %2223 = vmatpush1.bf16.msra.mxu0 %v1586
        %2224 = vmatprep.subr.bf16.mxu0 %v1599
        %2225 = vmatpush1.bf16.msra.mxu0 %v1598
        %2226 = vmatprep.subr.bf16.mxu0 %v1611
        %2227 = vmatpush1.bf16.msra.mxu0 %v1610
        %2228 = vmatprep.subr.bf16.mxu0 %v1623
        %2229 = vmatpush1.bf16.msra.mxu0 %v1622
        %2230 = vmatprep.subr.bf16.mxu0 %v1635
        %2231 = vmatpush1.bf16.msra.mxu0 %v1634
        %2232 = vmatprep.subr.bf16.mxu0 %v1647
        %2233 = vmatpush1.bf16.msra.mxu0 %v1646
        %2234 = vmatprep.mubr.bf16.mxu0 %v593
        %2235 = vmatmul.mubr.bf16.gmra.mrb[0].mxu0 %v592
        %v2236 = vpop.f32.mrb[0].mxu0
        %v2237 = vadd.f32 %v546, %v2236
        %v2238 = vpop.f32.mrb[0].mxu0
        %v2239 = vadd.f32 %v550, %v2238
        %v2240 = vpop.f32.mrb[0].mxu0
        %v2241 = vpop.f32.mrb[0].mxu0
        %2242 = vdwg.mxu0
        %2243 = vmatprep.subr.bf16.mxu0 %v1659
        %2244 = vmatpush1.bf16.msra.mxu0 %v1658
        %2245 = vmatprep.subr.bf16.mxu0 %v1671
        %2246 = vmatpush1.bf16.msra.mxu0 %v1670
        %2247 = vmatprep.subr.bf16.mxu0 %v1683
        %2248 = vmatpush1.bf16.msra.mxu0 %v1682
        %2249 = vmatprep.subr.bf16.mxu0 %v1695
        %2250 = vmatpush1.bf16.msra.mxu0 %v1694
        %2251 = vmatprep.subr.bf16.mxu0 %v1707
        %2252 = vmatpush1.bf16.msra.mxu0 %v1706
        %2253 = vmatprep.subr.bf16.mxu0 %v1719
        %2254 = vmatpush1.bf16.msra.mxu0 %v1718
        %2255 = vmatprep.subr.bf16.mxu0 %v1731
        %2256 = vmatpush1.bf16.msra.mxu0 %v1730
        %2257 = vmatprep.subr.bf16.mxu0 %v1743
        %2258 = vmatpush1.bf16.msra.mxu0 %v1742
        %2259 = vmatprep.subr.bf16.mxu0 0
        %2260 = vmatpush1.bf16.msra.mxu0 0
        %2261 = vmatprep.subr.bf16.mxu0 0
        %2262 = vmatpush1.bf16.msra.mxu0 0
        %2263 = vmatprep.subr.bf16.mxu0 0
        %2264 = vmatpush1.bf16.msra.mxu0 0
        %2265 = vmatprep.subr.bf16.mxu0 0
        %2266 = vmatpush1.bf16.msra.mxu0 0
        %2267 = vmatprep.subr.bf16.mxu0 0
        %2268 = vmatpush1.bf16.msra.mxu0 0
        %2269 = vmatprep.subr.bf16.mxu0 0
        %2270 = vmatpush1.bf16.msra.mxu0 0
        %2271 = vmatprep.subr.bf16.mxu0 0
        %2272 = vmatpush1.bf16.msra.mxu0 0
        %2273 = vmatprep.subr.bf16.mxu0 0
        %2274 = vmatpush1.bf16.msra.mxu0 0
        %2275 = vmatprep.mubr.bf16.mxu0 0
        %2276 = vmatmul.mubr.bf16.gmra.mrb[0].mxu0 %v594
        %v2277 = vpop.f32.mrb[0].mxu0
        %v2278 = vadd.f32 %v2237, %v2277
        %v2279 = vpop.f32.mrb[0].mxu0
        %v2280 = vadd.f32 %v2239, %v2279
        %v2281 = vpop.f32.mrb[0].mxu0
        %v2282 = vpop.f32.mrb[0].mxu0
        %2283 = vdwg.mxu0
        %2284 = vmatprep.subr.bf16.mxu0 %v1469
        %2285 = vmatpush1.bf16.msra.mxu0 %v1468
        %2286 = vmatprep.subr.bf16.mxu0 %v1481
        %2287 = vmatpush1.bf16.msra.mxu0 %v1480
        %2288 = vmatprep.subr.bf16.mxu0 %v1493
        %2289 = vmatpush1.bf16.msra.mxu0 %v1492
        %2290 = vmatprep.subr.bf16.mxu0 %v1505
        %2291 = vmatpush1.bf16.msra.mxu0 %v1504
        %2292 = vmatprep.subr.bf16.mxu0 %v1517
        %2293 = vmatpush1.bf16.msra.mxu0 %v1516
        %2294 = vmatprep.subr.bf16.mxu0 %v1529
        %2295 = vmatpush1.bf16.msra.mxu0 %v1528
        %2296 = vmatprep.subr.bf16.mxu0 %v1541
        %2297 = vmatpush1.bf16.msra.mxu0 %v1540
        %2298 = vmatprep.subr.bf16.mxu0 %v1553
        %2299 = vmatpush1.bf16.msra.mxu0 %v1552
        %2300 = vmatprep.subr.bf16.mxu0 %v1565
        %2301 = vmatpush1.bf16.msra.mxu0 %v1564
        %2302 = vmatprep.subr.bf16.mxu0 %v1577
        %2303 = vmatpush1.bf16.msra.mxu0 %v1576
        %2304 = vmatprep.subr.bf16.mxu0 %v1589
        %2305 = vmatpush1.bf16.msra.mxu0 %v1588
        %2306 = vmatprep.subr.bf16.mxu0 %v1601
        %2307 = vmatpush1.bf16.msra.mxu0 %v1600
        %2308 = vmatprep.subr.bf16.mxu0 %v1613
        %2309 = vmatpush1.bf16.msra.mxu0 %v1612
        %2310 = vmatprep.subr.bf16.mxu0 %v1625
        %2311 = vmatpush1.bf16.msra.mxu0 %v1624
        %2312 = vmatprep.subr.bf16.mxu0 %v1637
        %2313 = vmatpush1.bf16.msra.mxu0 %v1636
        %2314 = vmatprep.subr.bf16.mxu0 %v1649
        %2315 = vmatpush1.bf16.msra.mxu0 %v1648
        %2316 = vmatprep.mubr.bf16.mxu0 %v593
        %2317 = vmatmul.mubr.bf16.gmra.mrb[0].mxu0 %v592
        %v2318 = vpop.f32.mrb[0].mxu0
        %v2319 = vadd.f32 %v554, %v2318
        %v2320 = vpop.f32.mrb[0].mxu0
        %v2321 = vadd.f32 %v558, %v2320
        %v2322 = vpop.f32.mrb[0].mxu0
        %v2323 = vpop.f32.mrb[0].mxu0
        %2324 = vdwg.mxu0
        %2325 = vmatprep.subr.bf16.mxu0 %v1661
        %2326 = vmatpush1.bf16.msra.mxu0 %v1660
        %2327 = vmatprep.subr.bf16.mxu0 %v1673
        %2328 = vmatpush1.bf16.msra.mxu0 %v1672
        %2329 = vmatprep.subr.bf16.mxu0 %v1685
        %2330 = vmatpush1.bf16.msra.mxu0 %v1684
        %2331 = vmatprep.subr.bf16.mxu0 %v1697
        %2332 = vmatpush1.bf16.msra.mxu0 %v1696
        %2333 = vmatprep.subr.bf16.mxu0 %v1709
        %2334 = vmatpush1.bf16.msra.mxu0 %v1708
        %2335 = vmatprep.subr.bf16.mxu0 %v1721
        %2336 = vmatpush1.bf16.msra.mxu0 %v1720
        %2337 = vmatprep.subr.bf16.mxu0 %v1733
        %2338 = vmatpush1.bf16.msra.mxu0 %v1732
        %2339 = vmatprep.subr.bf16.mxu0 %v1745
        %2340 = vmatpush1.bf16.msra.mxu0 %v1744
        %2341 = vmatprep.subr.bf16.mxu0 0
        %2342 = vmatpush1.bf16.msra.mxu0 0
        %2343 = vmatprep.subr.bf16.mxu0 0
        %2344 = vmatpush1.bf16.msra.mxu0 0
        %2345 = vmatprep.subr.bf16.mxu0 0
        %2346 = vmatpush1.bf16.msra.mxu0 0
        %2347 = vmatprep.subr.bf16.mxu0 0
        %2348 = vmatpush1.bf16.msra.mxu0 0
        %2349 = vmatprep.subr.bf16.mxu0 0
        %2350 = vmatpush1.bf16.msra.mxu0 0
        %2351 = vmatprep.subr.bf16.mxu0 0
        %2352 = vmatpush1.bf16.msra.mxu0 0
        %2353 = vmatprep.subr.bf16.mxu0 0
        %2354 = vmatpush1.bf16.msra.mxu0 0
        %2355 = vmatprep.subr.bf16.mxu0 0
        %2356 = vmatpush1.bf16.msra.mxu0 0
        %2357 = vmatprep.mubr.bf16.mxu0 0
        %2358 = vmatmul.mubr.bf16.gmra.mrb[0].mxu0 %v594
        %v2359 = vpop.f32.mrb[0].mxu0
        %v2360 = vadd.f32 %v2319, %v2359
        %v2361 = vpop.f32.mrb[0].mxu0
        %v2362 = vadd.f32 %v2321, %v2361
        %v2363 = vpop.f32.mrb[0].mxu0
        %v2364 = vpop.f32.mrb[0].mxu0
        %2365 = vdwg.mxu0
        %2366 = vmatprep.subr.bf16.mxu0 %v1471
        %2367 = vmatpush1.bf16.msra.mxu0 %v1470
        %2368 = vmatprep.subr.bf16.mxu0 %v1483
        %2369 = vmatpush1.bf16.msra.mxu0 %v1482
        %2370 = vmatprep.subr.bf16.mxu0 %v1495
        %2371 = vmatpush1.bf16.msra.mxu0 %v1494
        %2372 = vmatprep.subr.bf16.mxu0 %v1507
        %2373 = vmatpush1.bf16.msra.mxu0 %v1506
        %2374 = vmatprep.subr.bf16.mxu0 %v1519
        %2375 = vmatpush1.bf16.msra.mxu0 %v1518
        %2376 = vmatprep.subr.bf16.mxu0 %v1531
        %2377 = vmatpush1.bf16.msra.mxu0 %v1530
        %2378 = vmatprep.subr.bf16.mxu0 %v1543
        %2379 = vmatpush1.bf16.msra.mxu0 %v1542
        %2380 = vmatprep.subr.bf16.mxu0 %v1555
        %2381 = vmatpush1.bf16.msra.mxu0 %v1554
        %2382 = vmatprep.subr.bf16.mxu0 %v1567
        %2383 = vmatpush1.bf16.msra.mxu0 %v1566
        %2384 = vmatprep.subr.bf16.mxu0 %v1579
        %2385 = vmatpush1.bf16.msra.mxu0 %v1578
        %2386 = vmatprep.subr.bf16.mxu0 %v1591
        %2387 = vmatpush1.bf16.msra.mxu0 %v1590
        %2388 = vmatprep.subr.bf16.mxu0 %v1603
        %2389 = vmatpush1.bf16.msra.mxu0 %v1602
        %2390 = vmatprep.subr.bf16.mxu0 %v1615
        %2391 = vmatpush1.bf16.msra.mxu0 %v1614
        %2392 = vmatprep.subr.bf16.mxu0 %v1627
        %2393 = vmatpush1.bf16.msra.mxu0 %v1626
        %2394 = vmatprep.subr.bf16.mxu0 %v1639
        %2395 = vmatpush1.bf16.msra.mxu0 %v1638
        %2396 = vmatprep.subr.bf16.mxu0 %v1651
        %2397 = vmatpush1.bf16.msra.mxu0 %v1650
        %2398 = vmatprep.mubr.bf16.mxu0 %v593
        %2399 = vmatmul.mubr.bf16.gmra.mrb[0].mxu0 %v592
        %v2400 = vpop.f32.mrb[0].mxu0
        %v2401 = vadd.f32 %v562, %v2400
        %v2402 = vpop.f32.mrb[0].mxu0
        %v2403 = vadd.f32 %v566, %v2402
        %v2404 = vpop.f32.mrb[0].mxu0
        %v2405 = vpop.f32.mrb[0].mxu0
        %2406 = vdwg.mxu0
        %2407 = vmatprep.subr.bf16.mxu0 %v1663
        %2408 = vmatpush1.bf16.msra.mxu0 %v1662
        %2409 = vmatprep.subr.bf16.mxu0 %v1675
        %2410 = vmatpush1.bf16.msra.mxu0 %v1674
        %2411 = vmatprep.subr.bf16.mxu0 %v1687
        %2412 = vmatpush1.bf16.msra.mxu0 %v1686
        %2413 = vmatprep.subr.bf16.mxu0 %v1699
        %2414 = vmatpush1.bf16.msra.mxu0 %v1698
        %2415 = vmatprep.subr.bf16.mxu0 %v1711
        %2416 = vmatpush1.bf16.msra.mxu0 %v1710
        %2417 = vmatprep.subr.bf16.mxu0 %v1723
        %2418 = vmatpush1.bf16.msra.mxu0 %v1722
        %2419 = vmatprep.subr.bf16.mxu0 %v1735
        %2420 = vmatpush1.bf16.msra.mxu0 %v1734
        %2421 = vmatprep.subr.bf16.mxu0 %v1747
        %2422 = vmatpush1.bf16.msra.mxu0 %v1746
        %2423 = vmatprep.subr.bf16.mxu0 0
        %2424 = vmatpush1.bf16.msra.mxu0 0
        %2425 = vmatprep.subr.bf16.mxu0 0
        %2426 = vmatpush1.bf16.msra.mxu0 0
        %2427 = vmatprep.subr.bf16.mxu0 0
        %2428 = vmatpush1.bf16.msra.mxu0 0
        %2429 = vmatprep.subr.bf16.mxu0 0
        %2430 = vmatpush1.bf16.msra.mxu0 0
        %2431 = vmatprep.subr.bf16.mxu0 0
        %2432 = vmatpush1.bf16.msra.mxu0 0
        %2433 = vmatprep.subr.bf16.mxu0 0
        %2434 = vmatpush1.bf16.msra.mxu0 0
        %2435 = vmatprep.subr.bf16.mxu0 0
        %2436 = vmatpush1.bf16.msra.mxu0 0
        %2437 = vmatprep.subr.bf16.mxu0 0
        %2438 = vmatpush1.bf16.msra.mxu0 0
        %2439 = vmatprep.mubr.bf16.mxu0 0
        %2440 = vmatmul.mubr.bf16.gmra.mrb[0].mxu0 %v594
        %v2441 = vpop.f32.mrb[0].mxu0
        %v2442 = vadd.f32 %v2401, %v2441
        %v2443 = vpop.f32.mrb[0].mxu0
        %v2444 = vadd.f32 %v2403, %v2443
        %v2445 = vpop.f32.mrb[0].mxu0
        %v2446 = vpop.f32.mrb[0].mxu0
        %2447 = vdwg.mxu0
        %2448 = vmatprep.subr.bf16.mxu0 %v1473
        %2449 = vmatpush1.bf16.msra.mxu0 %v1472
        %2450 = vmatprep.subr.bf16.mxu0 %v1485
        %2451 = vmatpush1.bf16.msra.mxu0 %v1484
        %2452 = vmatprep.subr.bf16.mxu0 %v1497
        %2453 = vmatpush1.bf16.msra.mxu0 %v1496
        %2454 = vmatprep.subr.bf16.mxu0 %v1509
        %2455 = vmatpush1.bf16.msra.mxu0 %v1508
        %2456 = vmatprep.subr.bf16.mxu0 %v1521
        %2457 = vmatpush1.bf16.msra.mxu0 %v1520
        %2458 = vmatprep.subr.bf16.mxu0 %v1533
        %2459 = vmatpush1.bf16.msra.mxu0 %v1532
        %2460 = vmatprep.subr.bf16.mxu0 %v1545
        %2461 = vmatpush1.bf16.msra.mxu0 %v1544
        %2462 = vmatprep.subr.bf16.mxu0 %v1557
        %2463 = vmatpush1.bf16.msra.mxu0 %v1556
        %2464 = vmatprep.subr.bf16.mxu0 %v1569
        %2465 = vmatpush1.bf16.msra.mxu0 %v1568
        %2466 = vmatprep.subr.bf16.mxu0 %v1581
        %2467 = vmatpush1.bf16.msra.mxu0 %v1580
        %2468 = vmatprep.subr.bf16.mxu0 %v1593
        %2469 = vmatpush1.bf16.msra.mxu0 %v1592
        %2470 = vmatprep.subr.bf16.mxu0 %v1605
        %2471 = vmatpush1.bf16.msra.mxu0 %v1604
        %2472 = vmatprep.subr.bf16.mxu0 %v1617
        %2473 = vmatpush1.bf16.msra.mxu0 %v1616
        %2474 = vmatprep.subr.bf16.mxu0 %v1629
        %2475 = vmatpush1.bf16.msra.mxu0 %v1628
        %2476 = vmatprep.subr.bf16.mxu0 %v1641
        %2477 = vmatpush1.bf16.msra.mxu0 %v1640
        %2478 = vmatprep.subr.bf16.mxu0 %v1653
        %2479 = vmatpush1.bf16.msra.mxu0 %v1652
        %2480 = vmatprep.mubr.bf16.mxu0 %v593
        %2481 = vmatmul.mubr.bf16.gmra.mrb[0].mxu0 %v592
        %v2482 = vpop.f32.mrb[0].mxu0
        %v2483 = vadd.f32 %v570, %v2482
        %v2484 = vpop.f32.mrb[0].mxu0
        %v2485 = vadd.f32 %v574, %v2484
        %v2486 = vpop.f32.mrb[0].mxu0
        %v2487 = vpop.f32.mrb[0].mxu0
        %2488 = vdwg.mxu0
        %2489 = vmatprep.subr.bf16.mxu0 %v1665
        %2490 = vmatpush1.bf16.msra.mxu0 %v1664
        %2491 = vmatprep.subr.bf16.mxu0 %v1677
        %2492 = vmatpush1.bf16.msra.mxu0 %v1676
        %2493 = vmatprep.subr.bf16.mxu0 %v1689
        %2494 = vmatpush1.bf16.msra.mxu0 %v1688
        %2495 = vmatprep.subr.bf16.mxu0 %v1701
        %2496 = vmatpush1.bf16.msra.mxu0 %v1700
        %2497 = vmatprep.subr.bf16.mxu0 %v1713
        %2498 = vmatpush1.bf16.msra.mxu0 %v1712
        %2499 = vmatprep.subr.bf16.mxu0 %v1725
        %2500 = vmatpush1.bf16.msra.mxu0 %v1724
        %2501 = vmatprep.subr.bf16.mxu0 %v1737
        %2502 = vmatpush1.bf16.msra.mxu0 %v1736
        %2503 = vmatprep.subr.bf16.mxu0 %v1749
        %2504 = vmatpush1.bf16.msra.mxu0 %v1748
        %2505 = vmatprep.subr.bf16.mxu0 0
        %2506 = vmatpush1.bf16.msra.mxu0 0
        %2507 = vmatprep.subr.bf16.mxu0 0
        %2508 = vmatpush1.bf16.msra.mxu0 0
        %2509 = vmatprep.subr.bf16.mxu0 0
        %2510 = vmatpush1.bf16.msra.mxu0 0
        %2511 = vmatprep.subr.bf16.mxu0 0
        %2512 = vmatpush1.bf16.msra.mxu0 0
        %2513 = vmatprep.subr.bf16.mxu0 0
        %2514 = vmatpush1.bf16.msra.mxu0 0
        %2515 = vmatprep.subr.bf16.mxu0 0
        %2516 = vmatpush1.bf16.msra.mxu0 0
        %2517 = vmatprep.subr.bf16.mxu0 0
        %2518 = vmatpush1.bf16.msra.mxu0 0
        %2519 = vmatprep.subr.bf16.mxu0 0
        %2520 = vmatpush1.bf16.msra.mxu0 0
        %2521 = vmatprep.mubr.bf16.mxu0 0
        %2522 = vmatmul.mubr.bf16.gmra.mrb[0].mxu0 %v594
        %v2523 = vpop.f32.mrb[0].mxu0
        %v2524 = vadd.f32 %v2483, %v2523
        %v2525 = vpop.f32.mrb[0].mxu0
        %v2526 = vadd.f32 %v2485, %v2525
        %v2527 = vpop.f32.mrb[0].mxu0
        %v2528 = vpop.f32.mrb[0].mxu0
        %2529 = vdwg.mxu0
        %v2530 = vtanh.pop %v2114
        %v2531 = vtanh.pop %v2116
        %v2532 = vtanh.pop %v2196
        %v2533 = vtanh.pop %v2198
        %v2534 = vtanh.pop %v2278
        %v2535 = vtanh.pop %v2280
        %v2536 = vtanh.pop %v2360
        %v2537 = vtanh.pop %v2362
        %v2538 = vtanh.pop %v2442
        %v2539 = vtanh.pop %v2444
        %v2540 = vtanh.pop %v2524
        %v2541 = vtanh.pop %v2526
        %2542 = vst [vmem:[%s230] sm:$0xff] %v2530
        %2543 = vst [vmem:[%s230 + $0x8] sm:$0xff] %v2531
        %2544 = vst [vmem:[%s230 + $0x10] sm:$0xff] %v2532
        %2545 = vst [vmem:[%s230 + $0x18] sm:$0xff] %v2533
        %2546 = vst [vmem:[%s230 + $0x20] sm:$0xff] %v2534
        %2547 = vst [vmem:[%s230 + $0x28] sm:$0xff] %v2535
        %2548 = vst [vmem:[%s230 + $0x30] sm:$0xff] %v2536
        %2549 = vst [vmem:[%s230 + $0x38] sm:$0xff] %v2537
        %2550 = vst [vmem:[%s230 + $0x40] sm:$0xff] %v2538
        %2551 = vst [vmem:[%s230 + $0x48] sm:$0xff] %v2539
        %2552 = vst [vmem:[%s230 + $0x50] sm:$0xff] %v2540
        %2553 = vst [vmem:[%s230 + $0x58] sm:$0xff] %v2541
        %s2554 = smul.u32 12, %s20
        %p2555 = scmp.lt.s32.totalorder %s2554, 23
        %s2556 = scalar_select %p2555, %s2554, 23
        %s2557 = smul.addr %s2556, 8
        %s2558 = scalar_lea.vmem %s3, %s2557
        // Predicated region
        $region41: #{run.3} parent=31 // pred_check
          %p2559 = pneg %p111
        $region42: #{run.3} parent=31 // pred_check_branch
          %2561 = sbr.rel (%p2559) target = $region44
        $region43: #{run.3} parent=31 // pred_region
          %s2562 = smul.u32 12, %s20
        $region44: #{run.3} parent=31 // pred_fallthru
          _
      $region32: #{run.3} parent=5 // pred_fallthru
        _
      %p2563 = scmp.le.s32.totalorder 2, %s15
      // Predicated region
      $region45: #{run.3} parent=5 // pred_check
        %p2564 = pneg %p2563
      $region46: #{run.3} parent=5 // pred_check_branch
        %2566 = sbr.rel (%p2564) target = $region48
      $region47: #{run.3} parent=5 // pred_region
        %s2567 = ssub.s32 %s15, 2
        // Predicated region
        $region49: #{run.3} parent=47 // pred_check
          %p2568 = pneg %p117
        $region50: #{run.3} parent=47 // pred_check_branch
          %2570 = sbr.rel (%p2568) target = $region52
        $region51: #{run.3} parent=47 // pred_region
          %s2571 = smul.u32 12, %s21
          %p2572 = scmp.lt.s32.totalorder %s2571, 23
          %s2573 = scalar_select %p2572, %s2571, 23
          %s2574 = smul.addr %s2573, 8
          %s2575 = scalar_lea.vmem %s3, %s2574
        $region52: #{run.3} parent=47 // pred_fallthru
          _
      $region48: #{run.3} parent=5 // pred_fallthru
        _
    $region6: #{run.3} parent=1 // loop_footer
      %s19 = sadd.s32 1, %s15
    $region7: #{run.3} parent=1 // loop_footer_branch
      %14 = sbr.rel target = $region3
    $region8: #{run.3} parent=1 // loop_exit
      _
    %2576 = vsyncpa [#allocation3], 1
    %s2577 = scalar_lea.sflag [#allocation3], 1
    %2578 = vsyncpa %s2577, 1
    %2579 = vsyncpa [#allocation5], 1
    %s2580 = scalar_lea.sflag [#allocation5], 1
    %2581 = vsyncpa %s2580, 1

</llo_original>
